<compile_context>
chip_gen: v5e
topology: v5e:2x2
jax: 0.10.0
libtpu: 0.0.40
codegen_flags: <defaults>
</compile_context>

<pallas_src>
import jax
import jax.numpy as jnp
from jax.experimental import pallas as pl
from jax.experimental.pallas import tpu as pltpu

_LANE = 128  # vreg lane width -> channel dims padded to this


def _round_up(x, m):
    return (x + m - 1) // m * m


# ----------------------------- Pallas kernel ------------------------------
# One grid step = one batch image.  The 3x3 conv is 9 shifted sub-matmuls over
# polyphase slabs of the padded activation (in-kernel im2col), accumulated in
# f32, with the shortcut (projection matmul / identity add) and the ReLU fused
# into the epilogue.  bf16 operands on the MXU, lane-dense bf16 stores.

def _conv3x3_call(phases, w_taps, taps, M, *, xs=None, wsc=None, res=None,
                  out_dtype=jnp.bfloat16):
    """relu( conv3x3(phases, w_taps) + [xs @ wsc | res | 0] ).

    phases : (N, n_phase, R, Ci) bf16   polyphase slabs, R flat rows x Ci lanes
    w_taps : (9, Ci, Co) bf16           per-tap weight matrices, t = 3*dh + dw
    taps   : 9 static (phase_index, flat_row_offset) pairs
    M      : flat output rows (= Ho * Wc; columns j >= Wo are garbage, sliced later)
    xs,wsc : (N, M, Cs) bf16 / (Cs, Co) bf16  fused 1x1 projection shortcut
    res    : (N, M, Co) bf16                  fused identity shortcut
    """
    N, n_phase, R, ci = phases.shape
    _, _, co = w_taps.shape

    def tap_acc(x_ref, w_ref):
        acc = None
        for t, (p, off) in enumerate(taps):
            lhs = x_ref[0, p, off:off + M, :]          # contiguous VMEM row slice
            c = jnp.dot(lhs, w_ref[t], preferred_element_type=jnp.float32)
            acc = c if acc is None else acc + c
        return acc

    x_spec = pl.BlockSpec((1, n_phase, R, ci), lambda n: (n, 0, 0, 0))
    # Constant block index -> fetched once, VMEM-resident across all grid steps.
    w_spec = pl.BlockSpec((9, ci, co), lambda n: (0, 0, 0))
    out_spec = pl.BlockSpec((1, M, co), lambda n: (n, 0, 0))

    flops = 2 * N * 9 * M * ci * co
    bytes_accessed = (phases.size + w_taps.size) * 2 \
        + N * M * co * jnp.dtype(out_dtype).itemsize

    if wsc is not None:
        cs = wsc.shape[0]

        def kernel(x_ref, w_ref, xs_ref, wsc_ref, o_ref):
            acc = tap_acc(x_ref, w_ref)
            acc = acc + jnp.dot(xs_ref[0], wsc_ref[...],
                                preferred_element_type=jnp.float32)
            o_ref[0] = jnp.maximum(acc, 0.0).astype(o_ref.dtype)

        inputs = (phases, w_taps, xs, wsc)
        in_specs = [x_spec, w_spec,
                    pl.BlockSpec((1, M, cs), lambda n: (n, 0, 0)),
                    pl.BlockSpec((cs, co), lambda n: (0, 0))]
        flops += 2 * N * M * cs * co
        bytes_accessed += (xs.size + wsc.size) * 2
    elif res is not None:

        def kernel(x_ref, w_ref, r_ref, o_ref):
            acc = tap_acc(x_ref, w_ref) + r_ref[0].astype(jnp.float32)
            o_ref[0] = jnp.maximum(acc, 0.0).astype(o_ref.dtype)

        inputs = (phases, w_taps, res)
        in_specs = [x_spec, w_spec, pl.BlockSpec((1, M, co), lambda n: (n, 0, 0))]
        bytes_accessed += res.size * 2
    else:

        def kernel(x_ref, w_ref, o_ref):
            o_ref[0] = jnp.maximum(tap_acc(x_ref, w_ref), 0.0).astype(o_ref.dtype)

        inputs = (phases, w_taps)
        in_specs = [x_spec, w_spec]

    return pl.pallas_call(
        kernel,
        out_shape=jax.ShapeDtypeStruct((N, M, co), out_dtype),
        grid=(N,),                                    # >= 2 steps whenever batch >= 2
        in_specs=in_specs,
        out_specs=out_spec,
        compiler_params=pltpu.CompilerParams(
            dimension_semantics=("parallel",),        # shards batch across TCs on v7x
            vmem_limit_bytes=48 * 1024 * 1024,        # few-MiB working set; fits all gens
        ),
        cost_estimate=pl.CostEstimate(flops=int(flops), transcendentals=0,
                                      bytes_accessed=int(bytes_accessed)),
    )(*inputs)


# ------------------------------- JAX glue ---------------------------------

def _phase_pack(x_nhwc, stride, ci_pad):
    """Polyphase pack of the 1-padded activation for a 3x3 / stride-s conv.

    Returns (phases, taps, (Ho, Wo, Wc, M)):
      phases : (N, stride*stride, R, ci_pad) — each phase flattened row-major
      taps   : 9 (phase_index, flat_row_offset) pairs, t = 3*dh + dw
    Output flat row m = i*Wc + j; only columns j < Wo are valid.
    """
    N, H, W, C = x_nhwc.shape
    Ho = (H - 1) // stride + 1
    Wo = (W - 1) // stride + 1
    shift = 2 // stride                    # max per-phase (dh//s, dw//s) offset
    Wc, Hc = Wo + shift, Ho + shift
    M = Ho * Wc
    R = _round_up(Hc * Wc + shift, 8)      # slack for the largest shifted slice

    xp = jnp.pad(x_nhwc, ((0, 0), (1, 1), (1, 1), (0, 0)))
    slabs = []
    for a in range(stride):
        for b in range(stride):
            p = xp[:, a::stride, b::stride, :][:, :Hc, :Wc, :]
            p = jnp.pad(p, ((0, 0), (0, Hc - p.shape[1]),
                            (0, Wc - p.shape[2]), (0, 0)))
            slabs.append(p.reshape(N, Hc * Wc, C))
    ph = jnp.stack(slabs, axis=1)
    ph = jnp.pad(ph, ((0, 0), (0, 0), (0, R - Hc * Wc), (0, ci_pad - C)))

    taps = tuple(((dh % stride) * stride + (dw % stride),
                  (dh // stride) * Wc + (dw // stride))
                 for dh in range(3) for dw in range(3))
    return ph, taps, (Ho, Wo, Wc, M)


def _pack_w3x3(w_oihw, ci_pad, co_pad, dtype):
    """(Cout, Cin, 3, 3) -> (9, ci_pad, co_pad) per-tap matrices, t = 3*dh + dw."""
    co, ci, kh, kw = w_oihw.shape
    wt = jnp.transpose(w_oihw, (2, 3, 1, 0)).reshape(kh * kw, ci, co)
    return jnp.pad(wt, ((0, 0), (0, ci_pad - ci), (0, co_pad - co))).astype(dtype)


def _to_out_flat(img, Wc, c_pad):
    """(N, Ho, Wo, C) -> (N, Ho*Wc, c_pad): the kernel's flat output-row layout."""
    N, Ho, Wo, C = img.shape
    img = jnp.pad(img, ((0, 0), (0, 0), (0, Wc - Wo), (0, c_pad - C)))
    return img.reshape(N, Ho * Wc, c_pad)


def basic_block_forward_nhwc(x_nhwc, params, stride):
    """Pallas BasicBlock.forward (option 'B'), NHWC.

    Returns lane-dense bf16 NHWC with channels padded to a multiple of 128 —
    chain blocks in this format and slice/upcast only at the network boundary.
    """
    N, H, W, cin = x_nhwc.shape
    w1, w2 = params["w1"], params["w2"]
    wsc = params.get("wsc", None)
    planes = w1.shape[0]
    cdt = jnp.bfloat16
    ci_pad = _round_up(cin, _LANE)
    co_pad = _round_up(planes, _LANE)

    x = x_nhwc.astype(cdt)

    # ---- conv1 (3x3, stride, pad 1) + ReLU --------------------------------
    ph1, taps1, (Ho, Wo, Wc1, M1) = _phase_pack(x, stride, ci_pad)
    out1 = _conv3x3_call(ph1, _pack_w3x3(w1, ci_pad, co_pad, cdt), taps1, M1)
    out1_img = out1.reshape(N, Ho, Wc1, co_pad)[:, :, :Wo, :]    # bf16, lane-dense

    # ---- conv2 (3x3, stride 1, pad 1) + shortcut + ReLU (one fused kernel) -
    ph2, taps2, (Ho2, Wo2, Wc2, M2) = _phase_pack(out1_img, 1, co_pad)
    w2p = _pack_w3x3(w2, co_pad, co_pad, cdt)

    if wsc is not None:
        # projection ('B') shortcut: 1x1 stride-s conv fused into the conv2 kernel
        xs = _to_out_flat(x[:, ::stride, ::stride, :], Wc2, ci_pad)
        wscm = jnp.pad(wsc.reshape(planes, cin).T,
                       ((0, ci_pad - cin), (0, co_pad - planes))).astype(cdt)
        out = _conv3x3_call(ph2, w2p, taps2, M2, xs=xs, wsc=wscm)
    else:
        # identity shortcut: only valid when stride == 1 and in_planes == planes
        assert stride == 1 and cin in (planes, co_pad), (
            "identity shortcut requires stride == 1 and in_planes == planes")
        # NOTE: residual is added in bf16 (matching the bf16 activation chain);
        # stock PyTorch adds it in f32 — pass `res` as f32 if exact parity matters.
        out = _conv3x3_call(ph2, w2p, taps2, M2, res=_to_out_flat(x, Wc2, co_pad))

    return out.reshape(N, Ho2, Wc2, co_pad)[:, :, :Wo2, :]


def basic_block_forward(x_nchw, params, stride):
    """NCHW wrapper matching the PyTorch interface.

    Transpose + channel slice + f32 upcast happen only here (the network
    boundary); chained blocks should call basic_block_forward_nhwc directly.
    """
    planes = params["w1"].shape[0]
    x = jnp.transpose(x_nchw, (0, 2, 3, 1))
    y = basic_block_forward_nhwc(x, params, stride)
    y = y[..., :planes].astype(x_nchw.dtype)
    return jnp.transpose(y, (0, 3, 1, 2))


def _reference_forward(x_nchw, params, stride):
    """XLA reference with the kernel's bf16-operand / f32-accumulate / bf16-store numerics."""
    dn = ("NCHW", "OIHW", "NCHW")
    xb = x_nchw.astype(jnp.bfloat16)
    w1 = params["w1"].astype(jnp.bfloat16)
    w2 = params["w2"].astype(jnp.bfloat16)
    c1 = jax.lax.conv_general_dilated(xb, w1, (stride, stride), ((1, 1), (1, 1)),
                                      dimension_numbers=dn,
                                      preferred_element_type=jnp.float32)
    c1 = jnp.maximum(c1, 0.0).astype(jnp.bfloat16)
    c2 = jax.lax.conv_general_dilated(c1, w2, (1, 1), ((1, 1), (1, 1)),
                                      dimension_numbers=dn,
                                      preferred_element_type=jnp.float32)
    if params.get("wsc", None) is not None:
        wsc = params["wsc"].astype(jnp.bfloat16)
        sc = jax.lax.conv_general_dilated(xb, wsc, (stride, stride), ((0, 0), (0, 0)),
                                          dimension_numbers=dn,
                                          preferred_element_type=jnp.float32)
    else:
        sc = xb.astype(jnp.float32)
    out = jnp.maximum(c2 + sc, 0.0)
    return out.astype(jnp.bfloat16).astype(x_nchw.dtype)   # kernel stores bf16


# --------------------------------- main ------------------------------------

if __name__ == "__main__":
    key = jax.random.PRNGKey(0)
    k_x, k_w1, k_w2, k_ws, k_x2, k_v1, k_v2 = jax.random.split(key, 7)

    def init_w(k, shape):
        fan_in = shape[1] * shape[2] * shape[3]
        return jax.random.normal(k, shape, jnp.float32) * (2.0 / fan_in) ** 0.5

    fwd = jax.jit(basic_block_forward, static_argnums=2)

    # ---- Test 1: projection ('B') shortcut — BasicBlock(4, 8, stride=2) ----
    batch, in_planes, planes, spatial, stride = 2, 4, 8, 16, 2
    x = jax.random.normal(k_x, (batch, in_planes, spatial, spatial), jnp.float32)
    params = {
        "w1": init_w(k_w1, (planes, in_planes, 3, 3)),
        "w2": init_w(k_w2, (planes, planes, 3, 3)),
        "wsc": init_w(k_ws, (planes, in_planes, 1, 1)),
    }
    out = jax.block_until_ready(fwd(x, params, stride))
    ref = jax.block_until_ready(_reference_forward(x, params, stride))
    assert out.shape == (batch, planes, spatial // stride, spatial // stride)
    assert bool(jnp.allclose(out, ref, atol=2e-2, rtol=2e-2)), "projection-block mismatch"

    # ---- Test 2: identity shortcut — BasicBlock(8, 8, stride=1) ------------
    x2 = jax.random.normal(k_x2, (batch, planes, 8, 8), jnp.float32)
    params2 = {
        "w1": init_w(k_v1, (planes, planes, 3, 3)),
        "w2": init_w(k_v2, (planes, planes, 3, 3)),
    }
    out2 = jax.block_until_ready(fwd(x2, params2, 1))
    ref2 = jax.block_until_ready(_reference_forward(x2, params2, 1))
    assert out2.shape == x2.shape
    assert bool(jnp.allclose(out2, ref2, atol=2e-2, rtol=2e-2)), "identity-block mismatch"

    print("KERNEL_OK")
</pallas_src>

<mosaic_0001>
module attributes {stable_mosaic.version = 11 : i64} {
  func.func @kernel(%arg0: i32, %arg1: memref<1x4x88x128xbf16, #tpu.memory_space<vmem>>, %arg2: memref<9x128x128xbf16, #tpu.memory_space<vmem>>, %arg3: memref<1x72x128xbf16, #tpu.memory_space<vmem>>) attributes {dimension_semantics = [#tpu.dimension_semantics<parallel>], iteration_bounds = array<i64: 2>, scalar_prefetch = 0 : i64, scratch_operands = 0 : i64, tpu.core_type = #tpu.core_type<tc>, window_params = [{transform_indices = @transform_0, window_bounds = array<i64: 1, 4, 88, 128>}, {pipeline_mode = #tpu.pipeline_mode<synchronous>, transform_indices = @transform_1, window_bounds = array<i64: 9, 128, 128>}, {transform_indices = @transform_2, window_bounds = array<i64: 1, 72, 128>}]} {
    %c0 = arith.constant 0 : index
    %c0_0 = arith.constant 0 : index
    %c0_1 = arith.constant 0 : index
    %c0_2 = arith.constant 0 : index
    %0 = vector.load %arg1[%c0, %c0_0, %c0_1, %c0_2] : memref<1x4x88x128xbf16, #tpu.memory_space<vmem>>, vector<1x1x72x128xbf16>
    %1 = vector.shape_cast %0 : vector<1x1x72x128xbf16> to vector<72x128xbf16>
    %c0_3 = arith.constant 0 : index
    %c0_4 = arith.constant 0 : index
    %c0_5 = arith.constant 0 : index
    %2 = vector.load %arg2[%c0_3, %c0_4, %c0_5] : memref<9x128x128xbf16, #tpu.memory_space<vmem>>, vector<1x128x128xbf16>
    %3 = vector.shape_cast %2 : vector<1x128x128xbf16> to vector<128x128xbf16>
    %cst = arith.constant dense<0.000000e+00> : vector<72x128xf32>
    %4 = tpu.matmul %1, %3, %cst {dimension_numbers = #tpu.dot_dimension_numbers<[1], [0], [0], [1], [0, 0, 1, 1], [], []>} : vector<72x128xbf16>, vector<128x128xbf16>, vector<72x128xf32> -> vector<72x128xf32>
    %c0_6 = arith.constant 0 : index
    %c1 = arith.constant 1 : index
    %c0_7 = arith.constant 0 : index
    %c0_8 = arith.constant 0 : index
    %5 = vector.load %arg1[%c0_6, %c1, %c0_7, %c0_8] : memref<1x4x88x128xbf16, #tpu.memory_space<vmem>>, vector<1x1x72x128xbf16>
    %6 = vector.shape_cast %5 : vector<1x1x72x128xbf16> to vector<72x128xbf16>
    %c1_9 = arith.constant 1 : index
    %c0_10 = arith.constant 0 : index
    %c0_11 = arith.constant 0 : index
    %7 = vector.load %arg2[%c1_9, %c0_10, %c0_11] : memref<9x128x128xbf16, #tpu.memory_space<vmem>>, vector<1x128x128xbf16>
    %8 = vector.shape_cast %7 : vector<1x128x128xbf16> to vector<128x128xbf16>
    %cst_12 = arith.constant dense<0.000000e+00> : vector<72x128xf32>
    %9 = tpu.matmul %6, %8, %cst_12 {dimension_numbers = #tpu.dot_dimension_numbers<[1], [0], [0], [1], [0, 0, 1, 1], [], []>} : vector<72x128xbf16>, vector<128x128xbf16>, vector<72x128xf32> -> vector<72x128xf32>
    %10 = arith.addf %4, %9 : vector<72x128xf32>
    %c0_13 = arith.constant 0 : index
    %c0_14 = arith.constant 0 : index
    %c1_15 = arith.constant 1 : index
    %c0_16 = arith.constant 0 : index
    %11 = vector.load %arg1[%c0_13, %c0_14, %c1_15, %c0_16] : memref<1x4x88x128xbf16, #tpu.memory_space<vmem>>, vector<1x1x72x128xbf16>
    %12 = vector.shape_cast %11 : vector<1x1x72x128xbf16> to vector<72x128xbf16>
    %c2 = arith.constant 2 : index
    %c0_17 = arith.constant 0 : index
    %c0_18 = arith.constant 0 : index
    %13 = vector.load %arg2[%c2, %c0_17, %c0_18] : memref<9x128x128xbf16, #tpu.memory_space<vmem>>, vector<1x128x128xbf16>
    %14 = vector.shape_cast %13 : vector<1x128x128xbf16> to vector<128x128xbf16>
    %cst_19 = arith.constant dense<0.000000e+00> : vector<72x128xf32>
    %15 = tpu.matmul %12, %14, %cst_19 {dimension_numbers = #tpu.dot_dimension_numbers<[1], [0], [0], [1], [0, 0, 1, 1], [], []>} : vector<72x128xbf16>, vector<128x128xbf16>, vector<72x128xf32> -> vector<72x128xf32>
    %16 = arith.addf %10, %15 : vector<72x128xf32>
    %c0_20 = arith.constant 0 : index
    %c2_21 = arith.constant 2 : index
    %c0_22 = arith.constant 0 : index
    %c0_23 = arith.constant 0 : index
    %17 = vector.load %arg1[%c0_20, %c2_21, %c0_22, %c0_23] : memref<1x4x88x128xbf16, #tpu.memory_space<vmem>>, vector<1x1x72x128xbf16>
    %18 = vector.shape_cast %17 : vector<1x1x72x128xbf16> to vector<72x128xbf16>
    %c3 = arith.constant 3 : index
    %c0_24 = arith.constant 0 : index
    %c0_25 = arith.constant 0 : index
    %19 = vector.load %arg2[%c3, %c0_24, %c0_25] : memref<9x128x128xbf16, #tpu.memory_space<vmem>>, vector<1x128x128xbf16>
    %20 = vector.shape_cast %19 : vector<1x128x128xbf16> to vector<128x128xbf16>
    %cst_26 = arith.constant dense<0.000000e+00> : vector<72x128xf32>
    %21 = tpu.matmul %18, %20, %cst_26 {dimension_numbers = #tpu.dot_dimension_numbers<[1], [0], [0], [1], [0, 0, 1, 1], [], []>} : vector<72x128xbf16>, vector<128x128xbf16>, vector<72x128xf32> -> vector<72x128xf32>
    %22 = arith.addf %16, %21 : vector<72x128xf32>
    %c0_27 = arith.constant 0 : index
    %c3_28 = arith.constant 3 : index
    %c0_29 = arith.constant 0 : index
    %c0_30 = arith.constant 0 : index
    %23 = vector.load %arg1[%c0_27, %c3_28, %c0_29, %c0_30] : memref<1x4x88x128xbf16, #tpu.memory_space<vmem>>, vector<1x1x72x128xbf16>
    %24 = vector.shape_cast %23 : vector<1x1x72x128xbf16> to vector<72x128xbf16>
    %c4 = arith.constant 4 : index
    %c0_31 = arith.constant 0 : index
    %c0_32 = arith.constant 0 : index
    %25 = vector.load %arg2[%c4, %c0_31, %c0_32] : memref<9x128x128xbf16, #tpu.memory_space<vmem>>, vector<1x128x128xbf16>
    %26 = vector.shape_cast %25 : vector<1x128x128xbf16> to vector<128x128xbf16>
    %cst_33 = arith.constant dense<0.000000e+00> : vector<72x128xf32>
    %27 = tpu.matmul %24, %26, %cst_33 {dimension_numbers = #tpu.dot_dimension_numbers<[1], [0], [0], [1], [0, 0, 1, 1], [], []>} : vector<72x128xbf16>, vector<128x128xbf16>, vector<72x128xf32> -> vector<72x128xf32>
    %28 = arith.addf %22, %27 : vector<72x128xf32>
    %c0_34 = arith.constant 0 : index
    %c2_35 = arith.constant 2 : index
    %c1_36 = arith.constant 1 : index
    %c0_37 = arith.constant 0 : index
    %29 = vector.load %arg1[%c0_34, %c2_35, %c1_36, %c0_37] : memref<1x4x88x128xbf16, #tpu.memory_space<vmem>>, vector<1x1x72x128xbf16>
    %30 = vector.shape_cast %29 : vector<1x1x72x128xbf16> to vector<72x128xbf16>
    %c5 = arith.constant 5 : index
    %c0_38 = arith.constant 0 : index
    %c0_39 = arith.constant 0 : index
    %31 = vector.load %arg2[%c5, %c0_38, %c0_39] : memref<9x128x128xbf16, #tpu.memory_space<vmem>>, vector<1x128x128xbf16>
    %32 = vector.shape_cast %31 : vector<1x128x128xbf16> to vector<128x128xbf16>
    %cst_40 = arith.constant dense<0.000000e+00> : vector<72x128xf32>
    %33 = tpu.matmul %30, %32, %cst_40 {dimension_numbers = #tpu.dot_dimension_numbers<[1], [0], [0], [1], [0, 0, 1, 1], [], []>} : vector<72x128xbf16>, vector<128x128xbf16>, vector<72x128xf32> -> vector<72x128xf32>
    %34 = arith.addf %28, %33 : vector<72x128xf32>
    %c0_41 = arith.constant 0 : index
    %c0_42 = arith.constant 0 : index
    %c9 = arith.constant 9 : index
    %c0_43 = arith.constant 0 : index
    %35 = vector.load %arg1[%c0_41, %c0_42, %c9, %c0_43] : memref<1x4x88x128xbf16, #tpu.memory_space<vmem>>, vector<1x1x72x128xbf16>
    %36 = vector.shape_cast %35 : vector<1x1x72x128xbf16> to vector<72x128xbf16>
    %c6 = arith.constant 6 : index
    %c0_44 = arith.constant 0 : index
    %c0_45 = arith.constant 0 : index
    %37 = vector.load %arg2[%c6, %c0_44, %c0_45] : memref<9x128x128xbf16, #tpu.memory_space<vmem>>, vector<1x128x128xbf16>
    %38 = vector.shape_cast %37 : vector<1x128x128xbf16> to vector<128x128xbf16>
    %cst_46 = arith.constant dense<0.000000e+00> : vector<72x128xf32>
    %39 = tpu.matmul %36, %38, %cst_46 {dimension_numbers = #tpu.dot_dimension_numbers<[1], [0], [0], [1], [0, 0, 1, 1], [], []>} : vector<72x128xbf16>, vector<128x128xbf16>, vector<72x128xf32> -> vector<72x128xf32>
    %40 = arith.addf %34, %39 : vector<72x128xf32>
    %c0_47 = arith.constant 0 : index
    %c1_48 = arith.constant 1 : index
    %c9_49 = arith.constant 9 : index
    %c0_50 = arith.constant 0 : index
    %41 = vector.load %arg1[%c0_47, %c1_48, %c9_49, %c0_50] : memref<1x4x88x128xbf16, #tpu.memory_space<vmem>>, vector<1x1x72x128xbf16>
    %42 = vector.shape_cast %41 : vector<1x1x72x128xbf16> to vector<72x128xbf16>
    %c7 = arith.constant 7 : index
    %c0_51 = arith.constant 0 : index
    %c0_52 = arith.constant 0 : index
    %43 = vector.load %arg2[%c7, %c0_51, %c0_52] : memref<9x128x128xbf16, #tpu.memory_space<vmem>>, vector<1x128x128xbf16>
    %44 = vector.shape_cast %43 : vector<1x128x128xbf16> to vector<128x128xbf16>
    %cst_53 = arith.constant dense<0.000000e+00> : vector<72x128xf32>
    %45 = tpu.matmul %42, %44, %cst_53 {dimension_numbers = #tpu.dot_dimension_numbers<[1], [0], [0], [1], [0, 0, 1, 1], [], []>} : vector<72x128xbf16>, vector<128x128xbf16>, vector<72x128xf32> -> vector<72x128xf32>
    %46 = arith.addf %40, %45 : vector<72x128xf32>
    %c0_54 = arith.constant 0 : index
    %c0_55 = arith.constant 0 : index
    %c10 = arith.constant 10 : index
    %c0_56 = arith.constant 0 : index
    %47 = vector.load %arg1[%c0_54, %c0_55, %c10, %c0_56] : memref<1x4x88x128xbf16, #tpu.memory_space<vmem>>, vector<1x1x72x128xbf16>
    %48 = vector.shape_cast %47 : vector<1x1x72x128xbf16> to vector<72x128xbf16>
    %c8 = arith.constant 8 : index
    %c0_57 = arith.constant 0 : index
    %c0_58 = arith.constant 0 : index
    %49 = vector.load %arg2[%c8, %c0_57, %c0_58] : memref<9x128x128xbf16, #tpu.memory_space<vmem>>, vector<1x128x128xbf16>
    %50 = vector.shape_cast %49 : vector<1x128x128xbf16> to vector<128x128xbf16>
    %cst_59 = arith.constant dense<0.000000e+00> : vector<72x128xf32>
    %51 = tpu.matmul %48, %50, %cst_59 {dimension_numbers = #tpu.dot_dimension_numbers<[1], [0], [0], [1], [0, 0, 1, 1], [], []>} : vector<72x128xbf16>, vector<128x128xbf16>, vector<72x128xf32> -> vector<72x128xf32>
    %52 = arith.addf %46, %51 : vector<72x128xf32>
    %cst_60 = arith.constant 0.000000e+00 : f32
    %53 = vector.broadcast %cst_60 : f32 to vector<72x128xf32>
    %54 = arith.maximumf %52, %53 : vector<72x128xf32>
    %55 = arith.truncf %54 : vector<72x128xf32> to vector<72x128xbf16>
    %c0_61 = arith.constant 0 : index
    %c0_62 = arith.constant 0 : index
    %c0_63 = arith.constant 0 : index
    %56 = vector.load %arg3[%c0_61, %c0_62, %c0_63] : memref<1x72x128xbf16, #tpu.memory_space<vmem>>, vector<1x72x128xbf16>
    %57 = vector.shape_cast %56 : vector<1x72x128xbf16> to vector<72x128xbf16>
    %58 = vector.shape_cast %55 : vector<72x128xbf16> to vector<1x72x128xbf16>
    tpu.vector_store %arg3[%c0_61, %c0_62, %c0_63], %58 {strides = array<i32>} : memref<1x72x128xbf16, #tpu.memory_space<vmem>>, vector<1x72x128xbf16>,
    return
  }
  func.func @transform_0(%arg0: i32) -> (i32, i32, i32, i32) {
    %c0_i32 = arith.constant 0 : i32
    %c0_i32_0 = arith.constant 0 : i32
    %c0_i32_1 = arith.constant 0 : i32
    %c0_i32_2 = arith.constant 0 : i32
    return %arg0, %c0_i32, %c0_i32_0, %c0_i32_1 : i32, i32, i32, i32
  }
  func.func @transform_1(%arg0: i32) -> (i32, i32, i32) {
    %c0_i32 = arith.constant 0 : i32
    %c0_i32_0 = arith.constant 0 : i32
    %c0_i32_1 = arith.constant 0 : i32
    %c0_i32_2 = arith.constant 0 : i32
    return %c0_i32, %c0_i32_0, %c0_i32_1 : i32, i32, i32
  }
  func.func @transform_2(%arg0: i32) -> (i32, i32, i32) {
    %c0_i32 = arith.constant 0 : i32
    %c0_i32_0 = arith.constant 0 : i32
    %c0_i32_1 = arith.constant 0 : i32
    return %arg0, %c0_i32, %c0_i32_0 : i32, i32, i32
  }
}

module attributes {stable_mosaic.version = 11 : i64} {
  func.func @kernel(%arg0: i32, %arg1: memref<1x1x104x128xbf16, #tpu.memory_space<vmem>>, %arg2: memref<9x128x128xbf16, #tpu.memory_space<vmem>>, %arg3: memref<1x80x128xbf16, #tpu.memory_space<vmem>>, %arg4: memref<128x128xbf16, #tpu.memory_space<vmem>>, %arg5: memref<1x80x128xbf16, #tpu.memory_space<vmem>>) attributes {dimension_semantics = [#tpu.dimension_semantics<parallel>], iteration_bounds = array<i64: 2>, scalar_prefetch = 0 : i64, scratch_operands = 0 : i64, tpu.core_type = #tpu.core_type<tc>, window_params = [{transform_indices = @transform_0, window_bounds = array<i64: 1, 1, 104, 128>}, {pipeline_mode = #tpu.pipeline_mode<synchronous>, transform_indices = @transform_1, window_bounds = array<i64: 9, 128, 128>}, {transform_indices = @transform_2, window_bounds = array<i64: 1, 80, 128>}, {pipeline_mode = #tpu.pipeline_mode<synchronous>, transform_indices = @transform_3, window_bounds = array<i64: 128, 128>}, {transform_indices = @transform_4, window_bounds = array<i64: 1, 80, 128>}]} {
    %c0 = arith.constant 0 : index
    %c0_0 = arith.constant 0 : index
    %c0_1 = arith.constant 0 : index
    %c0_2 = arith.constant 0 : index
    %0 = vector.load %arg1[%c0, %c0_0, %c0_1, %c0_2] : memref<1x1x104x128xbf16, #tpu.memory_space<vmem>>, vector<1x1x80x128xbf16>
    %1 = vector.shape_cast %0 : vector<1x1x80x128xbf16> to vector<80x128xbf16>
    %c0_3 = arith.constant 0 : index
    %c0_4 = arith.constant 0 : index
    %c0_5 = arith.constant 0 : index
    %2 = vector.load %arg2[%c0_3, %c0_4, %c0_5] : memref<9x128x128xbf16, #tpu.memory_space<vmem>>, vector<1x128x128xbf16>
    %3 = vector.shape_cast %2 : vector<1x128x128xbf16> to vector<128x128xbf16>
    %cst = arith.constant dense<0.000000e+00> : vector<80x128xf32>
    %4 = tpu.matmul %1, %3, %cst {dimension_numbers = #tpu.dot_dimension_numbers<[1], [0], [0], [1], [0, 0, 1, 1], [], []>} : vector<80x128xbf16>, vector<128x128xbf16>, vector<80x128xf32> -> vector<80x128xf32>
    %c0_6 = arith.constant 0 : index
    %c0_7 = arith.constant 0 : index
    %c1 = arith.constant 1 : index
    %c0_8 = arith.constant 0 : index
    %5 = vector.load %arg1[%c0_6, %c0_7, %c1, %c0_8] : memref<1x1x104x128xbf16, #tpu.memory_space<vmem>>, vector<1x1x80x128xbf16>
    %6 = vector.shape_cast %5 : vector<1x1x80x128xbf16> to vector<80x128xbf16>
    %c1_9 = arith.constant 1 : index
    %c0_10 = arith.constant 0 : index
    %c0_11 = arith.constant 0 : index
    %7 = vector.load %arg2[%c1_9, %c0_10, %c0_11] : memref<9x128x128xbf16, #tpu.memory_space<vmem>>, vector<1x128x128xbf16>
    %8 = vector.shape_cast %7 : vector<1x128x128xbf16> to vector<128x128xbf16>
    %cst_12 = arith.constant dense<0.000000e+00> : vector<80x128xf32>
    %9 = tpu.matmul %6, %8, %cst_12 {dimension_numbers = #tpu.dot_dimension_numbers<[1], [0], [0], [1], [0, 0, 1, 1], [], []>} : vector<80x128xbf16>, vector<128x128xbf16>, vector<80x128xf32> -> vector<80x128xf32>
    %10 = arith.addf %4, %9 : vector<80x128xf32>
    %c0_13 = arith.constant 0 : index
    %c0_14 = arith.constant 0 : index
    %c2 = arith.constant 2 : index
    %c0_15 = arith.constant 0 : index
    %11 = vector.load %arg1[%c0_13, %c0_14, %c2, %c0_15] : memref<1x1x104x128xbf16, #tpu.memory_space<vmem>>, vector<1x1x80x128xbf16>
    %12 = vector.shape_cast %11 : vector<1x1x80x128xbf16> to vector<80x128xbf16>
    %c2_16 = arith.constant 2 : index
    %c0_17 = arith.constant 0 : index
    %c0_18 = arith.constant 0 : index
    %13 = vector.load %arg2[%c2_16, %c0_17, %c0_18] : memref<9x128x128xbf16, #tpu.memory_space<vmem>>, vector<1x128x128xbf16>
    %14 = vector.shape_cast %13 : vector<1x128x128xbf16> to vector<128x128xbf16>
    %cst_19 = arith.constant dense<0.000000e+00> : vector<80x128xf32>
    %15 = tpu.matmul %12, %14, %cst_19 {dimension_numbers = #tpu.dot_dimension_numbers<[1], [0], [0], [1], [0, 0, 1, 1], [], []>} : vector<80x128xbf16>, vector<128x128xbf16>, vector<80x128xf32> -> vector<80x128xf32>
    %16 = arith.addf %10, %15 : vector<80x128xf32>
    %c0_20 = arith.constant 0 : index
    %c0_21 = arith.constant 0 : index
    %c10 = arith.constant 10 : index
    %c0_22 = arith.constant 0 : index
    %17 = vector.load %arg1[%c0_20, %c0_21, %c10, %c0_22] : memref<1x1x104x128xbf16, #tpu.memory_space<vmem>>, vector<1x1x80x128xbf16>
    %18 = vector.shape_cast %17 : vector<1x1x80x128xbf16> to vector<80x128xbf16>
    %c3 = arith.constant 3 : index
    %c0_23 = arith.constant 0 : index
    %c0_24 = arith.constant 0 : index
    %19 = vector.load %arg2[%c3, %c0_23, %c0_24] : memref<9x128x128xbf16, #tpu.memory_space<vmem>>, vector<1x128x128xbf16>
    %20 = vector.shape_cast %19 : vector<1x128x128xbf16> to vector<128x128xbf16>
    %cst_25 = arith.constant dense<0.000000e+00> : vector<80x128xf32>
    %21 = tpu.matmul %18, %20, %cst_25 {dimension_numbers = #tpu.dot_dimension_numbers<[1], [0], [0], [1], [0, 0, 1, 1], [], []>} : vector<80x128xbf16>, vector<128x128xbf16>, vector<80x128xf32> -> vector<80x128xf32>
    %22 = arith.addf %16, %21 : vector<80x128xf32>
    %c0_26 = arith.constant 0 : index
    %c0_27 = arith.constant 0 : index
    %c11 = arith.constant 11 : index
    %c0_28 = arith.constant 0 : index
    %23 = vector.load %arg1[%c0_26, %c0_27, %c11, %c0_28] : memref<1x1x104x128xbf16, #tpu.memory_space<vmem>>, vector<1x1x80x128xbf16>
    %24 = vector.shape_cast %23 : vector<1x1x80x128xbf16> to vector<80x128xbf16>
    %c4 = arith.constant 4 : index
    %c0_29 = arith.constant 0 : index
    %c0_30 = arith.constant 0 : index
    %25 = vector.load %arg2[%c4, %c0_29, %c0_30] : memref<9x128x128xbf16, #tpu.memory_space<vmem>>, vector<1x128x128xbf16>
    %26 = vector.shape_cast %25 : vector<1x128x128xbf16> to vector<128x128xbf16>
    %cst_31 = arith.constant dense<0.000000e+00> : vector<80x128xf32>
    %27 = tpu.matmul %24, %26, %cst_31 {dimension_numbers = #tpu.dot_dimension_numbers<[1], [0], [0], [1], [0, 0, 1, 1], [], []>} : vector<80x128xbf16>, vector<128x128xbf16>, vector<80x128xf32> -> vector<80x128xf32>
    %28 = arith.addf %22, %27 : vector<80x128xf32>
    %c0_32 = arith.constant 0 : index
    %c0_33 = arith.constant 0 : index
    %c12 = arith.constant 12 : index
    %c0_34 = arith.constant 0 : index
    %29 = vector.load %arg1[%c0_32, %c0_33, %c12, %c0_34] : memref<1x1x104x128xbf16, #tpu.memory_space<vmem>>, vector<1x1x80x128xbf16>
    %30 = vector.shape_cast %29 : vector<1x1x80x128xbf16> to vector<80x128xbf16>
    %c5 = arith.constant 5 : index
    %c0_35 = arith.constant 0 : index
    %c0_36 = arith.constant 0 : index
    %31 = vector.load %arg2[%c5, %c0_35, %c0_36] : memref<9x128x128xbf16, #tpu.memory_space<vmem>>, vector<1x128x128xbf16>
    %32 = vector.shape_cast %31 : vector<1x128x128xbf16> to vector<128x128xbf16>
    %cst_37 = arith.constant dense<0.000000e+00> : vector<80x128xf32>
    %33 = tpu.matmul %30, %32, %cst_37 {dimension_numbers = #tpu.dot_dimension_numbers<[1], [0], [0], [1], [0, 0, 1, 1], [], []>} : vector<80x128xbf16>, vector<128x128xbf16>, vector<80x128xf32> -> vector<80x128xf32>
    %34 = arith.addf %28, %33 : vector<80x128xf32>
    %c0_38 = arith.constant 0 : index
    %c0_39 = arith.constant 0 : index
    %c20 = arith.constant 20 : index
    %c0_40 = arith.constant 0 : index
    %35 = vector.load %arg1[%c0_38, %c0_39, %c20, %c0_40] : memref<1x1x104x128xbf16, #tpu.memory_space<vmem>>, vector<1x1x80x128xbf16>
    %36 = vector.shape_cast %35 : vector<1x1x80x128xbf16> to vector<80x128xbf16>
    %c6 = arith.constant 6 : index
    %c0_41 = arith.constant 0 : index
    %c0_42 = arith.constant 0 : index
    %37 = vector.load %arg2[%c6, %c0_41, %c0_42] : memref<9x128x128xbf16, #tpu.memory_space<vmem>>, vector<1x128x128xbf16>
    %38 = vector.shape_cast %37 : vector<1x128x128xbf16> to vector<128x128xbf16>
    %cst_43 = arith.constant dense<0.000000e+00> : vector<80x128xf32>
    %39 = tpu.matmul %36, %38, %cst_43 {dimension_numbers = #tpu.dot_dimension_numbers<[1], [0], [0], [1], [0, 0, 1, 1], [], []>} : vector<80x128xbf16>, vector<128x128xbf16>, vector<80x128xf32> -> vector<80x128xf32>
    %40 = arith.addf %34, %39 : vector<80x128xf32>
    %c0_44 = arith.constant 0 : index
    %c0_45 = arith.constant 0 : index
    %c21 = arith.constant 21 : index
    %c0_46 = arith.constant 0 : index
    %41 = vector.load %arg1[%c0_44, %c0_45, %c21, %c0_46] : memref<1x1x104x128xbf16, #tpu.memory_space<vmem>>, vector<1x1x80x128xbf16>
    %42 = vector.shape_cast %41 : vector<1x1x80x128xbf16> to vector<80x128xbf16>
    %c7 = arith.constant 7 : index
    %c0_47 = arith.constant 0 : index
    %c0_48 = arith.constant 0 : index
    %43 = vector.load %arg2[%c7, %c0_47, %c0_48] : memref<9x128x128xbf16, #tpu.memory_space<vmem>>, vector<1x128x128xbf16>
    %44 = vector.shape_cast %43 : vector<1x128x128xbf16> to vector<128x128xbf16>
    %cst_49 = arith.constant dense<0.000000e+00> : vector<80x128xf32>
    %45 = tpu.matmul %42, %44, %cst_49 {dimension_numbers = #tpu.dot_dimension_numbers<[1], [0], [0], [1], [0, 0, 1, 1], [], []>} : vector<80x128xbf16>, vector<128x128xbf16>, vector<80x128xf32> -> vector<80x128xf32>
    %46 = arith.addf %40, %45 : vector<80x128xf32>
    %c0_50 = arith.constant 0 : index
    %c0_51 = arith.constant 0 : index
    %c22 = arith.constant 22 : index
    %c0_52 = arith.constant 0 : index
    %47 = vector.load %arg1[%c0_50, %c0_51, %c22, %c0_52] : memref<1x1x104x128xbf16, #tpu.memory_space<vmem>>, vector<1x1x80x128xbf16>
    %48 = vector.shape_cast %47 : vector<1x1x80x128xbf16> to vector<80x128xbf16>
    %c8 = arith.constant 8 : index
    %c0_53 = arith.constant 0 : index
    %c0_54 = arith.constant 0 : index
    %49 = vector.load %arg2[%c8, %c0_53, %c0_54] : memref<9x128x128xbf16, #tpu.memory_space<vmem>>, vector<1x128x128xbf16>
    %50 = vector.shape_cast %49 : vector<1x128x128xbf16> to vector<128x128xbf16>
    %cst_55 = arith.constant dense<0.000000e+00> : vector<80x128xf32>
    %51 = tpu.matmul %48, %50, %cst_55 {dimension_numbers = #tpu.dot_dimension_numbers<[1], [0], [0], [1], [0, 0, 1, 1], [], []>} : vector<80x128xbf16>, vector<128x128xbf16>, vector<80x128xf32> -> vector<80x128xf32>
    %52 = arith.addf %46, %51 : vector<80x128xf32>
    %c0_56 = arith.constant 0 : index
    %c0_57 = arith.constant 0 : index
    %c0_58 = arith.constant 0 : index
    %53 = vector.load %arg3[%c0_56, %c0_57, %c0_58] : memref<1x80x128xbf16, #tpu.memory_space<vmem>>, vector<1x80x128xbf16>
    %54 = vector.shape_cast %53 : vector<1x80x128xbf16> to vector<80x128xbf16>
    %c0_59 = arith.constant 0 : index
    %c0_60 = arith.constant 0 : index
    %55 = vector.load %arg4[%c0_59, %c0_60] : memref<128x128xbf16, #tpu.memory_space<vmem>>, vector<128x128xbf16>
    %cst_61 = arith.constant dense<0.000000e+00> : vector<80x128xf32>
    %56 = tpu.matmul %54, %55, %cst_61 {dimension_numbers = #tpu.dot_dimension_numbers<[1], [0], [0], [1], [0, 0, 1, 1], [], []>} : vector<80x128xbf16>, vector<128x128xbf16>, vector<80x128xf32> -> vector<80x128xf32>
    %57 = arith.addf %52, %56 : vector<80x128xf32>
    %cst_62 = arith.constant 0.000000e+00 : f32
    %58 = vector.broadcast %cst_62 : f32 to vector<80x128xf32>
    %59 = arith.maximumf %57, %58 : vector<80x128xf32>
    %60 = arith.truncf %59 : vector<80x128xf32> to vector<80x128xbf16>
    %c0_63 = arith.constant 0 : index
    %c0_64 = arith.constant 0 : index
    %c0_65 = arith.constant 0 : index
    %61 = vector.load %arg5[%c0_63, %c0_64, %c0_65] : memref<1x80x128xbf16, #tpu.memory_space<vmem>>, vector<1x80x128xbf16>
    %62 = vector.shape_cast %61 : vector<1x80x128xbf16> to vector<80x128xbf16>
    %63 = vector.shape_cast %60 : vector<80x128xbf16> to vector<1x80x128xbf16>
    tpu.vector_store %arg5[%c0_63, %c0_64, %c0_65], %63 {strides = array<i32>} : memref<1x80x128xbf16, #tpu.memory_space<vmem>>, vector<1x80x128xbf16>,
    return
  }
  func.func @transform_0(%arg0: i32) -> (i32, i32, i32, i32) {
    %c0_i32 = arith.constant 0 : i32
    %c0_i32_0 = arith.constant 0 : i32
    %c0_i32_1 = arith.constant 0 : i32
    %c0_i32_2 = arith.constant 0 : i32
    return %arg0, %c0_i32, %c0_i32_0, %c0_i32_1 : i32, i32, i32, i32
  }
  func.func @transform_1(%arg0: i32) -> (i32, i32, i32) {
    %c0_i32 = arith.constant 0 : i32
    %c0_i32_0 = arith.constant 0 : i32
    %c0_i32_1 = arith.constant 0 : i32
    %c0_i32_2 = arith.constant 0 : i32
    return %c0_i32, %c0_i32_0, %c0_i32_1 : i32, i32, i32
  }
  func.func @transform_2(%arg0: i32) -> (i32, i32, i32) {
    %c0_i32 = arith.constant 0 : i32
    %c0_i32_0 = arith.constant 0 : i32
    %c0_i32_1 = arith.constant 0 : i32
    return %arg0, %c0_i32, %c0_i32_0 : i32, i32, i32
  }
  func.func @transform_3(%arg0: i32) -> (i32, i32) {
    %c0_i32 = arith.constant 0 : i32
    %c0_i32_0 = arith.constant 0 : i32
    %c0_i32_1 = arith.constant 0 : i32
    return %c0_i32, %c0_i32_0 : i32, i32
  }
  func.func @transform_4(%arg0: i32) -> (i32, i32, i32) {
    %c0_i32 = arith.constant 0 : i32
    %c0_i32_0 = arith.constant 0 : i32
    %c0_i32_1 = arith.constant 0 : i32
    return %arg0, %c0_i32, %c0_i32_0 : i32, i32, i32
  }
}

</mosaic_0001>

<llo_original>
// kernel: basic_block_forward.2
$region0: #{basic_block_forward.2}
  #allocation0 [shape = 'u32[]', space=smem, size = 0x4, offset = 0x4, fixed_abs, tag = 'smem constant byte address 0x4 - core index']
  #allocation1 [shape = 'u32[72,128]{1,0:T(1,128)}', space=vmem, size = 0x9000, scoped, tag = 'internal scratch']
  %s0 = inlined_call_operand.vmem [shape: bf16[2,4,88,128], index: 0, kind: input, shape index: {}]
  %s1 = inlined_call_operand.vmem [shape: bf16[9,128,128], index: 1, kind: input, shape index: {}]
  %s2 = inlined_call_operand.vmem [shape: bf16[2,72,128], index: 2, kind: output, shape index: {}]
  %s3 = sld [smem:[#allocation0]]
  $region41: #{basic_block_forward.2} parent=0
    _
  %s5 = ssub.s32 1, %s3
  %s6 = scalar_select 0, %s5, %s3
  loop: start=0, step=1, limit=4
  $region2: #{basic_block_forward.2} parent=0 // loop_pre_header
    _
  $region3: #{basic_block_forward.2} parent=0 // loop_header
    %s8 = sphi 0, %s12
    %p9 = scmp.ge.s32.totalorder %s8, 4
    %s18 = sphi 0, %s20
    %s21 = sphi 0, %s18
    %s22 = sphi 0, %s21
    %s38 = sphi 0, %s22
    %s42 = sphi 0, %s42
    %s44 = sphi 0, %s42
    %s45 = sphi 0, %s44
    %s59 = sphi 0, %s45
    %s65 = sphi 0, %s67
    %s68 = sphi 0, %s65
    %s69 = sphi 0, %s68
    %s85 = sphi 0, %s69
  $region4: #{basic_block_forward.2} parent=0 // loop_header_branch
    %11 = sbr.rel (%p9) target = $region8
  $region5: #{basic_block_forward.2} parent=0 // loop_body
    %s13 = ssub.s32 %s8, 1
    %s14 = ssub.s32 %s8, 2
    %s15 = sadd.s32 %s8, 1
    %s16 = ssub.s32 %s8, %s15
    %p17 = scmp.eq.s32.totalorder %s16, 0
    %s19 = sadd.s32 %s18, 1
    %s20 = scalar_select %p17, %s18, %s19
    %p23 = pneg %p17
    %p24 = scmp.eq.s32.totalorder %s8, 1
    %p25 = por %p23, %p24
    %p26 = scmp.ne.s32.totalorder %s18, %s21
    %p27 = scmp.eq.s32.totalorder %s8, 0
    %p28 = por %p26, %p27
    %p29 = scmp.ne.s32.totalorder %s18, %s21
    %p30 = scmp.eq.s32.totalorder %s13, 1
    %p31 = por %p29, %p30
    %p32 = scmp.ne.s32.totalorder %s21, %s22
    %p33 = scmp.eq.s32.totalorder %s13, 0
    %p34 = por %p32, %p33
    %p35 = scmp.ne.s32.totalorder %s21, %s22
    %p36 = scmp.eq.s32.totalorder %s14, 1
    %p37 = por %p35, %p36
    %p39 = scmp.ne.s32.totalorder %s22, %s38
    %p40 = scmp.eq.s32.totalorder %s14, 0
    %p41 = por %p39, %p40
    %s43 = sadd.s32 %s42, 1
    %p46 = scmp.eq.s32.totalorder %s8, 1
    %p47 = scmp.ne.s32.totalorder %s42, %s44
    %p48 = scmp.eq.s32.totalorder %s8, 0
    %p49 = por %p47, %p48
    %p50 = scmp.ne.s32.totalorder %s42, %s44
    %p51 = scmp.eq.s32.totalorder %s13, 1
    %p52 = por %p50, %p51
    %p53 = scmp.ne.s32.totalorder %s44, %s45
    %p54 = scmp.eq.s32.totalorder %s13, 0
    %p55 = por %p53, %p54
    %p56 = scmp.ne.s32.totalorder %s44, %s45
    %p57 = scmp.eq.s32.totalorder %s14, 1
    %p58 = por %p56, %p57
    %p60 = scmp.ne.s32.totalorder %s45, %s59
    %p61 = scmp.eq.s32.totalorder %s14, 0
    %p62 = por %p60, %p61
    %s63 = ssub.s32 %s8, %s15
    %p64 = scmp.eq.s32.totalorder %s63, 0
    %s66 = sadd.s32 %s65, 1
    %s67 = scalar_select %p64, %s65, %s66
    %p70 = pneg %p64
    %p71 = scmp.eq.s32.totalorder %s8, 1
    %p72 = por %p70, %p71
    %p73 = scmp.ne.s32.totalorder %s65, %s68
    %p74 = scmp.eq.s32.totalorder %s8, 0
    %p75 = por %p73, %p74
    %p76 = scmp.ne.s32.totalorder %s65, %s68
    %p77 = scmp.eq.s32.totalorder %s13, 1
    %p78 = por %p76, %p77
    %p79 = scmp.ne.s32.totalorder %s68, %s69
    %p80 = scmp.eq.s32.totalorder %s13, 0
    %p81 = por %p79, %p80
    %p82 = scmp.ne.s32.totalorder %s68, %s69
    %p83 = scmp.eq.s32.totalorder %s14, 1
    %p84 = por %p82, %p83
    %p86 = scmp.ne.s32.totalorder %s69, %s85
    %p87 = scmp.eq.s32.totalorder %s14, 0
    %p88 = por %p86, %p87
    %p89 = scmp.le.s32.totalorder 1, %s8
    %p90 = scmp.lt.s32.totalorder %s8, 3
    %p91 = pnand %p89, %p90
    %p92 = pneg %p91
    // Predicated region
    $region9: #{basic_block_forward.2} parent=5 // pred_check
      _
    $region10: #{basic_block_forward.2} parent=5 // pred_check_branch
      %94 = sbr.rel (%p91) target = $region12
    $region11: #{basic_block_forward.2} parent=5 // pred_region
      %s95 = ssub.s32 %s8, 1
      // Predicated region
      $region13: #{basic_block_forward.2} parent=11 // pred_check
        %p96 = pneg %p55
      $region14: #{basic_block_forward.2} parent=11 // pred_check_branch
        %98 = sbr.rel (%p96) target = $region16
      $region15: #{basic_block_forward.2} parent=11 // pred_region
        _
      $region16: #{basic_block_forward.2} parent=11 // pred_fallthru
        _
    $region12: #{basic_block_forward.2} parent=5 // pred_fallthru
      _
    %p99 = scmp.lt.s32.totalorder %s8, 2
    // Predicated region
    $region17: #{basic_block_forward.2} parent=5 // pred_check
      %p100 = pneg %p99
    $region18: #{basic_block_forward.2} parent=5 // pred_check_branch
      %102 = sbr.rel (%p100) target = $region20
    $region19: #{basic_block_forward.2} parent=5 // pred_region
      // Predicated region
      $region21: #{basic_block_forward.2} parent=19 // pred_check
        %p103 = pneg %p28
      $region22: #{basic_block_forward.2} parent=19 // pred_check_branch
        %105 = sbr.rel (%p103) target = $region24
      $region23: #{basic_block_forward.2} parent=19 // pred_region
        %p106 = scmp.lt.s32.totalorder %s8, 1
        %s107 = scalar_select %p106, %s8, 1
        %s108 = smul.addr %s107, 44
        %s109 = smul.addr %s108, 4
        %s110 = scalar_lea.vmem %s0, %s109
      $region24: #{basic_block_forward.2} parent=19 // pred_fallthru
        _
    $region20: #{basic_block_forward.2} parent=5 // pred_fallthru
      _
    %p111 = scmp.le.s32.totalorder 1, %s8
    %p112 = scmp.lt.s32.totalorder %s8, 3
    %p113 = pnand %p111, %p112
    %p114 = pneg %p113
    // Predicated region
    $region25: #{basic_block_forward.2} parent=5 // pred_check
      _
    $region26: #{basic_block_forward.2} parent=5 // pred_check_branch
      %116 = sbr.rel (%p113) target = $region28
    $region27: #{basic_block_forward.2} parent=5 // pred_region
      %s117 = ssub.s32 %s8, 1
      %p118 = scmp.lt.s32.totalorder %s13, 1
      %s119 = scalar_select %p118, %s13, 1
      %s120 = smul.addr %s119, 44
      %s121 = smul.addr %s120, 4
      %s122 = scalar_lea.vmem %s0, %s121
      %p123 = pneg %p34
      %p124 = pneg %p31
      %p125 = pneg %p55
      %p126 = pneg %p52
      %p127 = pneg %p81
      %p128 = pneg %p78
      %p129 = scmp.lt.s32.totalorder %s13, 1
      %s130 = scalar_select %p129, %s13, 1
      %s131 = smul.addr %s130, 9
      %s132 = smul.addr %s131, 4
      %s133 = scalar_lea.vmem %s2, %s132
      %p134 = scmp.lt.s32.totalorder %s13, 1
      %s135 = scalar_select %p134, %s13, 1
      %s136 = smul.addr %s135, 44
      %s137 = smul.addr %s136, 4
      %s138 = scalar_lea.vmem %s0, %s137
      %p139 = scmp.lt.s32.totalorder %s13, 1
      %s140 = scalar_select %p139, %s13, 1
      %s141 = smul.addr %s140, 9
      %s142 = smul.addr %s141, 4
      %s143 = scalar_lea.vmem %s2, %s142
      %v144 = vld [vmem:[%s138] sm:$0xf]
      %v145 = vld [vmem:[%s138 + $0x4] sm:$0xf]
      %v146 = vld [vmem:[%s138 + $0x8] sm:$0xf]
      %v147 = vld [vmem:[%s138 + $0xc] sm:$0xf]
      %v148 = vld [vmem:[%s138 + $0x10] sm:$0xf]
      %v149 = vld [vmem:[%s138 + $0x14] sm:$0xf]
      %v150 = vld [vmem:[%s138 + $0x18] sm:$0xf]
      %v151 = vld [vmem:[%s138 + $0x1c] sm:$0xf]
      %v152 = vld [vmem:[%s138 + $0x20] sm:$0xf]
      %v153 = vld [vmem:[%s1] sm:$0xf]
      %v154 = vld [vmem:[%s1 + $0x4] sm:$0xf]
      %v155 = vld [vmem:[%s1 + $0x8] sm:$0xf]
      %v156 = vld [vmem:[%s1 + $0xc] sm:$0xf]
      %v157 = vld [vmem:[%s1 + $0x10] sm:$0xf]
      %v158 = vld [vmem:[%s1 + $0x14] sm:$0xf]
      %v159 = vld [vmem:[%s1 + $0x18] sm:$0xf]
      %v160 = vld [vmem:[%s1 + $0x1c] sm:$0xf]
      %v161 = vld [vmem:[%s1 + $0x20] sm:$0xf]
      %v162 = vld [vmem:[%s1 + $0x24] sm:$0xf]
      %v163 = vld [vmem:[%s1 + $0x28] sm:$0xf]
      %v164 = vld [vmem:[%s1 + $0x2c] sm:$0xf]
      %v165 = vld [vmem:[%s1 + $0x30] sm:$0xf]
      %v166 = vld [vmem:[%s1 + $0x34] sm:$0xf]
      %v167 = vld [vmem:[%s1 + $0x38] sm:$0xf]
      %v168 = vld [vmem:[%s1 + $0x3c] sm:$0xf]
      %s169 = scalar_lea.vmem %s138, 44
      %v170 = vld [vmem:[%s169] sm:$0xf]
      %v171 = vld [vmem:[%s169 + $0x4] sm:$0xf]
      %v172 = vld [vmem:[%s169 + $0x8] sm:$0xf]
      %v173 = vld [vmem:[%s169 + $0xc] sm:$0xf]
      %v174 = vld [vmem:[%s169 + $0x10] sm:$0xf]
      %v175 = vld [vmem:[%s169 + $0x14] sm:$0xf]
      %v176 = vld [vmem:[%s169 + $0x18] sm:$0xf]
      %v177 = vld [vmem:[%s169 + $0x1c] sm:$0xf]
      %v178 = vld [vmem:[%s169 + $0x20] sm:$0xf]
      %s179 = scalar_lea.vmem %s1, 64
      %v180 = vld [vmem:[%s179] sm:$0xf]
      %v181 = vld [vmem:[%s179 + $0x4] sm:$0xf]
      %v182 = vld [vmem:[%s179 + $0x8] sm:$0xf]
      %v183 = vld [vmem:[%s179 + $0xc] sm:$0xf]
      %v184 = vld [vmem:[%s179 + $0x10] sm:$0xf]
      %v185 = vld [vmem:[%s179 + $0x14] sm:$0xf]
      %v186 = vld [vmem:[%s179 + $0x18] sm:$0xf]
      %v187 = vld [vmem:[%s179 + $0x1c] sm:$0xf]
      %v188 = vld [vmem:[%s179 + $0x20] sm:$0xf]
      %v189 = vld [vmem:[%s179 + $0x24] sm:$0xf]
      %v190 = vld [vmem:[%s179 + $0x28] sm:$0xf]
      %v191 = vld [vmem:[%s179 + $0x2c] sm:$0xf]
      %v192 = vld [vmem:[%s179 + $0x30] sm:$0xf]
      %v193 = vld [vmem:[%s179 + $0x34] sm:$0xf]
      %v194 = vld [vmem:[%s179 + $0x38] sm:$0xf]
      %v195 = vld [vmem:[%s179 + $0x3c] sm:$0xf]
      %v205 = vunpack.c.l.b16 %v170
      %v206 = vunpack.c.l.b16 %v171
      %v207 = vunpack.c.l.b16 %v172
      %v208 = vunpack.c.l.b16 %v173
      %v209 = vunpack.c.l.b16 %v174
      %v210 = vunpack.c.l.b16 %v175
      %v211 = vunpack.c.l.b16 %v176
      %v212 = vunpack.c.l.b16 %v177
      %v213 = vunpack.c.l.b16 %v178
      %v214 = vpack.c.b16 %v206, %v205
      %v215 = vpack.c.b16 %v208, %v207
      %v216 = vpack.c.b16 %v210, %v209
      %v217 = vpack.c.b16 %v212, %v211
      %v218 = vpack.c.b16 %v213, %v213
      %v240 = vunpack.c.l.b16 %v180
      %v241 = vunpack.c.l.b16 %v181
      %v242 = vunpack.c.l.b16 %v182
      %v243 = vunpack.c.l.b16 %v183
      %v244 = vunpack.c.l.b16 %v184
      %v245 = vunpack.c.l.b16 %v185
      %v246 = vunpack.c.l.b16 %v186
      %v247 = vunpack.c.l.b16 %v187
      %v248 = vunpack.c.l.b16 %v188
      %v249 = vunpack.c.l.b16 %v189
      %v250 = vunpack.c.l.b16 %v190
      %v251 = vunpack.c.l.b16 %v191
      %v252 = vunpack.c.l.b16 %v192
      %v253 = vunpack.c.l.b16 %v193
      %v254 = vunpack.c.l.b16 %v194
      %v255 = vunpack.c.l.b16 %v195
      %v256 = vpack.c.b16 %v241, %v240
      %v257 = vpack.c.b16 %v243, %v242
      %v258 = vpack.c.b16 %v245, %v244
      %v259 = vpack.c.b16 %v247, %v246
      %v260 = vpack.c.b16 %v249, %v248
      %v261 = vpack.c.b16 %v251, %v250
      %v262 = vpack.c.b16 %v253, %v252
      %v263 = vpack.c.b16 %v255, %v254
      %272 = vmatpush.bf16.msra.mxu0 %v263
      %273 = vmatpush.bf16.msra.mxu0 %v262
      %274 = vmatpush.bf16.msra.mxu0 %v261
      %275 = vmatpush.bf16.msra.mxu0 %v260
      %276 = vmatpush.bf16.msra.mxu0 %v259
      %277 = vmatpush.bf16.msra.mxu0 %v258
      %278 = vmatpush.bf16.msra.mxu0 %v257
      %279 = vmatpush.bf16.msra.mxu0 %v256
      %280 = vmatmul.bf16.gmra.mxu0 %v214
      %v281 = vpop.f32.mrf.mxu0
      %v282 = vadd.f32 0.0, %v281
      %v283 = vpop.f32.mrf.mxu0
      %v284 = vadd.f32 0.0, %v283
      %285 = vmatmul.bf16.gmra.mxu0 %v215
      %v286 = vpop.f32.mrf.mxu0
      %v287 = vadd.f32 0.0, %v286
      %v288 = vpop.f32.mrf.mxu0
      %v289 = vadd.f32 0.0, %v288
      %290 = vmatmul.bf16.gmra.mxu0 %v216
      %v291 = vpop.f32.mrf.mxu0
      %v292 = vadd.f32 0.0, %v291
      %v293 = vpop.f32.mrf.mxu0
      %v294 = vadd.f32 0.0, %v293
      %295 = vmatmul.bf16.gmra.mxu0 %v217
      %v296 = vpop.f32.mrf.mxu0
      %v297 = vadd.f32 0.0, %v296
      %v298 = vpop.f32.mrf.mxu0
      %v299 = vadd.f32 0.0, %v298
      %300 = vmatmul.bf16.gmra.mxu0 %v218
      %v301 = vpop.f32.mrf.mxu0
      %v302 = vadd.f32 0.0, %v301
      %v303 = vpop.f32.mrf.mxu0
      %304 = vdwg.mxu0
      %v314 = vunpack.c.l.b16 %v144
      %v315 = vunpack.c.l.b16 %v145
      %v316 = vunpack.c.l.b16 %v146
      %v317 = vunpack.c.l.b16 %v147
      %v318 = vunpack.c.l.b16 %v148
      %v319 = vunpack.c.l.b16 %v149
      %v320 = vunpack.c.l.b16 %v150
      %v321 = vunpack.c.l.b16 %v151
      %v322 = vunpack.c.l.b16 %v152
      %v323 = vpack.c.b16 %v315, %v314
      %v324 = vpack.c.b16 %v317, %v316
      %v325 = vpack.c.b16 %v319, %v318
      %v326 = vpack.c.b16 %v321, %v320
      %v327 = vpack.c.b16 %v322, %v322
      %v349 = vunpack.c.l.b16 %v153
      %v350 = vunpack.c.l.b16 %v154
      %v351 = vunpack.c.l.b16 %v155
      %v352 = vunpack.c.l.b16 %v156
      %v353 = vunpack.c.l.b16 %v157
      %v354 = vunpack.c.l.b16 %v158
      %v355 = vunpack.c.l.b16 %v159
      %v356 = vunpack.c.l.b16 %v160
      %v357 = vunpack.c.l.b16 %v161
      %v358 = vunpack.c.l.b16 %v162
      %v359 = vunpack.c.l.b16 %v163
      %v360 = vunpack.c.l.b16 %v164
      %v361 = vunpack.c.l.b16 %v165
      %v362 = vunpack.c.l.b16 %v166
      %v363 = vunpack.c.l.b16 %v167
      %v364 = vunpack.c.l.b16 %v168
      %v365 = vpack.c.b16 %v350, %v349
      %v366 = vpack.c.b16 %v352, %v351
      %v367 = vpack.c.b16 %v354, %v353
      %v368 = vpack.c.b16 %v356, %v355
      %v369 = vpack.c.b16 %v358, %v357
      %v370 = vpack.c.b16 %v360, %v359
      %v371 = vpack.c.b16 %v362, %v361
      %v372 = vpack.c.b16 %v364, %v363
      %381 = vmatpush.bf16.msra.mxu0 %v372
      %382 = vmatpush.bf16.msra.mxu0 %v371
      %383 = vmatpush.bf16.msra.mxu0 %v370
      %384 = vmatpush.bf16.msra.mxu0 %v369
      %385 = vmatpush.bf16.msra.mxu0 %v368
      %386 = vmatpush.bf16.msra.mxu0 %v367
      %387 = vmatpush.bf16.msra.mxu0 %v366
      %388 = vmatpush.bf16.msra.mxu0 %v365
      %389 = vmatmul.bf16.gmra.mxu0 %v323
      %v390 = vpop.f32.mrf.mxu0
      %v391 = vadd.f32 %v282, %v390
      %v392 = vpop.f32.mrf.mxu0
      %v393 = vadd.f32 %v284, %v392
      %394 = vmatmul.bf16.gmra.mxu0 %v324
      %v395 = vpop.f32.mrf.mxu0
      %v396 = vadd.f32 %v287, %v395
      %v397 = vpop.f32.mrf.mxu0
      %v398 = vadd.f32 %v289, %v397
      %399 = vmatmul.bf16.gmra.mxu0 %v325
      %v400 = vpop.f32.mrf.mxu0
      %v401 = vadd.f32 %v292, %v400
      %v402 = vpop.f32.mrf.mxu0
      %v403 = vadd.f32 %v294, %v402
      %404 = vmatmul.bf16.gmra.mxu0 %v326
      %v405 = vpop.f32.mrf.mxu0
      %v406 = vadd.f32 %v297, %v405
      %v407 = vpop.f32.mrf.mxu0
      %v408 = vadd.f32 %v299, %v407
      %409 = vmatmul.bf16.gmra.mxu0 %v327
      %v410 = vpop.f32.mrf.mxu0
      %v411 = vadd.f32 %v302, %v410
      %v412 = vpop.f32.mrf.mxu0
      %413 = vdwg.mxu0
      %v414 = vld [vmem:[%s138] sm:$0xf]
      %v415 = vld [vmem:[%s138 + $0x4] sm:$0xf]
      %v416 = vld [vmem:[%s138 + $0x8] sm:$0xf]
      %v417 = vld [vmem:[%s138 + $0xc] sm:$0xf]
      %v418 = vld [vmem:[%s138 + $0x10] sm:$0xf]
      %v419 = vld [vmem:[%s138 + $0x14] sm:$0xf]
      %v420 = vld [vmem:[%s138 + $0x18] sm:$0xf]
      %v421 = vld [vmem:[%s138 + $0x1c] sm:$0xf]
      %v422 = vld [vmem:[%s138 + $0x20] sm:$0xf]
      %v423 = vld [vmem:[%s138 + $0x24] sm:$0x1]
      %s424 = scalar_lea.vmem %s1, 128
      %v425 = vld [vmem:[%s424] sm:$0xf]
      %v426 = vld [vmem:[%s424 + $0x4] sm:$0xf]
      %v427 = vld [vmem:[%s424 + $0x8] sm:$0xf]
      %v428 = vld [vmem:[%s424 + $0xc] sm:$0xf]
      %v429 = vld [vmem:[%s424 + $0x10] sm:$0xf]
      %v430 = vld [vmem:[%s424 + $0x14] sm:$0xf]
      %v431 = vld [vmem:[%s424 + $0x18] sm:$0xf]
      %v432 = vld [vmem:[%s424 + $0x1c] sm:$0xf]
      %v433 = vld [vmem:[%s424 + $0x20] sm:$0xf]
      %v434 = vld [vmem:[%s424 + $0x24] sm:$0xf]
      %v435 = vld [vmem:[%s424 + $0x28] sm:$0xf]
      %v436 = vld [vmem:[%s424 + $0x2c] sm:$0xf]
      %v437 = vld [vmem:[%s424 + $0x30] sm:$0xf]
      %v438 = vld [vmem:[%s424 + $0x34] sm:$0xf]
      %v439 = vld [vmem:[%s424 + $0x38] sm:$0xf]
      %v440 = vld [vmem:[%s424 + $0x3c] sm:$0xf]
      %v451 = vunpack.c.l.b16 %v414
      %v452 = vunpack.c.l.b16 %v415
      %v453 = vunpack.c.l.b16 %v416
      %v454 = vunpack.c.l.b16 %v417
      %v455 = vunpack.c.l.b16 %v418
      %v456 = vunpack.c.l.b16 %v419
      %v457 = vunpack.c.l.b16 %v420
      %v458 = vunpack.c.l.b16 %v421
      %v459 = vunpack.c.l.b16 %v422
      %v460 = vunpack.c.l.b16 %v423
      %v461 = vpack.c.b16 %v452, %v451
      %v462 = vpack.c.b16 %v454, %v453
      %v463 = vpack.c.b16 %v456, %v455
      %v464 = vpack.c.b16 %v458, %v457
      %v465 = vpack.c.b16 %v460, %v459
      %vm466 = vsmask.f32 7424
      %v468 = vshrl.u32 %v461, 16
      %v470 = vshll.u32 %v461, 16
      %v472 = vrot.slane %v470, 1
      %v473 = vor.u32 %v468, %v472
      %v475 = vshll.u32 %v462, 16
      %v477 = vrot.slane %v475, 1
      %v478 = vsel %vm466, %v473, %v477
      %v479 = vshrl.u32 %v462, 16
      %v481 = vor.u32 %v479, %v477
      %v483 = vshll.u32 %v463, 16
      %v485 = vrot.slane %v483, 1
      %v486 = vsel %vm466, %v481, %v485
      %v487 = vshrl.u32 %v463, 16
      %v489 = vor.u32 %v487, %v485
      %v491 = vshll.u32 %v464, 16
      %v493 = vrot.slane %v491, 1
      %v494 = vsel %vm466, %v489, %v493
      %v495 = vshrl.u32 %v464, 16
      %v497 = vor.u32 %v495, %v493
      %v499 = vshll.u32 %v465, 16
      %v501 = vrot.slane %v499, 1
      %v502 = vsel %vm466, %v497, %v501
      %v503 = vshrl.u32 %v465, 16
      %v505 = vor.u32 %v503, %v501
      %v527 = vunpack.c.l.b16 %v425
      %v528 = vunpack.c.l.b16 %v426
      %v529 = vunpack.c.l.b16 %v427
      %v530 = vunpack.c.l.b16 %v428
      %v531 = vunpack.c.l.b16 %v429
      %v532 = vunpack.c.l.b16 %v430
      %v533 = vunpack.c.l.b16 %v431
      %v534 = vunpack.c.l.b16 %v432
      %v535 = vunpack.c.l.b16 %v433
      %v536 = vunpack.c.l.b16 %v434
      %v537 = vunpack.c.l.b16 %v435
      %v538 = vunpack.c.l.b16 %v436
      %v539 = vunpack.c.l.b16 %v437
      %v540 = vunpack.c.l.b16 %v438
      %v541 = vunpack.c.l.b16 %v439
      %v542 = vunpack.c.l.b16 %v440
      %v543 = vpack.c.b16 %v528, %v527
      %v544 = vpack.c.b16 %v530, %v529
      %v545 = vpack.c.b16 %v532, %v531
      %v546 = vpack.c.b16 %v534, %v533
      %v547 = vpack.c.b16 %v536, %v535
      %v548 = vpack.c.b16 %v538, %v537
      %v549 = vpack.c.b16 %v540, %v539
      %v550 = vpack.c.b16 %v542, %v541
      %559 = vmatpush.bf16.msra.mxu0 %v550
      %560 = vmatpush.bf16.msra.mxu0 %v549
      %561 = vmatpush.bf16.msra.mxu0 %v548
      %562 = vmatpush.bf16.msra.mxu0 %v547
      %563 = vmatpush.bf16.msra.mxu0 %v546
      %564 = vmatpush.bf16.msra.mxu0 %v545
      %565 = vmatpush.bf16.msra.mxu0 %v544
      %566 = vmatpush.bf16.msra.mxu0 %v543
      %567 = vmatmul.bf16.gmra.mxu0 %v478
      %v568 = vpop.f32.mrf.mxu0
      %v569 = vadd.f32 0.0, %v568
      %v570 = vpop.f32.mrf.mxu0
      %v571 = vadd.f32 0.0, %v570
      %572 = vmatmul.bf16.gmra.mxu0 %v486
      %v573 = vpop.f32.mrf.mxu0
      %v574 = vadd.f32 0.0, %v573
      %v575 = vpop.f32.mrf.mxu0
      %v576 = vadd.f32 0.0, %v575
      %577 = vmatmul.bf16.gmra.mxu0 %v494
      %v578 = vpop.f32.mrf.mxu0
      %v579 = vadd.f32 0.0, %v578
      %v580 = vpop.f32.mrf.mxu0
      %v581 = vadd.f32 0.0, %v580
      %582 = vmatmul.bf16.gmra.mxu0 %v502
      %v583 = vpop.f32.mrf.mxu0
      %v584 = vadd.f32 0.0, %v583
      %v585 = vpop.f32.mrf.mxu0
      %v586 = vadd.f32 0.0, %v585
      %587 = vmatmul.bf16.gmra.mxu0 %v505
      %v588 = vpop.f32.mrf.mxu0
      %v589 = vadd.f32 0.0, %v588
      %v590 = vpop.f32.mrf.mxu0
      %591 = vdwg.mxu0
      %v592 = vadd.f32 %v391, %v569
      %v593 = vadd.f32 %v393, %v571
      %v594 = vadd.f32 %v396, %v574
      %v595 = vadd.f32 %v398, %v576
      %v596 = vadd.f32 %v401, %v579
      %v597 = vadd.f32 %v403, %v581
      %v598 = vadd.f32 %v406, %v584
      %v599 = vadd.f32 %v408, %v586
      %v600 = vadd.f32 %v411, %v589
      %s601 = scalar_lea.vmem %s138, 88
      %v602 = vld [vmem:[%s601] sm:$0xf]
      %v603 = vld [vmem:[%s601 + $0x4] sm:$0xf]
      %v604 = vld [vmem:[%s601 + $0x8] sm:$0xf]
      %v605 = vld [vmem:[%s601 + $0xc] sm:$0xf]
      %v606 = vld [vmem:[%s601 + $0x10] sm:$0xf]
      %v607 = vld [vmem:[%s601 + $0x14] sm:$0xf]
      %v608 = vld [vmem:[%s601 + $0x18] sm:$0xf]
      %v609 = vld [vmem:[%s601 + $0x1c] sm:$0xf]
      %v610 = vld [vmem:[%s601 + $0x20] sm:$0xf]
      %s611 = scalar_lea.vmem %s1, 192
      %v612 = vld [vmem:[%s611] sm:$0xf]
      %v613 = vld [vmem:[%s611 + $0x4] sm:$0xf]
      %v614 = vld [vmem:[%s611 + $0x8] sm:$0xf]
      %v615 = vld [vmem:[%s611 + $0xc] sm:$0xf]
      %v616 = vld [vmem:[%s611 + $0x10] sm:$0xf]
      %v617 = vld [vmem:[%s611 + $0x14] sm:$0xf]
      %v618 = vld [vmem:[%s611 + $0x18] sm:$0xf]
      %v619 = vld [vmem:[%s611 + $0x1c] sm:$0xf]
      %v620 = vld [vmem:[%s611 + $0x20] sm:$0xf]
      %v621 = vld [vmem:[%s611 + $0x24] sm:$0xf]
      %v622 = vld [vmem:[%s611 + $0x28] sm:$0xf]
      %v623 = vld [vmem:[%s611 + $0x2c] sm:$0xf]
      %v624 = vld [vmem:[%s611 + $0x30] sm:$0xf]
      %v625 = vld [vmem:[%s611 + $0x34] sm:$0xf]
      %v626 = vld [vmem:[%s611 + $0x38] sm:$0xf]
      %v627 = vld [vmem:[%s611 + $0x3c] sm:$0xf]
      %v637 = vunpack.c.l.b16 %v602
      %v638 = vunpack.c.l.b16 %v603
      %v639 = vunpack.c.l.b16 %v604
      %v640 = vunpack.c.l.b16 %v605
      %v641 = vunpack.c.l.b16 %v606
      %v642 = vunpack.c.l.b16 %v607
      %v643 = vunpack.c.l.b16 %v608
      %v644 = vunpack.c.l.b16 %v609
      %v645 = vunpack.c.l.b16 %v610
      %v646 = vpack.c.b16 %v638, %v637
      %v647 = vpack.c.b16 %v640, %v639
      %v648 = vpack.c.b16 %v642, %v641
      %v649 = vpack.c.b16 %v644, %v643
      %v650 = vpack.c.b16 %v645, %v645
      %v672 = vunpack.c.l.b16 %v612
      %v673 = vunpack.c.l.b16 %v613
      %v674 = vunpack.c.l.b16 %v614
      %v675 = vunpack.c.l.b16 %v615
      %v676 = vunpack.c.l.b16 %v616
      %v677 = vunpack.c.l.b16 %v617
      %v678 = vunpack.c.l.b16 %v618
      %v679 = vunpack.c.l.b16 %v619
      %v680 = vunpack.c.l.b16 %v620
      %v681 = vunpack.c.l.b16 %v621
      %v682 = vunpack.c.l.b16 %v622
      %v683 = vunpack.c.l.b16 %v623
      %v684 = vunpack.c.l.b16 %v624
      %v685 = vunpack.c.l.b16 %v625
      %v686 = vunpack.c.l.b16 %v626
      %v687 = vunpack.c.l.b16 %v627
      %v688 = vpack.c.b16 %v673, %v672
      %v689 = vpack.c.b16 %v675, %v674
      %v690 = vpack.c.b16 %v677, %v676
      %v691 = vpack.c.b16 %v679, %v678
      %v692 = vpack.c.b16 %v681, %v680
      %v693 = vpack.c.b16 %v683, %v682
      %v694 = vpack.c.b16 %v685, %v684
      %v695 = vpack.c.b16 %v687, %v686
      %704 = vmatpush.bf16.msra.mxu0 %v695
      %705 = vmatpush.bf16.msra.mxu0 %v694
      %706 = vmatpush.bf16.msra.mxu0 %v693
      %707 = vmatpush.bf16.msra.mxu0 %v692
      %708 = vmatpush.bf16.msra.mxu0 %v691
      %709 = vmatpush.bf16.msra.mxu0 %v690
      %710 = vmatpush.bf16.msra.mxu0 %v689
      %711 = vmatpush.bf16.msra.mxu0 %v688
      %712 = vmatmul.bf16.gmra.mxu0 %v646
      %v713 = vpop.f32.mrf.mxu0
      %v714 = vadd.f32 0.0, %v713
      %v715 = vpop.f32.mrf.mxu0
      %v716 = vadd.f32 0.0, %v715
      %717 = vmatmul.bf16.gmra.mxu0 %v647
      %v718 = vpop.f32.mrf.mxu0
      %v719 = vadd.f32 0.0, %v718
      %v720 = vpop.f32.mrf.mxu0
      %v721 = vadd.f32 0.0, %v720
      %722 = vmatmul.bf16.gmra.mxu0 %v648
      %v723 = vpop.f32.mrf.mxu0
      %v724 = vadd.f32 0.0, %v723
      %v725 = vpop.f32.mrf.mxu0
      %v726 = vadd.f32 0.0, %v725
      %727 = vmatmul.bf16.gmra.mxu0 %v649
      %v728 = vpop.f32.mrf.mxu0
      %v729 = vadd.f32 0.0, %v728
      %v730 = vpop.f32.mrf.mxu0
      %v731 = vadd.f32 0.0, %v730
      %732 = vmatmul.bf16.gmra.mxu0 %v650
      %v733 = vpop.f32.mrf.mxu0
      %v734 = vadd.f32 0.0, %v733
      %v735 = vpop.f32.mrf.mxu0
      %736 = vdwg.mxu0
      %v737 = vadd.f32 %v592, %v714
      %v738 = vadd.f32 %v593, %v716
      %v739 = vadd.f32 %v594, %v719
      %v740 = vadd.f32 %v595, %v721
      %v741 = vadd.f32 %v596, %v724
      %v742 = vadd.f32 %v597, %v726
      %v743 = vadd.f32 %v598, %v729
      %v744 = vadd.f32 %v599, %v731
      %v745 = vadd.f32 %v600, %v734
      %s746 = scalar_lea.vmem %s138, 132
      %v747 = vld [vmem:[%s746] sm:$0xf]
      %v748 = vld [vmem:[%s746 + $0x4] sm:$0xf]
      %v749 = vld [vmem:[%s746 + $0x8] sm:$0xf]
      %v750 = vld [vmem:[%s746 + $0xc] sm:$0xf]
      %v751 = vld [vmem:[%s746 + $0x10] sm:$0xf]
      %v752 = vld [vmem:[%s746 + $0x14] sm:$0xf]
      %v753 = vld [vmem:[%s746 + $0x18] sm:$0xf]
      %v754 = vld [vmem:[%s746 + $0x1c] sm:$0xf]
      %v755 = vld [vmem:[%s746 + $0x20] sm:$0xf]
      %s756 = scalar_lea.vmem %s1, 256
      %v757 = vld [vmem:[%s756] sm:$0xf]
      %v758 = vld [vmem:[%s756 + $0x4] sm:$0xf]
      %v759 = vld [vmem:[%s756 + $0x8] sm:$0xf]
      %v760 = vld [vmem:[%s756 + $0xc] sm:$0xf]
      %v761 = vld [vmem:[%s756 + $0x10] sm:$0xf]
      %v762 = vld [vmem:[%s756 + $0x14] sm:$0xf]
      %v763 = vld [vmem:[%s756 + $0x18] sm:$0xf]
      %v764 = vld [vmem:[%s756 + $0x1c] sm:$0xf]
      %v765 = vld [vmem:[%s756 + $0x20] sm:$0xf]
      %v766 = vld [vmem:[%s756 + $0x24] sm:$0xf]
      %v767 = vld [vmem:[%s756 + $0x28] sm:$0xf]
      %v768 = vld [vmem:[%s756 + $0x2c] sm:$0xf]
      %v769 = vld [vmem:[%s756 + $0x30] sm:$0xf]
      %v770 = vld [vmem:[%s756 + $0x34] sm:$0xf]
      %v771 = vld [vmem:[%s756 + $0x38] sm:$0xf]
      %v772 = vld [vmem:[%s756 + $0x3c] sm:$0xf]
      %v782 = vunpack.c.l.b16 %v747
      %v783 = vunpack.c.l.b16 %v748
      %v784 = vunpack.c.l.b16 %v749
      %v785 = vunpack.c.l.b16 %v750
      %v786 = vunpack.c.l.b16 %v751
      %v787 = vunpack.c.l.b16 %v752
      %v788 = vunpack.c.l.b16 %v753
      %v789 = vunpack.c.l.b16 %v754
      %v790 = vunpack.c.l.b16 %v755
      %v791 = vpack.c.b16 %v783, %v782
      %v792 = vpack.c.b16 %v785, %v784
      %v793 = vpack.c.b16 %v787, %v786
      %v794 = vpack.c.b16 %v789, %v788
      %v795 = vpack.c.b16 %v790, %v790
      %v817 = vunpack.c.l.b16 %v757
      %v818 = vunpack.c.l.b16 %v758
      %v819 = vunpack.c.l.b16 %v759
      %v820 = vunpack.c.l.b16 %v760
      %v821 = vunpack.c.l.b16 %v761
      %v822 = vunpack.c.l.b16 %v762
      %v823 = vunpack.c.l.b16 %v763
      %v824 = vunpack.c.l.b16 %v764
      %v825 = vunpack.c.l.b16 %v765
      %v826 = vunpack.c.l.b16 %v766
      %v827 = vunpack.c.l.b16 %v767
      %v828 = vunpack.c.l.b16 %v768
      %v829 = vunpack.c.l.b16 %v769
      %v830 = vunpack.c.l.b16 %v770
      %v831 = vunpack.c.l.b16 %v771
      %v832 = vunpack.c.l.b16 %v772
      %v833 = vpack.c.b16 %v818, %v817
      %v834 = vpack.c.b16 %v820, %v819
      %v835 = vpack.c.b16 %v822, %v821
      %v836 = vpack.c.b16 %v824, %v823
      %v837 = vpack.c.b16 %v826, %v825
      %v838 = vpack.c.b16 %v828, %v827
      %v839 = vpack.c.b16 %v830, %v829
      %v840 = vpack.c.b16 %v832, %v831
      %849 = vmatpush.bf16.msra.mxu0 %v840
      %850 = vmatpush.bf16.msra.mxu0 %v839
      %851 = vmatpush.bf16.msra.mxu0 %v838
      %852 = vmatpush.bf16.msra.mxu0 %v837
      %853 = vmatpush.bf16.msra.mxu0 %v836
      %854 = vmatpush.bf16.msra.mxu0 %v835
      %855 = vmatpush.bf16.msra.mxu0 %v834
      %856 = vmatpush.bf16.msra.mxu0 %v833
      %857 = vmatmul.bf16.gmra.mxu0 %v791
      %v858 = vpop.f32.mrf.mxu0
      %v859 = vadd.f32 0.0, %v858
      %v860 = vpop.f32.mrf.mxu0
      %v861 = vadd.f32 0.0, %v860
      %862 = vmatmul.bf16.gmra.mxu0 %v792
      %v863 = vpop.f32.mrf.mxu0
      %v864 = vadd.f32 0.0, %v863
      %v865 = vpop.f32.mrf.mxu0
      %v866 = vadd.f32 0.0, %v865
      %867 = vmatmul.bf16.gmra.mxu0 %v793
      %v868 = vpop.f32.mrf.mxu0
      %v869 = vadd.f32 0.0, %v868
      %v870 = vpop.f32.mrf.mxu0
      %v871 = vadd.f32 0.0, %v870
      %872 = vmatmul.bf16.gmra.mxu0 %v794
      %v873 = vpop.f32.mrf.mxu0
      %v874 = vadd.f32 0.0, %v873
      %v875 = vpop.f32.mrf.mxu0
      %v876 = vadd.f32 0.0, %v875
      %877 = vmatmul.bf16.gmra.mxu0 %v795
      %v878 = vpop.f32.mrf.mxu0
      %v879 = vadd.f32 0.0, %v878
      %v880 = vpop.f32.mrf.mxu0
      %881 = vdwg.mxu0
      %v882 = vadd.f32 %v737, %v859
      %v883 = vadd.f32 %v738, %v861
      %v884 = vadd.f32 %v739, %v864
      %v885 = vadd.f32 %v740, %v866
      %v886 = vadd.f32 %v741, %v869
      %v887 = vadd.f32 %v742, %v871
      %v888 = vadd.f32 %v743, %v874
      %v889 = vadd.f32 %v744, %v876
      %v890 = vadd.f32 %v745, %v879
      %v891 = vld [vmem:[%s601] sm:$0xf]
      %v892 = vld [vmem:[%s601 + $0x4] sm:$0xf]
      %v893 = vld [vmem:[%s601 + $0x8] sm:$0xf]
      %v894 = vld [vmem:[%s601 + $0xc] sm:$0xf]
      %v895 = vld [vmem:[%s601 + $0x10] sm:$0xf]
      %v896 = vld [vmem:[%s601 + $0x14] sm:$0xf]
      %v897 = vld [vmem:[%s601 + $0x18] sm:$0xf]
      %v898 = vld [vmem:[%s601 + $0x1c] sm:$0xf]
      %v899 = vld [vmem:[%s601 + $0x20] sm:$0xf]
      %v900 = vld [vmem:[%s601 + $0x24] sm:$0x1]
      %s901 = scalar_lea.vmem %s1, 320
      %v902 = vld [vmem:[%s901] sm:$0xf]
      %v903 = vld [vmem:[%s901 + $0x4] sm:$0xf]
      %v904 = vld [vmem:[%s901 + $0x8] sm:$0xf]
      %v905 = vld [vmem:[%s901 + $0xc] sm:$0xf]
      %v906 = vld [vmem:[%s901 + $0x10] sm:$0xf]
      %v907 = vld [vmem:[%s901 + $0x14] sm:$0xf]
      %v908 = vld [vmem:[%s901 + $0x18] sm:$0xf]
      %v909 = vld [vmem:[%s901 + $0x1c] sm:$0xf]
      %v910 = vld [vmem:[%s901 + $0x20] sm:$0xf]
      %v911 = vld [vmem:[%s901 + $0x24] sm:$0xf]
      %v912 = vld [vmem:[%s901 + $0x28] sm:$0xf]
      %v913 = vld [vmem:[%s901 + $0x2c] sm:$0xf]
      %v914 = vld [vmem:[%s901 + $0x30] sm:$0xf]
      %v915 = vld [vmem:[%s901 + $0x34] sm:$0xf]
      %v916 = vld [vmem:[%s901 + $0x38] sm:$0xf]
      %v917 = vld [vmem:[%s901 + $0x3c] sm:$0xf]
      %v928 = vunpack.c.l.b16 %v891
      %v929 = vunpack.c.l.b16 %v892
      %v930 = vunpack.c.l.b16 %v893
      %v931 = vunpack.c.l.b16 %v894
      %v932 = vunpack.c.l.b16 %v895
      %v933 = vunpack.c.l.b16 %v896
      %v934 = vunpack.c.l.b16 %v897
      %v935 = vunpack.c.l.b16 %v898
      %v936 = vunpack.c.l.b16 %v899
      %v937 = vunpack.c.l.b16 %v900
      %v938 = vpack.c.b16 %v929, %v928
      %v939 = vpack.c.b16 %v931, %v930
      %v940 = vpack.c.b16 %v933, %v932
      %v941 = vpack.c.b16 %v935, %v934
      %v942 = vpack.c.b16 %v937, %v936
      %v944 = vshrl.u32 %v938, 16
      %v946 = vshll.u32 %v938, 16
      %v948 = vrot.slane %v946, 1
      %v949 = vor.u32 %v944, %v948
      %v951 = vshll.u32 %v939, 16
      %v953 = vrot.slane %v951, 1
      %v954 = vsel %vm466, %v949, %v953
      %v955 = vshrl.u32 %v939, 16
      %v957 = vor.u32 %v955, %v953
      %v959 = vshll.u32 %v940, 16
      %v961 = vrot.slane %v959, 1
      %v962 = vsel %vm466, %v957, %v961
      %v963 = vshrl.u32 %v940, 16
      %v965 = vor.u32 %v963, %v961
      %v967 = vshll.u32 %v941, 16
      %v969 = vrot.slane %v967, 1
      %v970 = vsel %vm466, %v965, %v969
      %v971 = vshrl.u32 %v941, 16
      %v973 = vor.u32 %v971, %v969
      %v975 = vshll.u32 %v942, 16
      %v977 = vrot.slane %v975, 1
      %v978 = vsel %vm466, %v973, %v977
      %v979 = vshrl.u32 %v942, 16
      %v981 = vor.u32 %v979, %v977
      %v1003 = vunpack.c.l.b16 %v902
      %v1004 = vunpack.c.l.b16 %v903
      %v1005 = vunpack.c.l.b16 %v904
      %v1006 = vunpack.c.l.b16 %v905
      %v1007 = vunpack.c.l.b16 %v906
      %v1008 = vunpack.c.l.b16 %v907
      %v1009 = vunpack.c.l.b16 %v908
      %v1010 = vunpack.c.l.b16 %v909
      %v1011 = vunpack.c.l.b16 %v910
      %v1012 = vunpack.c.l.b16 %v911
      %v1013 = vunpack.c.l.b16 %v912
      %v1014 = vunpack.c.l.b16 %v913
      %v1015 = vunpack.c.l.b16 %v914
      %v1016 = vunpack.c.l.b16 %v915
      %v1017 = vunpack.c.l.b16 %v916
      %v1018 = vunpack.c.l.b16 %v917
      %v1019 = vpack.c.b16 %v1004, %v1003
      %v1020 = vpack.c.b16 %v1006, %v1005
      %v1021 = vpack.c.b16 %v1008, %v1007
      %v1022 = vpack.c.b16 %v1010, %v1009
      %v1023 = vpack.c.b16 %v1012, %v1011
      %v1024 = vpack.c.b16 %v1014, %v1013
      %v1025 = vpack.c.b16 %v1016, %v1015
      %v1026 = vpack.c.b16 %v1018, %v1017
      %1035 = vmatpush.bf16.msra.mxu0 %v1026
      %1036 = vmatpush.bf16.msra.mxu0 %v1025
      %1037 = vmatpush.bf16.msra.mxu0 %v1024
      %1038 = vmatpush.bf16.msra.mxu0 %v1023
      %1039 = vmatpush.bf16.msra.mxu0 %v1022
      %1040 = vmatpush.bf16.msra.mxu0 %v1021
      %1041 = vmatpush.bf16.msra.mxu0 %v1020
      %1042 = vmatpush.bf16.msra.mxu0 %v1019
      %1043 = vmatmul.bf16.gmra.mxu0 %v954
      %v1044 = vpop.f32.mrf.mxu0
      %v1045 = vadd.f32 0.0, %v1044
      %v1046 = vpop.f32.mrf.mxu0
      %v1047 = vadd.f32 0.0, %v1046
      %1048 = vmatmul.bf16.gmra.mxu0 %v962
      %v1049 = vpop.f32.mrf.mxu0
      %v1050 = vadd.f32 0.0, %v1049
      %v1051 = vpop.f32.mrf.mxu0
      %v1052 = vadd.f32 0.0, %v1051
      %1053 = vmatmul.bf16.gmra.mxu0 %v970
      %v1054 = vpop.f32.mrf.mxu0
      %v1055 = vadd.f32 0.0, %v1054
      %v1056 = vpop.f32.mrf.mxu0
      %v1057 = vadd.f32 0.0, %v1056
      %1058 = vmatmul.bf16.gmra.mxu0 %v978
      %v1059 = vpop.f32.mrf.mxu0
      %v1060 = vadd.f32 0.0, %v1059
      %v1061 = vpop.f32.mrf.mxu0
      %v1062 = vadd.f32 0.0, %v1061
      %1063 = vmatmul.bf16.gmra.mxu0 %v981
      %v1064 = vpop.f32.mrf.mxu0
      %v1065 = vadd.f32 0.0, %v1064
      %v1066 = vpop.f32.mrf.mxu0
      %1067 = vdwg.mxu0
      %v1068 = vadd.f32 %v882, %v1045
      %v1069 = vadd.f32 %v883, %v1047
      %v1070 = vadd.f32 %v884, %v1050
      %v1071 = vadd.f32 %v885, %v1052
      %v1072 = vadd.f32 %v886, %v1055
      %v1073 = vadd.f32 %v887, %v1057
      %v1074 = vadd.f32 %v888, %v1060
      %v1075 = vadd.f32 %v889, %v1062
      %v1076 = vadd.f32 %v890, %v1065
      %v1077 = vld [vmem:[%s138 + $0x4] sm:$0xf]
      %v1078 = vld [vmem:[%s138 + $0x8] sm:$0xf]
      %v1079 = vld [vmem:[%s138 + $0xc] sm:$0xf]
      %v1080 = vld [vmem:[%s138 + $0x10] sm:$0xf]
      %v1081 = vld [vmem:[%s138 + $0x14] sm:$0xf]
      %v1082 = vld [vmem:[%s138 + $0x18] sm:$0xf]
      %v1083 = vld [vmem:[%s138 + $0x1c] sm:$0xf]
      %v1084 = vld [vmem:[%s138 + $0x20] sm:$0xf]
      %v1085 = vld [vmem:[%s138 + $0x24] sm:$0xf]
      %v1086 = vld [vmem:[%s138 + $0x28] sm:$0x1]
      %s1087 = scalar_lea.vmem %s1, 384
      %v1088 = vld [vmem:[%s1087] sm:$0xf]
      %v1089 = vld [vmem:[%s1087 + $0x4] sm:$0xf]
      %v1090 = vld [vmem:[%s1087 + $0x8] sm:$0xf]
      %v1091 = vld [vmem:[%s1087 + $0xc] sm:$0xf]
      %v1092 = vld [vmem:[%s1087 + $0x10] sm:$0xf]
      %v1093 = vld [vmem:[%s1087 + $0x14] sm:$0xf]
      %v1094 = vld [vmem:[%s1087 + $0x18] sm:$0xf]
      %v1095 = vld [vmem:[%s1087 + $0x1c] sm:$0xf]
      %v1096 = vld [vmem:[%s1087 + $0x20] sm:$0xf]
      %v1097 = vld [vmem:[%s1087 + $0x24] sm:$0xf]
      %v1098 = vld [vmem:[%s1087 + $0x28] sm:$0xf]
      %v1099 = vld [vmem:[%s1087 + $0x2c] sm:$0xf]
      %v1100 = vld [vmem:[%s1087 + $0x30] sm:$0xf]
      %v1101 = vld [vmem:[%s1087 + $0x34] sm:$0xf]
      %v1102 = vld [vmem:[%s1087 + $0x38] sm:$0xf]
      %v1103 = vld [vmem:[%s1087 + $0x3c] sm:$0xf]
      %v1114 = vunpack.c.l.b16 %v1077
      %v1115 = vunpack.c.l.b16 %v1078
      %v1116 = vunpack.c.l.b16 %v1079
      %v1117 = vunpack.c.l.b16 %v1080
      %v1118 = vunpack.c.l.b16 %v1081
      %v1119 = vunpack.c.l.b16 %v1082
      %v1120 = vunpack.c.l.b16 %v1083
      %v1121 = vunpack.c.l.b16 %v1084
      %v1122 = vunpack.c.l.b16 %v1085
      %v1123 = vunpack.c.l.b16 %v1086
      %v1124 = vpack.c.b16 %v1115, %v1114
      %v1125 = vpack.c.b16 %v1117, %v1116
      %v1126 = vpack.c.b16 %v1119, %v1118
      %v1127 = vpack.c.b16 %v1121, %v1120
      %v1128 = vpack.c.b16 %v1123, %v1122
      %v1130 = vshrl.u32 %v1124, 16
      %v1132 = vshll.u32 %v1124, 16
      %v1134 = vrot.slane %v1132, 1
      %v1135 = vor.u32 %v1130, %v1134
      %v1137 = vshll.u32 %v1125, 16
      %v1139 = vrot.slane %v1137, 1
      %v1140 = vsel %vm466, %v1135, %v1139
      %v1141 = vshrl.u32 %v1125, 16
      %v1143 = vor.u32 %v1141, %v1139
      %v1145 = vshll.u32 %v1126, 16
      %v1147 = vrot.slane %v1145, 1
      %v1148 = vsel %vm466, %v1143, %v1147
      %v1149 = vshrl.u32 %v1126, 16
      %v1151 = vor.u32 %v1149, %v1147
      %v1153 = vshll.u32 %v1127, 16
      %v1155 = vrot.slane %v1153, 1
      %v1156 = vsel %vm466, %v1151, %v1155
      %v1157 = vshrl.u32 %v1127, 16
      %v1159 = vor.u32 %v1157, %v1155
      %v1161 = vshll.u32 %v1128, 16
      %v1163 = vrot.slane %v1161, 1
      %v1164 = vsel %vm466, %v1159, %v1163
      %v1165 = vshrl.u32 %v1128, 16
      %v1167 = vor.u32 %v1165, %v1163
      %v1189 = vunpack.c.l.b16 %v1088
      %v1190 = vunpack.c.l.b16 %v1089
      %v1191 = vunpack.c.l.b16 %v1090
      %v1192 = vunpack.c.l.b16 %v1091
      %v1193 = vunpack.c.l.b16 %v1092
      %v1194 = vunpack.c.l.b16 %v1093
      %v1195 = vunpack.c.l.b16 %v1094
      %v1196 = vunpack.c.l.b16 %v1095
      %v1197 = vunpack.c.l.b16 %v1096
      %v1198 = vunpack.c.l.b16 %v1097
      %v1199 = vunpack.c.l.b16 %v1098
      %v1200 = vunpack.c.l.b16 %v1099
      %v1201 = vunpack.c.l.b16 %v1100
      %v1202 = vunpack.c.l.b16 %v1101
      %v1203 = vunpack.c.l.b16 %v1102
      %v1204 = vunpack.c.l.b16 %v1103
      %v1205 = vpack.c.b16 %v1190, %v1189
      %v1206 = vpack.c.b16 %v1192, %v1191
      %v1207 = vpack.c.b16 %v1194, %v1193
      %v1208 = vpack.c.b16 %v1196, %v1195
      %v1209 = vpack.c.b16 %v1198, %v1197
      %v1210 = vpack.c.b16 %v1200, %v1199
      %v1211 = vpack.c.b16 %v1202, %v1201
      %v1212 = vpack.c.b16 %v1204, %v1203
      %1221 = vmatpush.bf16.msra.mxu0 %v1212
      %1222 = vmatpush.bf16.msra.mxu0 %v1211
      %1223 = vmatpush.bf16.msra.mxu0 %v1210
      %1224 = vmatpush.bf16.msra.mxu0 %v1209
      %1225 = vmatpush.bf16.msra.mxu0 %v1208
      %1226 = vmatpush.bf16.msra.mxu0 %v1207
      %1227 = vmatpush.bf16.msra.mxu0 %v1206
      %1228 = vmatpush.bf16.msra.mxu0 %v1205
      %1229 = vmatmul.bf16.gmra.mxu0 %v1140
      %v1230 = vpop.f32.mrf.mxu0
      %v1231 = vadd.f32 0.0, %v1230
      %v1232 = vpop.f32.mrf.mxu0
      %v1233 = vadd.f32 0.0, %v1232
      %1234 = vmatmul.bf16.gmra.mxu0 %v1148
      %v1235 = vpop.f32.mrf.mxu0
      %v1236 = vadd.f32 0.0, %v1235
      %v1237 = vpop.f32.mrf.mxu0
      %v1238 = vadd.f32 0.0, %v1237
      %1239 = vmatmul.bf16.gmra.mxu0 %v1156
      %v1240 = vpop.f32.mrf.mxu0
      %v1241 = vadd.f32 0.0, %v1240
      %v1242 = vpop.f32.mrf.mxu0
      %v1243 = vadd.f32 0.0, %v1242
      %1244 = vmatmul.bf16.gmra.mxu0 %v1164
      %v1245 = vpop.f32.mrf.mxu0
      %v1246 = vadd.f32 0.0, %v1245
      %v1247 = vpop.f32.mrf.mxu0
      %v1248 = vadd.f32 0.0, %v1247
      %1249 = vmatmul.bf16.gmra.mxu0 %v1167
      %v1250 = vpop.f32.mrf.mxu0
      %v1251 = vadd.f32 0.0, %v1250
      %v1252 = vpop.f32.mrf.mxu0
      %1253 = vdwg.mxu0
      %v1254 = vadd.f32 %v1068, %v1231
      %v1255 = vadd.f32 %v1069, %v1233
      %v1256 = vadd.f32 %v1070, %v1236
      %v1257 = vadd.f32 %v1071, %v1238
      %v1258 = vadd.f32 %v1072, %v1241
      %v1259 = vadd.f32 %v1073, %v1243
      %v1260 = vadd.f32 %v1074, %v1246
      %v1261 = vadd.f32 %v1075, %v1248
      %v1262 = vadd.f32 %v1076, %v1251
      %v1263 = vld [vmem:[%s169 + $0x4] sm:$0xf]
      %v1264 = vld [vmem:[%s169 + $0x8] sm:$0xf]
      %v1265 = vld [vmem:[%s169 + $0xc] sm:$0xf]
      %v1266 = vld [vmem:[%s169 + $0x10] sm:$0xf]
      %v1267 = vld [vmem:[%s169 + $0x14] sm:$0xf]
      %v1268 = vld [vmem:[%s169 + $0x18] sm:$0xf]
      %v1269 = vld [vmem:[%s169 + $0x1c] sm:$0xf]
      %v1270 = vld [vmem:[%s169 + $0x20] sm:$0xf]
      %v1271 = vld [vmem:[%s169 + $0x24] sm:$0xf]
      %v1272 = vld [vmem:[%s169 + $0x28] sm:$0x1]
      %s1273 = scalar_lea.vmem %s1, 448
      %v1274 = vld [vmem:[%s1273] sm:$0xf]
      %v1275 = vld [vmem:[%s1273 + $0x4] sm:$0xf]
      %v1276 = vld [vmem:[%s1273 + $0x8] sm:$0xf]
      %v1277 = vld [vmem:[%s1273 + $0xc] sm:$0xf]
      %v1278 = vld [vmem:[%s1273 + $0x10] sm:$0xf]
      %v1279 = vld [vmem:[%s1273 + $0x14] sm:$0xf]
      %v1280 = vld [vmem:[%s1273 + $0x18] sm:$0xf]
      %v1281 = vld [vmem:[%s1273 + $0x1c] sm:$0xf]
      %v1282 = vld [vmem:[%s1273 + $0x20] sm:$0xf]
      %v1283 = vld [vmem:[%s1273 + $0x24] sm:$0xf]
      %v1284 = vld [vmem:[%s1273 + $0x28] sm:$0xf]
      %v1285 = vld [vmem:[%s1273 + $0x2c] sm:$0xf]
      %v1286 = vld [vmem:[%s1273 + $0x30] sm:$0xf]
      %v1287 = vld [vmem:[%s1273 + $0x34] sm:$0xf]
      %v1288 = vld [vmem:[%s1273 + $0x38] sm:$0xf]
      %v1289 = vld [vmem:[%s1273 + $0x3c] sm:$0xf]
      %v1300 = vunpack.c.l.b16 %v1263
      %v1301 = vunpack.c.l.b16 %v1264
      %v1302 = vunpack.c.l.b16 %v1265
      %v1303 = vunpack.c.l.b16 %v1266
      %v1304 = vunpack.c.l.b16 %v1267
      %v1305 = vunpack.c.l.b16 %v1268
      %v1306 = vunpack.c.l.b16 %v1269
      %v1307 = vunpack.c.l.b16 %v1270
      %v1308 = vunpack.c.l.b16 %v1271
      %v1309 = vunpack.c.l.b16 %v1272
      %v1310 = vpack.c.b16 %v1301, %v1300
      %v1311 = vpack.c.b16 %v1303, %v1302
      %v1312 = vpack.c.b16 %v1305, %v1304
      %v1313 = vpack.c.b16 %v1307, %v1306
      %v1314 = vpack.c.b16 %v1309, %v1308
      %v1316 = vshrl.u32 %v1310, 16
      %v1318 = vshll.u32 %v1310, 16
      %v1320 = vrot.slane %v1318, 1
      %v1321 = vor.u32 %v1316, %v1320
      %v1323 = vshll.u32 %v1311, 16
      %v1325 = vrot.slane %v1323, 1
      %v1326 = vsel %vm466, %v1321, %v1325
      %v1327 = vshrl.u32 %v1311, 16
      %v1329 = vor.u32 %v1327, %v1325
      %v1331 = vshll.u32 %v1312, 16
      %v1333 = vrot.slane %v1331, 1
      %v1334 = vsel %vm466, %v1329, %v1333
      %v1335 = vshrl.u32 %v1312, 16
      %v1337 = vor.u32 %v1335, %v1333
      %v1339 = vshll.u32 %v1313, 16
      %v1341 = vrot.slane %v1339, 1
      %v1342 = vsel %vm466, %v1337, %v1341
      %v1343 = vshrl.u32 %v1313, 16
      %v1345 = vor.u32 %v1343, %v1341
      %v1347 = vshll.u32 %v1314, 16
      %v1349 = vrot.slane %v1347, 1
      %v1350 = vsel %vm466, %v1345, %v1349
      %v1351 = vshrl.u32 %v1314, 16
      %v1353 = vor.u32 %v1351, %v1349
      %v1375 = vunpack.c.l.b16 %v1274
      %v1376 = vunpack.c.l.b16 %v1275
      %v1377 = vunpack.c.l.b16 %v1276
      %v1378 = vunpack.c.l.b16 %v1277
      %v1379 = vunpack.c.l.b16 %v1278
      %v1380 = vunpack.c.l.b16 %v1279
      %v1381 = vunpack.c.l.b16 %v1280
      %v1382 = vunpack.c.l.b16 %v1281
      %v1383 = vunpack.c.l.b16 %v1282
      %v1384 = vunpack.c.l.b16 %v1283
      %v1385 = vunpack.c.l.b16 %v1284
      %v1386 = vunpack.c.l.b16 %v1285
      %v1387 = vunpack.c.l.b16 %v1286
      %v1388 = vunpack.c.l.b16 %v1287
      %v1389 = vunpack.c.l.b16 %v1288
      %v1390 = vunpack.c.l.b16 %v1289
      %v1391 = vpack.c.b16 %v1376, %v1375
      %v1392 = vpack.c.b16 %v1378, %v1377
      %v1393 = vpack.c.b16 %v1380, %v1379
      %v1394 = vpack.c.b16 %v1382, %v1381
      %v1395 = vpack.c.b16 %v1384, %v1383
      %v1396 = vpack.c.b16 %v1386, %v1385
      %v1397 = vpack.c.b16 %v1388, %v1387
      %v1398 = vpack.c.b16 %v1390, %v1389
      %1407 = vmatpush.bf16.msra.mxu0 %v1398
      %1408 = vmatpush.bf16.msra.mxu0 %v1397
      %1409 = vmatpush.bf16.msra.mxu0 %v1396
      %1410 = vmatpush.bf16.msra.mxu0 %v1395
      %1411 = vmatpush.bf16.msra.mxu0 %v1394
      %1412 = vmatpush.bf16.msra.mxu0 %v1393
      %1413 = vmatpush.bf16.msra.mxu0 %v1392
      %1414 = vmatpush.bf16.msra.mxu0 %v1391
      %1415 = vmatmul.bf16.gmra.mxu0 %v1326
      %v1416 = vpop.f32.mrf.mxu0
      %v1417 = vadd.f32 0.0, %v1416
      %v1418 = vpop.f32.mrf.mxu0
      %v1419 = vadd.f32 0.0, %v1418
      %1420 = vmatmul.bf16.gmra.mxu0 %v1334
      %v1421 = vpop.f32.mrf.mxu0
      %v1422 = vadd.f32 0.0, %v1421
      %v1423 = vpop.f32.mrf.mxu0
      %v1424 = vadd.f32 0.0, %v1423
      %1425 = vmatmul.bf16.gmra.mxu0 %v1342
      %v1426 = vpop.f32.mrf.mxu0
      %v1427 = vadd.f32 0.0, %v1426
      %v1428 = vpop.f32.mrf.mxu0
      %v1429 = vadd.f32 0.0, %v1428
      %1430 = vmatmul.bf16.gmra.mxu0 %v1350
      %v1431 = vpop.f32.mrf.mxu0
      %v1432 = vadd.f32 0.0, %v1431
      %v1433 = vpop.f32.mrf.mxu0
      %v1434 = vadd.f32 0.0, %v1433
      %1435 = vmatmul.bf16.gmra.mxu0 %v1353
      %v1436 = vpop.f32.mrf.mxu0
      %v1437 = vadd.f32 0.0, %v1436
      %v1438 = vpop.f32.mrf.mxu0
      %1439 = vdwg.mxu0
      %v1440 = vadd.f32 %v1254, %v1417
      %v1441 = vadd.f32 %v1255, %v1419
      %v1442 = vadd.f32 %v1256, %v1422
      %v1443 = vadd.f32 %v1257, %v1424
      %v1444 = vadd.f32 %v1258, %v1427
      %v1445 = vadd.f32 %v1259, %v1429
      %v1446 = vadd.f32 %v1260, %v1432
      %v1447 = vadd.f32 %v1261, %v1434
      %v1448 = vadd.f32 %v1262, %v1437
      %v1449 = vld [vmem:[%s138 + $0x4] sm:$0xe]
      %s1450 = scalar_lea.vmem %s1, 512
      %v1451 = vld [vmem:[%s1450] sm:$0xf]
      %v1452 = vld [vmem:[%s1450 + $0x4] sm:$0xf]
      %v1453 = vld [vmem:[%s1450 + $0x8] sm:$0xf]
      %v1454 = vld [vmem:[%s1450 + $0xc] sm:$0xf]
      %v1455 = vld [vmem:[%s1450 + $0x10] sm:$0xf]
      %v1456 = vld [vmem:[%s1450 + $0x14] sm:$0xf]
      %v1457 = vld [vmem:[%s1450 + $0x18] sm:$0xf]
      %v1458 = vld [vmem:[%s1450 + $0x1c] sm:$0xf]
      %v1459 = vld [vmem:[%s1450 + $0x20] sm:$0xf]
      %v1460 = vld [vmem:[%s1450 + $0x24] sm:$0xf]
      %v1461 = vld [vmem:[%s1450 + $0x28] sm:$0xf]
      %v1462 = vld [vmem:[%s1450 + $0x2c] sm:$0xf]
      %v1463 = vld [vmem:[%s1450 + $0x30] sm:$0xf]
      %v1464 = vld [vmem:[%s1450 + $0x34] sm:$0xf]
      %v1465 = vld [vmem:[%s1450 + $0x38] sm:$0xf]
      %v1466 = vld [vmem:[%s1450 + $0x3c] sm:$0xf]
      %v1468 = vunpack.c.l.b16 %v1449
      %v1469 = vpack.c.b16 %v1115, %v1468
      %vm1470 = vcmask 1046528
      %v1471 = vrot.slane %v1469, 1
      %v1472 = vrot.slane %v1125, 1
      %v1473 = vsel %vm1470, %v1471, %v1472
      %v1474 = vrot.slane %v1126, 1
      %v1475 = vsel %vm1470, %v1472, %v1474
      %v1476 = vrot.slane %v1127, 1
      %v1477 = vsel %vm1470, %v1474, %v1476
      %v1478 = vrot.slane %v1128, 1
      %v1479 = vsel %vm1470, %v1476, %v1478
      %v1501 = vunpack.c.l.b16 %v1451
      %v1502 = vunpack.c.l.b16 %v1452
      %v1503 = vunpack.c.l.b16 %v1453
      %v1504 = vunpack.c.l.b16 %v1454
      %v1505 = vunpack.c.l.b16 %v1455
      %v1506 = vunpack.c.l.b16 %v1456
      %v1507 = vunpack.c.l.b16 %v1457
      %v1508 = vunpack.c.l.b16 %v1458
      %v1509 = vunpack.c.l.b16 %v1459
      %v1510 = vunpack.c.l.b16 %v1460
      %v1511 = vunpack.c.l.b16 %v1461
      %v1512 = vunpack.c.l.b16 %v1462
      %v1513 = vunpack.c.l.b16 %v1463
      %v1514 = vunpack.c.l.b16 %v1464
      %v1515 = vunpack.c.l.b16 %v1465
      %v1516 = vunpack.c.l.b16 %v1466
      %v1517 = vpack.c.b16 %v1502, %v1501
      %v1518 = vpack.c.b16 %v1504, %v1503
      %v1519 = vpack.c.b16 %v1506, %v1505
      %v1520 = vpack.c.b16 %v1508, %v1507
      %v1521 = vpack.c.b16 %v1510, %v1509
      %v1522 = vpack.c.b16 %v1512, %v1511
      %v1523 = vpack.c.b16 %v1514, %v1513
      %v1524 = vpack.c.b16 %v1516, %v1515
      %1533 = vmatpush.bf16.msra.mxu0 %v1524
      %1534 = vmatpush.bf16.msra.mxu0 %v1523
      %1535 = vmatpush.bf16.msra.mxu0 %v1522
      %1536 = vmatpush.bf16.msra.mxu0 %v1521
      %1537 = vmatpush.bf16.msra.mxu0 %v1520
      %1538 = vmatpush.bf16.msra.mxu0 %v1519
      %1539 = vmatpush.bf16.msra.mxu0 %v1518
      %1540 = vmatpush.bf16.msra.mxu0 %v1517
      %1541 = vmatmul.bf16.gmra.mxu0 %v1473
      %v1542 = vpop.f32.mrf.mxu0
      %v1543 = vadd.f32 0.0, %v1542
      %v1544 = vpop.f32.mrf.mxu0
      %v1545 = vadd.f32 0.0, %v1544
      %1546 = vmatmul.bf16.gmra.mxu0 %v1475
      %v1547 = vpop.f32.mrf.mxu0
      %v1548 = vadd.f32 0.0, %v1547
      %v1549 = vpop.f32.mrf.mxu0
      %v1550 = vadd.f32 0.0, %v1549
      %1551 = vmatmul.bf16.gmra.mxu0 %v1477
      %v1552 = vpop.f32.mrf.mxu0
      %v1553 = vadd.f32 0.0, %v1552
      %v1554 = vpop.f32.mrf.mxu0
      %v1555 = vadd.f32 0.0, %v1554
      %1556 = vmatmul.bf16.gmra.mxu0 %v1479
      %v1557 = vpop.f32.mrf.mxu0
      %v1558 = vadd.f32 0.0, %v1557
      %v1559 = vpop.f32.mrf.mxu0
      %v1560 = vadd.f32 0.0, %v1559
      %1561 = vmatmul.bf16.gmra.mxu0 %v1478
      %v1562 = vpop.f32.mrf.mxu0
      %v1563 = vadd.f32 0.0, %v1562
      %v1564 = vpop.f32.mrf.mxu0
      %1565 = vdwg.mxu0
      %v1566 = vadd.f32 %v1440, %v1543
      %v1567 = vadd.f32 %v1441, %v1545
      %v1568 = vadd.f32 %v1442, %v1548
      %v1569 = vadd.f32 %v1443, %v1550
      %v1570 = vadd.f32 %v1444, %v1553
      %v1571 = vadd.f32 %v1445, %v1555
      %v1572 = vadd.f32 %v1446, %v1558
      %v1573 = vadd.f32 %v1447, %v1560
      %v1574 = vadd.f32 %v1448, %v1563
      %v1575 = vmax.f32 %v1566, 0.0
      %v1576 = vmax.f32 %v1567, 0.0
      %v1577 = vmax.f32 %v1568, 0.0
      %v1578 = vmax.f32 %v1569, 0.0
      %v1579 = vmax.f32 %v1570, 0.0
      %v1580 = vmax.f32 %v1571, 0.0
      %v1581 = vmax.f32 %v1572, 0.0
      %v1582 = vmax.f32 %v1573, 0.0
      %v1583 = vmax.f32 %v1574, 0.0
      %v1584 = vpack.c.bf16 %v1575, %v1575
      %v1585 = vpack.c.bf16 %v1576, %v1576
      %v1586 = vpack.c.bf16 %v1577, %v1577
      %v1587 = vpack.c.bf16 %v1578, %v1578
      %v1588 = vpack.c.bf16 %v1579, %v1579
      %v1589 = vpack.c.bf16 %v1580, %v1580
      %v1590 = vpack.c.bf16 %v1581, %v1581
      %v1591 = vpack.c.bf16 %v1582, %v1582
      %v1592 = vpack.c.bf16 %v1583, %v1583
      %1593 = vst [vmem:[%s143] sm:$0xf] %v1584
      %1594 = vst [vmem:[%s143 + $0x4] sm:$0xf] %v1585
      %1595 = vst [vmem:[%s143 + $0x8] sm:$0xf] %v1586
      %1596 = vst [vmem:[%s143 + $0xc] sm:$0xf] %v1587
      %1597 = vst [vmem:[%s143 + $0x10] sm:$0xf] %v1588
      %1598 = vst [vmem:[%s143 + $0x14] sm:$0xf] %v1589
      %1599 = vst [vmem:[%s143 + $0x18] sm:$0xf] %v1590
      %1600 = vst [vmem:[%s143 + $0x1c] sm:$0xf] %v1591
      %1601 = vst [vmem:[%s143 + $0x20] sm:$0xf] %v1592
      %p1602 = scmp.lt.s32.totalorder %s13, 1
      %s1603 = scalar_select %p1602, %s13, 1
      %s1604 = smul.addr %s1603, 9
      %s1605 = smul.addr %s1604, 4
      %s1606 = scalar_lea.vmem %s2, %s1605
      // Predicated region
      $region29: #{basic_block_forward.2} parent=27 // pred_check
        %p1607 = pneg %p78
      $region30: #{basic_block_forward.2} parent=27 // pred_check_branch
        %1609 = sbr.rel (%p1607) target = $region32
      $region31: #{basic_block_forward.2} parent=27 // pred_region
        _
      $region32: #{basic_block_forward.2} parent=27 // pred_fallthru
        _
    $region28: #{basic_block_forward.2} parent=5 // pred_fallthru
      _
    %p1610 = scmp.le.s32.totalorder 2, %s8
    // Predicated region
    $region33: #{basic_block_forward.2} parent=5 // pred_check
      %p1611 = pneg %p1610
    $region34: #{basic_block_forward.2} parent=5 // pred_check_branch
      %1613 = sbr.rel (%p1611) target = $region36
    $region35: #{basic_block_forward.2} parent=5 // pred_region
      %s1614 = ssub.s32 %s8, 2
      // Predicated region
      $region37: #{basic_block_forward.2} parent=35 // pred_check
        %p1615 = pneg %p84
      $region38: #{basic_block_forward.2} parent=35 // pred_check_branch
        %1617 = sbr.rel (%p1615) target = $region40
      $region39: #{basic_block_forward.2} parent=35 // pred_region
        %p1618 = scmp.lt.s32.totalorder %s14, 1
        %s1619 = scalar_select %p1618, %s14, 1
        %s1620 = smul.addr %s1619, 9
        %s1621 = smul.addr %s1620, 4
        %s1622 = scalar_lea.vmem %s2, %s1621
      $region40: #{basic_block_forward.2} parent=35 // pred_fallthru
        _
    $region36: #{basic_block_forward.2} parent=5 // pred_fallthru
      _
  $region6: #{basic_block_forward.2} parent=0 // loop_footer
    %s12 = sadd.s32 1, %s8
  $region7: #{basic_block_forward.2} parent=0 // loop_footer_branch
    %7 = sbr.rel target = $region3
  $region8: #{basic_block_forward.2} parent=0 // loop_exit
    _

// kernel: basic_block_forward.3
$region0: #{basic_block_forward.3}
  #allocation0 [shape = 'u32[]', space=smem, size = 0x4, offset = 0x4, fixed_abs, tag = 'smem constant byte address 0x4 - core index']
  #allocation1 [shape = 'u32[72,128]{1,0:T(1,128)}', space=vmem, size = 0x9000, scoped, tag = 'internal scratch']
  %s0 = inlined_call_operand.vmem [shape: bf16[2,1,104,128], index: 0, kind: input, shape index: {}]
  %s1 = inlined_call_operand.vmem [shape: bf16[9,128,128], index: 1, kind: input, shape index: {}]
  %s2 = inlined_call_operand.vmem [shape: bf16[2,80,128], index: 2, kind: input, shape index: {}]
  %s3 = inlined_call_operand.vmem [shape: bf16[128,128], index: 3, kind: input, shape index: {}]
  %s4 = inlined_call_operand.vmem [shape: bf16[2,80,128], index: 4, kind: output, shape index: {}]
  %s5 = sld [smem:[#allocation0]]
  $region49: #{basic_block_forward.3} parent=0
    _
  %s7 = ssub.s32 1, %s5
  %s8 = scalar_select 0, %s7, %s5
  loop: start=0, step=1, limit=4
  $region2: #{basic_block_forward.3} parent=0 // loop_pre_header
    _
  $region3: #{basic_block_forward.3} parent=0 // loop_header
    %s10 = sphi 0, %s14
    %p11 = scmp.ge.s32.totalorder %s10, 4
    %s20 = sphi 0, %s22
    %s23 = sphi 0, %s20
    %s24 = sphi 0, %s23
    %s40 = sphi 0, %s24
    %s44 = sphi 0, %s44
    %s46 = sphi 0, %s44
    %s47 = sphi 0, %s46
    %s61 = sphi 0, %s47
    %s67 = sphi 0, %s69
    %s70 = sphi 0, %s67
    %s71 = sphi 0, %s70
    %s87 = sphi 0, %s71
    %s91 = sphi 0, %s91
    %s93 = sphi 0, %s91
    %s94 = sphi 0, %s93
    %s108 = sphi 0, %s94
    %s114 = sphi 0, %s116
    %s117 = sphi 0, %s114
    %s118 = sphi 0, %s117
    %s134 = sphi 0, %s118
  $region4: #{basic_block_forward.3} parent=0 // loop_header_branch
    %13 = sbr.rel (%p11) target = $region8
  $region5: #{basic_block_forward.3} parent=0 // loop_body
    %s15 = ssub.s32 %s10, 1
    %s16 = ssub.s32 %s10, 2
    %s17 = sadd.s32 %s10, 1
    %s18 = ssub.s32 %s10, %s17
    %p19 = scmp.eq.s32.totalorder %s18, 0
    %s21 = sadd.s32 %s20, 1
    %s22 = scalar_select %p19, %s20, %s21
    %p25 = pneg %p19
    %p26 = scmp.eq.s32.totalorder %s10, 1
    %p27 = por %p25, %p26
    %p28 = scmp.ne.s32.totalorder %s20, %s23
    %p29 = scmp.eq.s32.totalorder %s10, 0
    %p30 = por %p28, %p29
    %p31 = scmp.ne.s32.totalorder %s20, %s23
    %p32 = scmp.eq.s32.totalorder %s15, 1
    %p33 = por %p31, %p32
    %p34 = scmp.ne.s32.totalorder %s23, %s24
    %p35 = scmp.eq.s32.totalorder %s15, 0
    %p36 = por %p34, %p35
    %p37 = scmp.ne.s32.totalorder %s23, %s24
    %p38 = scmp.eq.s32.totalorder %s16, 1
    %p39 = por %p37, %p38
    %p41 = scmp.ne.s32.totalorder %s24, %s40
    %p42 = scmp.eq.s32.totalorder %s16, 0
    %p43 = por %p41, %p42
    %s45 = sadd.s32 %s44, 1
    %p48 = scmp.eq.s32.totalorder %s10, 1
    %p49 = scmp.ne.s32.totalorder %s44, %s46
    %p50 = scmp.eq.s32.totalorder %s10, 0
    %p51 = por %p49, %p50
    %p52 = scmp.ne.s32.totalorder %s44, %s46
    %p53 = scmp.eq.s32.totalorder %s15, 1
    %p54 = por %p52, %p53
    %p55 = scmp.ne.s32.totalorder %s46, %s47
    %p56 = scmp.eq.s32.totalorder %s15, 0
    %p57 = por %p55, %p56
    %p58 = scmp.ne.s32.totalorder %s46, %s47
    %p59 = scmp.eq.s32.totalorder %s16, 1
    %p60 = por %p58, %p59
    %p62 = scmp.ne.s32.totalorder %s47, %s61
    %p63 = scmp.eq.s32.totalorder %s16, 0
    %p64 = por %p62, %p63
    %s65 = ssub.s32 %s10, %s17
    %p66 = scmp.eq.s32.totalorder %s65, 0
    %s68 = sadd.s32 %s67, 1
    %s69 = scalar_select %p66, %s67, %s68
    %p72 = pneg %p66
    %p73 = scmp.eq.s32.totalorder %s10, 1
    %p74 = por %p72, %p73
    %p75 = scmp.ne.s32.totalorder %s67, %s70
    %p76 = scmp.eq.s32.totalorder %s10, 0
    %p77 = por %p75, %p76
    %p78 = scmp.ne.s32.totalorder %s67, %s70
    %p79 = scmp.eq.s32.totalorder %s15, 1
    %p80 = por %p78, %p79
    %p81 = scmp.ne.s32.totalorder %s70, %s71
    %p82 = scmp.eq.s32.totalorder %s15, 0
    %p83 = por %p81, %p82
    %p84 = scmp.ne.s32.totalorder %s70, %s71
    %p85 = scmp.eq.s32.totalorder %s16, 1
    %p86 = por %p84, %p85
    %p88 = scmp.ne.s32.totalorder %s71, %s87
    %p89 = scmp.eq.s32.totalorder %s16, 0
    %p90 = por %p88, %p89
    %s92 = sadd.s32 %s91, 1
    %p95 = scmp.eq.s32.totalorder %s10, 1
    %p96 = scmp.ne.s32.totalorder %s91, %s93
    %p97 = scmp.eq.s32.totalorder %s10, 0
    %p98 = por %p96, %p97
    %p99 = scmp.ne.s32.totalorder %s91, %s93
    %p100 = scmp.eq.s32.totalorder %s15, 1
    %p101 = por %p99, %p100
    %p102 = scmp.ne.s32.totalorder %s93, %s94
    %p103 = scmp.eq.s32.totalorder %s15, 0
    %p104 = por %p102, %p103
    %p105 = scmp.ne.s32.totalorder %s93, %s94
    %p106 = scmp.eq.s32.totalorder %s16, 1
    %p107 = por %p105, %p106
    %p109 = scmp.ne.s32.totalorder %s94, %s108
    %p110 = scmp.eq.s32.totalorder %s16, 0
    %p111 = por %p109, %p110
    %s112 = ssub.s32 %s10, %s17
    %p113 = scmp.eq.s32.totalorder %s112, 0
    %s115 = sadd.s32 %s114, 1
    %s116 = scalar_select %p113, %s114, %s115
    %p119 = pneg %p113
    %p120 = scmp.eq.s32.totalorder %s10, 1
    %p121 = por %p119, %p120
    %p122 = scmp.ne.s32.totalorder %s114, %s117
    %p123 = scmp.eq.s32.totalorder %s10, 0
    %p124 = por %p122, %p123
    %p125 = scmp.ne.s32.totalorder %s114, %s117
    %p126 = scmp.eq.s32.totalorder %s15, 1
    %p127 = por %p125, %p126
    %p128 = scmp.ne.s32.totalorder %s117, %s118
    %p129 = scmp.eq.s32.totalorder %s15, 0
    %p130 = por %p128, %p129
    %p131 = scmp.ne.s32.totalorder %s117, %s118
    %p132 = scmp.eq.s32.totalorder %s16, 1
    %p133 = por %p131, %p132
    %p135 = scmp.ne.s32.totalorder %s118, %s134
    %p136 = scmp.eq.s32.totalorder %s16, 0
    %p137 = por %p135, %p136
    %p138 = scmp.le.s32.totalorder 1, %s10
    %p139 = scmp.lt.s32.totalorder %s10, 3
    %p140 = pnand %p138, %p139
    %p141 = pneg %p140
    // Predicated region
    $region9: #{basic_block_forward.3} parent=5 // pred_check
      _
    $region10: #{basic_block_forward.3} parent=5 // pred_check_branch
      %143 = sbr.rel (%p140) target = $region12
    $region11: #{basic_block_forward.3} parent=5 // pred_region
      %s144 = ssub.s32 %s10, 1
      // Predicated region
      $region13: #{basic_block_forward.3} parent=11 // pred_check
        %p145 = pneg %p57
      $region14: #{basic_block_forward.3} parent=11 // pred_check_branch
        %147 = sbr.rel (%p145) target = $region16
      $region15: #{basic_block_forward.3} parent=11 // pred_region
        _
      $region16: #{basic_block_forward.3} parent=11 // pred_fallthru
        _
      // Predicated region
      $region17: #{basic_block_forward.3} parent=11 // pred_check
        %p148 = pneg %p104
      $region18: #{basic_block_forward.3} parent=11 // pred_check_branch
        %150 = sbr.rel (%p148) target = $region20
      $region19: #{basic_block_forward.3} parent=11 // pred_region
        _
      $region20: #{basic_block_forward.3} parent=11 // pred_fallthru
        _
    $region12: #{basic_block_forward.3} parent=5 // pred_fallthru
      _
    %p151 = scmp.lt.s32.totalorder %s10, 2
    // Predicated region
    $region21: #{basic_block_forward.3} parent=5 // pred_check
      %p152 = pneg %p151
    $region22: #{basic_block_forward.3} parent=5 // pred_check_branch
      %154 = sbr.rel (%p152) target = $region24
    $region23: #{basic_block_forward.3} parent=5 // pred_region
      // Predicated region
      $region25: #{basic_block_forward.3} parent=23 // pred_check
        %p155 = pneg %p30
      $region26: #{basic_block_forward.3} parent=23 // pred_check_branch
        %157 = sbr.rel (%p155) target = $region28
      $region27: #{basic_block_forward.3} parent=23 // pred_region
        %p158 = scmp.lt.s32.totalorder %s10, 1
        %s159 = scalar_select %p158, %s10, 1
        %s160 = smul.addr %s159, 13
        %s161 = smul.addr %s160, 4
        %s162 = scalar_lea.vmem %s0, %s161
      $region28: #{basic_block_forward.3} parent=23 // pred_fallthru
        _
      // Predicated region
      $region29: #{basic_block_forward.3} parent=23 // pred_check
        %p163 = pneg %p77
      $region30: #{basic_block_forward.3} parent=23 // pred_check_branch
        %165 = sbr.rel (%p163) target = $region32
      $region31: #{basic_block_forward.3} parent=23 // pred_region
        %p166 = scmp.lt.s32.totalorder %s10, 1
        %s167 = scalar_select %p166, %s10, 1
        %s168 = smul.addr %s167, 10
        %s169 = smul.addr %s168, 4
        %s170 = scalar_lea.vmem %s2, %s169
      $region32: #{basic_block_forward.3} parent=23 // pred_fallthru
        _
    $region24: #{basic_block_forward.3} parent=5 // pred_fallthru
      _
    %p171 = scmp.le.s32.totalorder 1, %s10
    %p172 = scmp.lt.s32.totalorder %s10, 3
    %p173 = pnand %p171, %p172
    %p174 = pneg %p173
    // Predicated region
    $region33: #{basic_block_forward.3} parent=5 // pred_check
      _
    $region34: #{basic_block_forward.3} parent=5 // pred_check_branch
      %176 = sbr.rel (%p173) target = $region36
    $region35: #{basic_block_forward.3} parent=5 // pred_region
      %s177 = ssub.s32 %s10, 1
      %p178 = scmp.lt.s32.totalorder %s15, 1
      %s179 = scalar_select %p178, %s15, 1
      %s180 = smul.addr %s179, 13
      %s181 = smul.addr %s180, 4
      %s182 = scalar_lea.vmem %s0, %s181
      %p183 = pneg %p36
      %p184 = pneg %p33
      %p185 = pneg %p57
      %p186 = pneg %p54
      %p187 = scmp.lt.s32.totalorder %s15, 1
      %s188 = scalar_select %p187, %s15, 1
      %s189 = smul.addr %s188, 10
      %s190 = smul.addr %s189, 4
      %s191 = scalar_lea.vmem %s2, %s190
      %p192 = pneg %p83
      %p193 = pneg %p80
      %p194 = pneg %p104
      %p195 = pneg %p101
      %p196 = pneg %p130
      %p197 = pneg %p127
      %p198 = scmp.lt.s32.totalorder %s15, 1
      %s199 = scalar_select %p198, %s15, 1
      %s200 = smul.addr %s199, 10
      %s201 = smul.addr %s200, 4
      %s202 = scalar_lea.vmem %s4, %s201
      %p203 = scmp.lt.s32.totalorder %s15, 1
      %s204 = scalar_select %p203, %s15, 1
      %s205 = smul.addr %s204, 13
      %s206 = smul.addr %s205, 4
      %s207 = scalar_lea.vmem %s0, %s206
      %p208 = scmp.lt.s32.totalorder %s15, 1
      %s209 = scalar_select %p208, %s15, 1
      %s210 = smul.addr %s209, 10
      %s211 = smul.addr %s210, 4
      %s212 = scalar_lea.vmem %s2, %s211
      %p213 = scmp.lt.s32.totalorder %s15, 1
      %s214 = scalar_select %p213, %s15, 1
      %s215 = smul.addr %s214, 10
      %s216 = smul.addr %s215, 4
      %s217 = scalar_lea.vmem %s4, %s216
      %v218 = vld [vmem:[%s207] sm:$0xf]
      %v219 = vld [vmem:[%s207 + $0x4] sm:$0xf]
      %v220 = vld [vmem:[%s207 + $0x8] sm:$0xf]
      %v221 = vld [vmem:[%s207 + $0xc] sm:$0xf]
      %v222 = vld [vmem:[%s207 + $0x10] sm:$0xf]
      %v223 = vld [vmem:[%s207 + $0x14] sm:$0xf]
      %v224 = vld [vmem:[%s207 + $0x18] sm:$0xf]
      %v225 = vld [vmem:[%s207 + $0x1c] sm:$0xf]
      %v226 = vld [vmem:[%s207 + $0x20] sm:$0xf]
      %v227 = vld [vmem:[%s207 + $0x24] sm:$0xf]
      %v228 = vld [vmem:[%s1] sm:$0xf]
      %v229 = vld [vmem:[%s1 + $0x4] sm:$0xf]
      %v230 = vld [vmem:[%s1 + $0x8] sm:$0xf]
      %v231 = vld [vmem:[%s1 + $0xc] sm:$0xf]
      %v232 = vld [vmem:[%s1 + $0x10] sm:$0xf]
      %v233 = vld [vmem:[%s1 + $0x14] sm:$0xf]
      %v234 = vld [vmem:[%s1 + $0x18] sm:$0xf]
      %v235 = vld [vmem:[%s1 + $0x1c] sm:$0xf]
      %v236 = vld [vmem:[%s1 + $0x20] sm:$0xf]
      %v237 = vld [vmem:[%s1 + $0x24] sm:$0xf]
      %v238 = vld [vmem:[%s1 + $0x28] sm:$0xf]
      %v239 = vld [vmem:[%s1 + $0x2c] sm:$0xf]
      %v240 = vld [vmem:[%s1 + $0x30] sm:$0xf]
      %v241 = vld [vmem:[%s1 + $0x34] sm:$0xf]
      %v242 = vld [vmem:[%s1 + $0x38] sm:$0xf]
      %v243 = vld [vmem:[%s1 + $0x3c] sm:$0xf]
      %v244 = vld [vmem:[%s207 + $0x28] sm:$0x1]
      %s245 = scalar_lea.vmem %s1, 64
      %v246 = vld [vmem:[%s245] sm:$0xf]
      %v247 = vld [vmem:[%s245 + $0x4] sm:$0xf]
      %v248 = vld [vmem:[%s245 + $0x8] sm:$0xf]
      %v249 = vld [vmem:[%s245 + $0xc] sm:$0xf]
      %v250 = vld [vmem:[%s245 + $0x10] sm:$0xf]
      %v251 = vld [vmem:[%s245 + $0x14] sm:$0xf]
      %v252 = vld [vmem:[%s245 + $0x18] sm:$0xf]
      %v253 = vld [vmem:[%s245 + $0x1c] sm:$0xf]
      %v254 = vld [vmem:[%s245 + $0x20] sm:$0xf]
      %v255 = vld [vmem:[%s245 + $0x24] sm:$0xf]
      %v256 = vld [vmem:[%s245 + $0x28] sm:$0xf]
      %v257 = vld [vmem:[%s245 + $0x2c] sm:$0xf]
      %v258 = vld [vmem:[%s245 + $0x30] sm:$0xf]
      %v259 = vld [vmem:[%s245 + $0x34] sm:$0xf]
      %v260 = vld [vmem:[%s245 + $0x38] sm:$0xf]
      %v261 = vld [vmem:[%s245 + $0x3c] sm:$0xf]
      %v273 = vunpack.c.l.b16 %v218
      %v274 = vunpack.c.l.b16 %v219
      %v275 = vunpack.c.l.b16 %v220
      %v276 = vunpack.c.l.b16 %v221
      %v277 = vunpack.c.l.b16 %v222
      %v278 = vunpack.c.l.b16 %v223
      %v279 = vunpack.c.l.b16 %v224
      %v280 = vunpack.c.l.b16 %v225
      %v281 = vunpack.c.l.b16 %v226
      %v282 = vunpack.c.l.b16 %v227
      %v283 = vunpack.c.l.b16 %v244
      %v284 = vpack.c.b16 %v274, %v273
      %v285 = vpack.c.b16 %v276, %v275
      %v286 = vpack.c.b16 %v278, %v277
      %v287 = vpack.c.b16 %v280, %v279
      %v288 = vpack.c.b16 %v282, %v281
      %v289 = vpack.c.b16 %v283, %v283
      %vm290 = vsmask.f32 7424
      %v292 = vshrl.u32 %v284, 16
      %v294 = vshll.u32 %v284, 16
      %v296 = vrot.slane %v294, 1
      %v297 = vor.u32 %v292, %v296
      %v299 = vshll.u32 %v285, 16
      %v301 = vrot.slane %v299, 1
      %v302 = vsel %vm290, %v297, %v301
      %v303 = vshrl.u32 %v285, 16
      %v305 = vor.u32 %v303, %v301
      %v307 = vshll.u32 %v286, 16
      %v309 = vrot.slane %v307, 1
      %v310 = vsel %vm290, %v305, %v309
      %v311 = vshrl.u32 %v286, 16
      %v313 = vor.u32 %v311, %v309
      %v315 = vshll.u32 %v287, 16
      %v317 = vrot.slane %v315, 1
      %v318 = vsel %vm290, %v313, %v317
      %v319 = vshrl.u32 %v287, 16
      %v321 = vor.u32 %v319, %v317
      %v323 = vshll.u32 %v288, 16
      %v325 = vrot.slane %v323, 1
      %v326 = vsel %vm290, %v321, %v325
      %v327 = vshrl.u32 %v288, 16
      %v329 = vor.u32 %v327, %v325
      %v331 = vshll.u32 %v289, 16
      %v333 = vrot.slane %v331, 1
      %v334 = vsel %vm290, %v329, %v333
      %v356 = vunpack.c.l.b16 %v246
      %v357 = vunpack.c.l.b16 %v247
      %v358 = vunpack.c.l.b16 %v248
      %v359 = vunpack.c.l.b16 %v249
      %v360 = vunpack.c.l.b16 %v250
      %v361 = vunpack.c.l.b16 %v251
      %v362 = vunpack.c.l.b16 %v252
      %v363 = vunpack.c.l.b16 %v253
      %v364 = vunpack.c.l.b16 %v254
      %v365 = vunpack.c.l.b16 %v255
      %v366 = vunpack.c.l.b16 %v256
      %v367 = vunpack.c.l.b16 %v257
      %v368 = vunpack.c.l.b16 %v258
      %v369 = vunpack.c.l.b16 %v259
      %v370 = vunpack.c.l.b16 %v260
      %v371 = vunpack.c.l.b16 %v261
      %v372 = vpack.c.b16 %v357, %v356
      %v373 = vpack.c.b16 %v359, %v358
      %v374 = vpack.c.b16 %v361, %v360
      %v375 = vpack.c.b16 %v363, %v362
      %v376 = vpack.c.b16 %v365, %v364
      %v377 = vpack.c.b16 %v367, %v366
      %v378 = vpack.c.b16 %v369, %v368
      %v379 = vpack.c.b16 %v371, %v370
      %388 = vmatpush.bf16.msra.mxu0 %v379
      %389 = vmatpush.bf16.msra.mxu0 %v378
      %390 = vmatpush.bf16.msra.mxu0 %v377
      %391 = vmatpush.bf16.msra.mxu0 %v376
      %392 = vmatpush.bf16.msra.mxu0 %v375
      %393 = vmatpush.bf16.msra.mxu0 %v374
      %394 = vmatpush.bf16.msra.mxu0 %v373
      %395 = vmatpush.bf16.msra.mxu0 %v372
      %396 = vmatmul.bf16.gmra.mxu0 %v302
      %v397 = vpop.f32.mrf.mxu0
      %v398 = vadd.f32 0.0, %v397
      %v399 = vpop.f32.mrf.mxu0
      %v400 = vadd.f32 0.0, %v399
      %401 = vmatmul.bf16.gmra.mxu0 %v310
      %v402 = vpop.f32.mrf.mxu0
      %v403 = vadd.f32 0.0, %v402
      %v404 = vpop.f32.mrf.mxu0
      %v405 = vadd.f32 0.0, %v404
      %406 = vmatmul.bf16.gmra.mxu0 %v318
      %v407 = vpop.f32.mrf.mxu0
      %v408 = vadd.f32 0.0, %v407
      %v409 = vpop.f32.mrf.mxu0
      %v410 = vadd.f32 0.0, %v409
      %411 = vmatmul.bf16.gmra.mxu0 %v326
      %v412 = vpop.f32.mrf.mxu0
      %v413 = vadd.f32 0.0, %v412
      %v414 = vpop.f32.mrf.mxu0
      %v415 = vadd.f32 0.0, %v414
      %416 = vmatmul.bf16.gmra.mxu0 %v334
      %v417 = vpop.f32.mrf.mxu0
      %v418 = vadd.f32 0.0, %v417
      %v419 = vpop.f32.mrf.mxu0
      %v420 = vadd.f32 0.0, %v419
      %421 = vdwg.mxu0
      %v443 = vunpack.c.l.b16 %v228
      %v444 = vunpack.c.l.b16 %v229
      %v445 = vunpack.c.l.b16 %v230
      %v446 = vunpack.c.l.b16 %v231
      %v447 = vunpack.c.l.b16 %v232
      %v448 = vunpack.c.l.b16 %v233
      %v449 = vunpack.c.l.b16 %v234
      %v450 = vunpack.c.l.b16 %v235
      %v451 = vunpack.c.l.b16 %v236
      %v452 = vunpack.c.l.b16 %v237
      %v453 = vunpack.c.l.b16 %v238
      %v454 = vunpack.c.l.b16 %v239
      %v455 = vunpack.c.l.b16 %v240
      %v456 = vunpack.c.l.b16 %v241
      %v457 = vunpack.c.l.b16 %v242
      %v458 = vunpack.c.l.b16 %v243
      %v459 = vpack.c.b16 %v444, %v443
      %v460 = vpack.c.b16 %v446, %v445
      %v461 = vpack.c.b16 %v448, %v447
      %v462 = vpack.c.b16 %v450, %v449
      %v463 = vpack.c.b16 %v452, %v451
      %v464 = vpack.c.b16 %v454, %v453
      %v465 = vpack.c.b16 %v456, %v455
      %v466 = vpack.c.b16 %v458, %v457
      %475 = vmatpush.bf16.msra.mxu0 %v466
      %476 = vmatpush.bf16.msra.mxu0 %v465
      %477 = vmatpush.bf16.msra.mxu0 %v464
      %478 = vmatpush.bf16.msra.mxu0 %v463
      %479 = vmatpush.bf16.msra.mxu0 %v462
      %480 = vmatpush.bf16.msra.mxu0 %v461
      %481 = vmatpush.bf16.msra.mxu0 %v460
      %482 = vmatpush.bf16.msra.mxu0 %v459
      %483 = vmatmul.bf16.gmra.mxu0 %v284
      %v484 = vpop.f32.mrf.mxu0
      %v485 = vadd.f32 %v398, %v484
      %v486 = vpop.f32.mrf.mxu0
      %v487 = vadd.f32 %v400, %v486
      %488 = vmatmul.bf16.gmra.mxu0 %v285
      %v489 = vpop.f32.mrf.mxu0
      %v490 = vadd.f32 %v403, %v489
      %v491 = vpop.f32.mrf.mxu0
      %v492 = vadd.f32 %v405, %v491
      %493 = vmatmul.bf16.gmra.mxu0 %v286
      %v494 = vpop.f32.mrf.mxu0
      %v495 = vadd.f32 %v408, %v494
      %v496 = vpop.f32.mrf.mxu0
      %v497 = vadd.f32 %v410, %v496
      %498 = vmatmul.bf16.gmra.mxu0 %v287
      %v499 = vpop.f32.mrf.mxu0
      %v500 = vadd.f32 %v413, %v499
      %v501 = vpop.f32.mrf.mxu0
      %v502 = vadd.f32 %v415, %v501
      %503 = vmatmul.bf16.gmra.mxu0 %v288
      %v504 = vpop.f32.mrf.mxu0
      %v505 = vadd.f32 %v418, %v504
      %v506 = vpop.f32.mrf.mxu0
      %v507 = vadd.f32 %v420, %v506
      %508 = vdwg.mxu0
      %v509 = vld [vmem:[%s207] sm:$0xe]
      %s510 = scalar_lea.vmem %s1, 128
      %v511 = vld [vmem:[%s510] sm:$0xf]
      %v512 = vld [vmem:[%s510 + $0x4] sm:$0xf]
      %v513 = vld [vmem:[%s510 + $0x8] sm:$0xf]
      %v514 = vld [vmem:[%s510 + $0xc] sm:$0xf]
      %v515 = vld [vmem:[%s510 + $0x10] sm:$0xf]
      %v516 = vld [vmem:[%s510 + $0x14] sm:$0xf]
      %v517 = vld [vmem:[%s510 + $0x18] sm:$0xf]
      %v518 = vld [vmem:[%s510 + $0x1c] sm:$0xf]
      %v519 = vld [vmem:[%s510 + $0x20] sm:$0xf]
      %v520 = vld [vmem:[%s510 + $0x24] sm:$0xf]
      %v521 = vld [vmem:[%s510 + $0x28] sm:$0xf]
      %v522 = vld [vmem:[%s510 + $0x2c] sm:$0xf]
      %v523 = vld [vmem:[%s510 + $0x30] sm:$0xf]
      %v524 = vld [vmem:[%s510 + $0x34] sm:$0xf]
      %v525 = vld [vmem:[%s510 + $0x38] sm:$0xf]
      %v526 = vld [vmem:[%s510 + $0x3c] sm:$0xf]
      %v528 = vunpack.c.l.b16 %v509
      %v529 = vpack.c.b16 %v274, %v528
      %vm530 = vcmask 1046528
      %v531 = vrot.slane %v529, 1
      %v532 = vrot.slane %v285, 1
      %v533 = vsel %vm530, %v531, %v532
      %v534 = vrot.slane %v286, 1
      %v535 = vsel %vm530, %v532, %v534
      %v536 = vrot.slane %v287, 1
      %v537 = vsel %vm530, %v534, %v536
      %v538 = vrot.slane %v288, 1
      %v539 = vsel %vm530, %v536, %v538
      %v540 = vrot.slane %v289, 1
      %v541 = vsel %vm530, %v538, %v540
      %v563 = vunpack.c.l.b16 %v511
      %v564 = vunpack.c.l.b16 %v512
      %v565 = vunpack.c.l.b16 %v513
      %v566 = vunpack.c.l.b16 %v514
      %v567 = vunpack.c.l.b16 %v515
      %v568 = vunpack.c.l.b16 %v516
      %v569 = vunpack.c.l.b16 %v517
      %v570 = vunpack.c.l.b16 %v518
      %v571 = vunpack.c.l.b16 %v519
      %v572 = vunpack.c.l.b16 %v520
      %v573 = vunpack.c.l.b16 %v521
      %v574 = vunpack.c.l.b16 %v522
      %v575 = vunpack.c.l.b16 %v523
      %v576 = vunpack.c.l.b16 %v524
      %v577 = vunpack.c.l.b16 %v525
      %v578 = vunpack.c.l.b16 %v526
      %v579 = vpack.c.b16 %v564, %v563
      %v580 = vpack.c.b16 %v566, %v565
      %v581 = vpack.c.b16 %v568, %v567
      %v582 = vpack.c.b16 %v570, %v569
      %v583 = vpack.c.b16 %v572, %v571
      %v584 = vpack.c.b16 %v574, %v573
      %v585 = vpack.c.b16 %v576, %v575
      %v586 = vpack.c.b16 %v578, %v577
      %595 = vmatpush.bf16.msra.mxu0 %v586
      %596 = vmatpush.bf16.msra.mxu0 %v585
      %597 = vmatpush.bf16.msra.mxu0 %v584
      %598 = vmatpush.bf16.msra.mxu0 %v583
      %599 = vmatpush.bf16.msra.mxu0 %v582
      %600 = vmatpush.bf16.msra.mxu0 %v581
      %601 = vmatpush.bf16.msra.mxu0 %v580
      %602 = vmatpush.bf16.msra.mxu0 %v579
      %603 = vmatmul.bf16.gmra.mxu0 %v533
      %v604 = vpop.f32.mrf.mxu0
      %v605 = vadd.f32 0.0, %v604
      %v606 = vpop.f32.mrf.mxu0
      %v607 = vadd.f32 0.0, %v606
      %608 = vmatmul.bf16.gmra.mxu0 %v535
      %v609 = vpop.f32.mrf.mxu0
      %v610 = vadd.f32 0.0, %v609
      %v611 = vpop.f32.mrf.mxu0
      %v612 = vadd.f32 0.0, %v611
      %613 = vmatmul.bf16.gmra.mxu0 %v537
      %v614 = vpop.f32.mrf.mxu0
      %v615 = vadd.f32 0.0, %v614
      %v616 = vpop.f32.mrf.mxu0
      %v617 = vadd.f32 0.0, %v616
      %618 = vmatmul.bf16.gmra.mxu0 %v539
      %v619 = vpop.f32.mrf.mxu0
      %v620 = vadd.f32 0.0, %v619
      %v621 = vpop.f32.mrf.mxu0
      %v622 = vadd.f32 0.0, %v621
      %623 = vmatmul.bf16.gmra.mxu0 %v541
      %v624 = vpop.f32.mrf.mxu0
      %v625 = vadd.f32 0.0, %v624
      %v626 = vpop.f32.mrf.mxu0
      %v627 = vadd.f32 0.0, %v626
      %628 = vdwg.mxu0
      %v629 = vadd.f32 %v485, %v605
      %v630 = vadd.f32 %v487, %v607
      %v631 = vadd.f32 %v490, %v610
      %v632 = vadd.f32 %v492, %v612
      %v633 = vadd.f32 %v495, %v615
      %v634 = vadd.f32 %v497, %v617
      %v635 = vadd.f32 %v500, %v620
      %v636 = vadd.f32 %v502, %v622
      %v637 = vadd.f32 %v505, %v625
      %v638 = vadd.f32 %v507, %v627
      %v639 = vld [vmem:[%s207 + $0x4] sm:$0xe]
      %v640 = vld [vmem:[%s207 + $0x8] sm:$0xf]
      %v641 = vld [vmem:[%s207 + $0xc] sm:$0xf]
      %v642 = vld [vmem:[%s207 + $0x10] sm:$0xf]
      %v643 = vld [vmem:[%s207 + $0x14] sm:$0xf]
      %v644 = vld [vmem:[%s207 + $0x18] sm:$0xf]
      %v645 = vld [vmem:[%s207 + $0x1c] sm:$0xf]
      %v646 = vld [vmem:[%s207 + $0x20] sm:$0xf]
      %v647 = vld [vmem:[%s207 + $0x24] sm:$0xf]
      %v648 = vld [vmem:[%s207 + $0x28] sm:$0xf]
      %v649 = vld [vmem:[%s207 + $0x2c] sm:$0x1]
      %s650 = scalar_lea.vmem %s1, 192
      %v651 = vld [vmem:[%s650] sm:$0xf]
      %v652 = vld [vmem:[%s650 + $0x4] sm:$0xf]
      %v653 = vld [vmem:[%s650 + $0x8] sm:$0xf]
      %v654 = vld [vmem:[%s650 + $0xc] sm:$0xf]
      %v655 = vld [vmem:[%s650 + $0x10] sm:$0xf]
      %v656 = vld [vmem:[%s650 + $0x14] sm:$0xf]
      %v657 = vld [vmem:[%s650 + $0x18] sm:$0xf]
      %v658 = vld [vmem:[%s650 + $0x1c] sm:$0xf]
      %v659 = vld [vmem:[%s650 + $0x20] sm:$0xf]
      %v660 = vld [vmem:[%s650 + $0x24] sm:$0xf]
      %v661 = vld [vmem:[%s650 + $0x28] sm:$0xf]
      %v662 = vld [vmem:[%s650 + $0x2c] sm:$0xf]
      %v663 = vld [vmem:[%s650 + $0x30] sm:$0xf]
      %v664 = vld [vmem:[%s650 + $0x34] sm:$0xf]
      %v665 = vld [vmem:[%s650 + $0x38] sm:$0xf]
      %v666 = vld [vmem:[%s650 + $0x3c] sm:$0xf]
      %v678 = vunpack.c.l.b16 %v639
      %v679 = vunpack.c.l.b16 %v640
      %v680 = vunpack.c.l.b16 %v641
      %v681 = vunpack.c.l.b16 %v642
      %v682 = vunpack.c.l.b16 %v643
      %v683 = vunpack.c.l.b16 %v644
      %v684 = vunpack.c.l.b16 %v645
      %v685 = vunpack.c.l.b16 %v646
      %v686 = vunpack.c.l.b16 %v647
      %v687 = vunpack.c.l.b16 %v648
      %v688 = vunpack.c.l.b16 %v649
      %v689 = vpack.c.b16 %v679, %v678
      %v690 = vpack.c.b16 %v681, %v680
      %v691 = vpack.c.b16 %v683, %v682
      %v692 = vpack.c.b16 %v685, %v684
      %v693 = vpack.c.b16 %v687, %v686
      %v694 = vpack.c.b16 %v688, %v688
      %v695 = vrot.slane %v689, 1
      %v696 = vrot.slane %v690, 1
      %v697 = vsel %vm530, %v695, %v696
      %v698 = vrot.slane %v691, 1
      %v699 = vsel %vm530, %v696, %v698
      %v700 = vrot.slane %v692, 1
      %v701 = vsel %vm530, %v698, %v700
      %v702 = vrot.slane %v693, 1
      %v703 = vsel %vm530, %v700, %v702
      %v704 = vrot.slane %v694, 1
      %v705 = vsel %vm530, %v702, %v704
      %v727 = vunpack.c.l.b16 %v651
      %v728 = vunpack.c.l.b16 %v652
      %v729 = vunpack.c.l.b16 %v653
      %v730 = vunpack.c.l.b16 %v654
      %v731 = vunpack.c.l.b16 %v655
      %v732 = vunpack.c.l.b16 %v656
      %v733 = vunpack.c.l.b16 %v657
      %v734 = vunpack.c.l.b16 %v658
      %v735 = vunpack.c.l.b16 %v659
      %v736 = vunpack.c.l.b16 %v660
      %v737 = vunpack.c.l.b16 %v661
      %v738 = vunpack.c.l.b16 %v662
      %v739 = vunpack.c.l.b16 %v663
      %v740 = vunpack.c.l.b16 %v664
      %v741 = vunpack.c.l.b16 %v665
      %v742 = vunpack.c.l.b16 %v666
      %v743 = vpack.c.b16 %v728, %v727
      %v744 = vpack.c.b16 %v730, %v729
      %v745 = vpack.c.b16 %v732, %v731
      %v746 = vpack.c.b16 %v734, %v733
      %v747 = vpack.c.b16 %v736, %v735
      %v748 = vpack.c.b16 %v738, %v737
      %v749 = vpack.c.b16 %v740, %v739
      %v750 = vpack.c.b16 %v742, %v741
      %759 = vmatpush.bf16.msra.mxu0 %v750
      %760 = vmatpush.bf16.msra.mxu0 %v749
      %761 = vmatpush.bf16.msra.mxu0 %v748
      %762 = vmatpush.bf16.msra.mxu0 %v747
      %763 = vmatpush.bf16.msra.mxu0 %v746
      %764 = vmatpush.bf16.msra.mxu0 %v745
      %765 = vmatpush.bf16.msra.mxu0 %v744
      %766 = vmatpush.bf16.msra.mxu0 %v743
      %767 = vmatmul.bf16.gmra.mxu0 %v697
      %v768 = vpop.f32.mrf.mxu0
      %v769 = vadd.f32 0.0, %v768
      %v770 = vpop.f32.mrf.mxu0
      %v771 = vadd.f32 0.0, %v770
      %772 = vmatmul.bf16.gmra.mxu0 %v699
      %v773 = vpop.f32.mrf.mxu0
      %v774 = vadd.f32 0.0, %v773
      %v775 = vpop.f32.mrf.mxu0
      %v776 = vadd.f32 0.0, %v775
      %777 = vmatmul.bf16.gmra.mxu0 %v701
      %v778 = vpop.f32.mrf.mxu0
      %v779 = vadd.f32 0.0, %v778
      %v780 = vpop.f32.mrf.mxu0
      %v781 = vadd.f32 0.0, %v780
      %782 = vmatmul.bf16.gmra.mxu0 %v703
      %v783 = vpop.f32.mrf.mxu0
      %v784 = vadd.f32 0.0, %v783
      %v785 = vpop.f32.mrf.mxu0
      %v786 = vadd.f32 0.0, %v785
      %787 = vmatmul.bf16.gmra.mxu0 %v705
      %v788 = vpop.f32.mrf.mxu0
      %v789 = vadd.f32 0.0, %v788
      %v790 = vpop.f32.mrf.mxu0
      %v791 = vadd.f32 0.0, %v790
      %792 = vdwg.mxu0
      %v793 = vadd.f32 %v629, %v769
      %v794 = vadd.f32 %v630, %v771
      %v795 = vadd.f32 %v631, %v774
      %v796 = vadd.f32 %v632, %v776
      %v797 = vadd.f32 %v633, %v779
      %v798 = vadd.f32 %v634, %v781
      %v799 = vadd.f32 %v635, %v784
      %v800 = vadd.f32 %v636, %v786
      %v801 = vadd.f32 %v637, %v789
      %v802 = vadd.f32 %v638, %v791
      %v803 = vld [vmem:[%s207 + $0x2c] sm:$0x3]
      %s804 = scalar_lea.vmem %s1, 256
      %v805 = vld [vmem:[%s804] sm:$0xf]
      %v806 = vld [vmem:[%s804 + $0x4] sm:$0xf]
      %v807 = vld [vmem:[%s804 + $0x8] sm:$0xf]
      %v808 = vld [vmem:[%s804 + $0xc] sm:$0xf]
      %v809 = vld [vmem:[%s804 + $0x10] sm:$0xf]
      %v810 = vld [vmem:[%s804 + $0x14] sm:$0xf]
      %v811 = vld [vmem:[%s804 + $0x18] sm:$0xf]
      %v812 = vld [vmem:[%s804 + $0x1c] sm:$0xf]
      %v813 = vld [vmem:[%s804 + $0x20] sm:$0xf]
      %v814 = vld [vmem:[%s804 + $0x24] sm:$0xf]
      %v815 = vld [vmem:[%s804 + $0x28] sm:$0xf]
      %v816 = vld [vmem:[%s804 + $0x2c] sm:$0xf]
      %v817 = vld [vmem:[%s804 + $0x30] sm:$0xf]
      %v818 = vld [vmem:[%s804 + $0x34] sm:$0xf]
      %v819 = vld [vmem:[%s804 + $0x38] sm:$0xf]
      %v820 = vld [vmem:[%s804 + $0x3c] sm:$0xf]
      %v822 = vunpack.c.l.b16 %v803
      %v823 = vpack.c.b16 %v822, %v822
      %vm824 = vsmask.f32 6400
      %v826 = vshrl.u32 %v689, 16
      %v828 = vrot.slane %v826, 1
      %v829 = vshll.u32 %v689, 16
      %v831 = vrot.slane %v829, 2
      %v832 = vor.u32 %v828, %v831
      %v834 = vshrl.u32 %v690, 16
      %v836 = vrot.slane %v834, 1
      %v837 = vshll.u32 %v690, 16
      %v839 = vrot.slane %v837, 2
      %v840 = vor.u32 %v836, %v839
      %v841 = vsel %vm824, %v832, %v840
      %v843 = vshrl.u32 %v691, 16
      %v845 = vrot.slane %v843, 1
      %v846 = vshll.u32 %v691, 16
      %v848 = vrot.slane %v846, 2
      %v849 = vor.u32 %v845, %v848
      %v850 = vsel %vm824, %v840, %v849
      %v852 = vshrl.u32 %v692, 16
      %v854 = vrot.slane %v852, 1
      %v855 = vshll.u32 %v692, 16
      %v857 = vrot.slane %v855, 2
      %v858 = vor.u32 %v854, %v857
      %v859 = vsel %vm824, %v849, %v858
      %v861 = vshrl.u32 %v693, 16
      %v863 = vrot.slane %v861, 1
      %v864 = vshll.u32 %v693, 16
      %v866 = vrot.slane %v864, 2
      %v867 = vor.u32 %v863, %v866
      %v868 = vsel %vm824, %v858, %v867
      %v870 = vshrl.u32 %v823, 16
      %v872 = vrot.slane %v870, 1
      %v873 = vshll.u32 %v823, 16
      %v875 = vrot.slane %v873, 2
      %v876 = vor.u32 %v872, %v875
      %v877 = vsel %vm824, %v867, %v876
      %v899 = vunpack.c.l.b16 %v805
      %v900 = vunpack.c.l.b16 %v806
      %v901 = vunpack.c.l.b16 %v807
      %v902 = vunpack.c.l.b16 %v808
      %v903 = vunpack.c.l.b16 %v809
      %v904 = vunpack.c.l.b16 %v810
      %v905 = vunpack.c.l.b16 %v811
      %v906 = vunpack.c.l.b16 %v812
      %v907 = vunpack.c.l.b16 %v813
      %v908 = vunpack.c.l.b16 %v814
      %v909 = vunpack.c.l.b16 %v815
      %v910 = vunpack.c.l.b16 %v816
      %v911 = vunpack.c.l.b16 %v817
      %v912 = vunpack.c.l.b16 %v818
      %v913 = vunpack.c.l.b16 %v819
      %v914 = vunpack.c.l.b16 %v820
      %v915 = vpack.c.b16 %v900, %v899
      %v916 = vpack.c.b16 %v902, %v901
      %v917 = vpack.c.b16 %v904, %v903
      %v918 = vpack.c.b16 %v906, %v905
      %v919 = vpack.c.b16 %v908, %v907
      %v920 = vpack.c.b16 %v910, %v909
      %v921 = vpack.c.b16 %v912, %v911
      %v922 = vpack.c.b16 %v914, %v913
      %931 = vmatpush.bf16.msra.mxu0 %v922
      %932 = vmatpush.bf16.msra.mxu0 %v921
      %933 = vmatpush.bf16.msra.mxu0 %v920
      %934 = vmatpush.bf16.msra.mxu0 %v919
      %935 = vmatpush.bf16.msra.mxu0 %v918
      %936 = vmatpush.bf16.msra.mxu0 %v917
      %937 = vmatpush.bf16.msra.mxu0 %v916
      %938 = vmatpush.bf16.msra.mxu0 %v915
      %939 = vmatmul.bf16.gmra.mxu0 %v841
      %v940 = vpop.f32.mrf.mxu0
      %v941 = vadd.f32 0.0, %v940
      %v942 = vpop.f32.mrf.mxu0
      %v943 = vadd.f32 0.0, %v942
      %944 = vmatmul.bf16.gmra.mxu0 %v850
      %v945 = vpop.f32.mrf.mxu0
      %v946 = vadd.f32 0.0, %v945
      %v947 = vpop.f32.mrf.mxu0
      %v948 = vadd.f32 0.0, %v947
      %949 = vmatmul.bf16.gmra.mxu0 %v859
      %v950 = vpop.f32.mrf.mxu0
      %v951 = vadd.f32 0.0, %v950
      %v952 = vpop.f32.mrf.mxu0
      %v953 = vadd.f32 0.0, %v952
      %954 = vmatmul.bf16.gmra.mxu0 %v868
      %v955 = vpop.f32.mrf.mxu0
      %v956 = vadd.f32 0.0, %v955
      %v957 = vpop.f32.mrf.mxu0
      %v958 = vadd.f32 0.0, %v957
      %959 = vmatmul.bf16.gmra.mxu0 %v877
      %v960 = vpop.f32.mrf.mxu0
      %v961 = vadd.f32 0.0, %v960
      %v962 = vpop.f32.mrf.mxu0
      %v963 = vadd.f32 0.0, %v962
      %964 = vdwg.mxu0
      %v965 = vadd.f32 %v793, %v941
      %v966 = vadd.f32 %v794, %v943
      %v967 = vadd.f32 %v795, %v946
      %v968 = vadd.f32 %v796, %v948
      %v969 = vadd.f32 %v797, %v951
      %v970 = vadd.f32 %v798, %v953
      %v971 = vadd.f32 %v799, %v956
      %v972 = vadd.f32 %v800, %v958
      %v973 = vadd.f32 %v801, %v961
      %v974 = vadd.f32 %v802, %v963
      %v975 = vld [vmem:[%s207 + $0x4] sm:$0xc]
      %s976 = scalar_lea.vmem %s1, 320
      %v977 = vld [vmem:[%s976] sm:$0xf]
      %v978 = vld [vmem:[%s976 + $0x4] sm:$0xf]
      %v979 = vld [vmem:[%s976 + $0x8] sm:$0xf]
      %v980 = vld [vmem:[%s976 + $0xc] sm:$0xf]
      %v981 = vld [vmem:[%s976 + $0x10] sm:$0xf]
      %v982 = vld [vmem:[%s976 + $0x14] sm:$0xf]
      %v983 = vld [vmem:[%s976 + $0x18] sm:$0xf]
      %v984 = vld [vmem:[%s976 + $0x1c] sm:$0xf]
      %v985 = vld [vmem:[%s976 + $0x20] sm:$0xf]
      %v986 = vld [vmem:[%s976 + $0x24] sm:$0xf]
      %v987 = vld [vmem:[%s976 + $0x28] sm:$0xf]
      %v988 = vld [vmem:[%s976 + $0x2c] sm:$0xf]
      %v989 = vld [vmem:[%s976 + $0x30] sm:$0xf]
      %v990 = vld [vmem:[%s976 + $0x34] sm:$0xf]
      %v991 = vld [vmem:[%s976 + $0x38] sm:$0xf]
      %v992 = vld [vmem:[%s976 + $0x3c] sm:$0xf]
      %v994 = vunpack.c.l.b16 %v975
      %v995 = vpack.c.b16 %v679, %v994
      %vm996 = vcmask 1045504
      %v997 = vrot.slane %v995, 2
      %v998 = vrot.slane %v690, 2
      %v999 = vsel %vm996, %v997, %v998
      %v1000 = vrot.slane %v691, 2
      %v1001 = vsel %vm996, %v998, %v1000
      %v1002 = vrot.slane %v692, 2
      %v1003 = vsel %vm996, %v1000, %v1002
      %v1004 = vrot.slane %v693, 2
      %v1005 = vsel %vm996, %v1002, %v1004
      %v1006 = vrot.slane %v823, 2
      %v1007 = vsel %vm996, %v1004, %v1006
      %v1029 = vunpack.c.l.b16 %v977
      %v1030 = vunpack.c.l.b16 %v978
      %v1031 = vunpack.c.l.b16 %v979
      %v1032 = vunpack.c.l.b16 %v980
      %v1033 = vunpack.c.l.b16 %v981
      %v1034 = vunpack.c.l.b16 %v982
      %v1035 = vunpack.c.l.b16 %v983
      %v1036 = vunpack.c.l.b16 %v984
      %v1037 = vunpack.c.l.b16 %v985
      %v1038 = vunpack.c.l.b16 %v986
      %v1039 = vunpack.c.l.b16 %v987
      %v1040 = vunpack.c.l.b16 %v988
      %v1041 = vunpack.c.l.b16 %v989
      %v1042 = vunpack.c.l.b16 %v990
      %v1043 = vunpack.c.l.b16 %v991
      %v1044 = vunpack.c.l.b16 %v992
      %v1045 = vpack.c.b16 %v1030, %v1029
      %v1046 = vpack.c.b16 %v1032, %v1031
      %v1047 = vpack.c.b16 %v1034, %v1033
      %v1048 = vpack.c.b16 %v1036, %v1035
      %v1049 = vpack.c.b16 %v1038, %v1037
      %v1050 = vpack.c.b16 %v1040, %v1039
      %v1051 = vpack.c.b16 %v1042, %v1041
      %v1052 = vpack.c.b16 %v1044, %v1043
      %1061 = vmatpush.bf16.msra.mxu0 %v1052
      %1062 = vmatpush.bf16.msra.mxu0 %v1051
      %1063 = vmatpush.bf16.msra.mxu0 %v1050
      %1064 = vmatpush.bf16.msra.mxu0 %v1049
      %1065 = vmatpush.bf16.msra.mxu0 %v1048
      %1066 = vmatpush.bf16.msra.mxu0 %v1047
      %1067 = vmatpush.bf16.msra.mxu0 %v1046
      %1068 = vmatpush.bf16.msra.mxu0 %v1045
      %1069 = vmatmul.bf16.gmra.mxu0 %v999
      %v1070 = vpop.f32.mrf.mxu0
      %v1071 = vadd.f32 0.0, %v1070
      %v1072 = vpop.f32.mrf.mxu0
      %v1073 = vadd.f32 0.0, %v1072
      %1074 = vmatmul.bf16.gmra.mxu0 %v1001
      %v1075 = vpop.f32.mrf.mxu0
      %v1076 = vadd.f32 0.0, %v1075
      %v1077 = vpop.f32.mrf.mxu0
      %v1078 = vadd.f32 0.0, %v1077
      %1079 = vmatmul.bf16.gmra.mxu0 %v1003
      %v1080 = vpop.f32.mrf.mxu0
      %v1081 = vadd.f32 0.0, %v1080
      %v1082 = vpop.f32.mrf.mxu0
      %v1083 = vadd.f32 0.0, %v1082
      %1084 = vmatmul.bf16.gmra.mxu0 %v1005
      %v1085 = vpop.f32.mrf.mxu0
      %v1086 = vadd.f32 0.0, %v1085
      %v1087 = vpop.f32.mrf.mxu0
      %v1088 = vadd.f32 0.0, %v1087
      %1089 = vmatmul.bf16.gmra.mxu0 %v1007
      %v1090 = vpop.f32.mrf.mxu0
      %v1091 = vadd.f32 0.0, %v1090
      %v1092 = vpop.f32.mrf.mxu0
      %v1093 = vadd.f32 0.0, %v1092
      %1094 = vdwg.mxu0
      %v1095 = vadd.f32 %v965, %v1071
      %v1096 = vadd.f32 %v966, %v1073
      %v1097 = vadd.f32 %v967, %v1076
      %v1098 = vadd.f32 %v968, %v1078
      %v1099 = vadd.f32 %v969, %v1081
      %v1100 = vadd.f32 %v970, %v1083
      %v1101 = vadd.f32 %v971, %v1086
      %v1102 = vadd.f32 %v972, %v1088
      %v1103 = vadd.f32 %v973, %v1091
      %v1104 = vadd.f32 %v974, %v1093
      %v1105 = vld [vmem:[%s207 + $0x8] sm:$0xc]
      %v1106 = vld [vmem:[%s207 + $0xc] sm:$0xf]
      %v1107 = vld [vmem:[%s207 + $0x10] sm:$0xf]
      %v1108 = vld [vmem:[%s207 + $0x14] sm:$0xf]
      %v1109 = vld [vmem:[%s207 + $0x18] sm:$0xf]
      %v1110 = vld [vmem:[%s207 + $0x1c] sm:$0xf]
      %v1111 = vld [vmem:[%s207 + $0x20] sm:$0xf]
      %v1112 = vld [vmem:[%s207 + $0x24] sm:$0xf]
      %v1113 = vld [vmem:[%s207 + $0x28] sm:$0xf]
      %v1114 = vld [vmem:[%s207 + $0x2c] sm:$0xf]
      %v1115 = vld [vmem:[%s207 + $0x30] sm:$0x3]
      %s1116 = scalar_lea.vmem %s1, 384
      %v1117 = vld [vmem:[%s1116] sm:$0xf]
      %v1118 = vld [vmem:[%s1116 + $0x4] sm:$0xf]
      %v1119 = vld [vmem:[%s1116 + $0x8] sm:$0xf]
      %v1120 = vld [vmem:[%s1116 + $0xc] sm:$0xf]
      %v1121 = vld [vmem:[%s1116 + $0x10] sm:$0xf]
      %v1122 = vld [vmem:[%s1116 + $0x14] sm:$0xf]
      %v1123 = vld [vmem:[%s1116 + $0x18] sm:$0xf]
      %v1124 = vld [vmem:[%s1116 + $0x1c] sm:$0xf]
      %v1125 = vld [vmem:[%s1116 + $0x20] sm:$0xf]
      %v1126 = vld [vmem:[%s1116 + $0x24] sm:$0xf]
      %v1127 = vld [vmem:[%s1116 + $0x28] sm:$0xf]
      %v1128 = vld [vmem:[%s1116 + $0x2c] sm:$0xf]
      %v1129 = vld [vmem:[%s1116 + $0x30] sm:$0xf]
      %v1130 = vld [vmem:[%s1116 + $0x34] sm:$0xf]
      %v1131 = vld [vmem:[%s1116 + $0x38] sm:$0xf]
      %v1132 = vld [vmem:[%s1116 + $0x3c] sm:$0xf]
      %v1144 = vunpack.c.l.b16 %v1105
      %v1145 = vunpack.c.l.b16 %v1106
      %v1146 = vunpack.c.l.b16 %v1107
      %v1147 = vunpack.c.l.b16 %v1108
      %v1148 = vunpack.c.l.b16 %v1109
      %v1149 = vunpack.c.l.b16 %v1110
      %v1150 = vunpack.c.l.b16 %v1111
      %v1151 = vunpack.c.l.b16 %v1112
      %v1152 = vunpack.c.l.b16 %v1113
      %v1153 = vunpack.c.l.b16 %v1114
      %v1154 = vunpack.c.l.b16 %v1115
      %v1155 = vpack.c.b16 %v1145, %v1144
      %v1156 = vpack.c.b16 %v1147, %v1146
      %v1157 = vpack.c.b16 %v1149, %v1148
      %v1158 = vpack.c.b16 %v1151, %v1150
      %v1159 = vpack.c.b16 %v1153, %v1152
      %v1160 = vpack.c.b16 %v1154, %v1154
      %v1161 = vrot.slane %v1155, 2
      %v1162 = vrot.slane %v1156, 2
      %v1163 = vsel %vm996, %v1161, %v1162
      %v1164 = vrot.slane %v1157, 2
      %v1165 = vsel %vm996, %v1162, %v1164
      %v1166 = vrot.slane %v1158, 2
      %v1167 = vsel %vm996, %v1164, %v1166
      %v1168 = vrot.slane %v1159, 2
      %v1169 = vsel %vm996, %v1166, %v1168
      %v1170 = vrot.slane %v1160, 2
      %v1171 = vsel %vm996, %v1168, %v1170
      %v1193 = vunpack.c.l.b16 %v1117
      %v1194 = vunpack.c.l.b16 %v1118
      %v1195 = vunpack.c.l.b16 %v1119
      %v1196 = vunpack.c.l.b16 %v1120
      %v1197 = vunpack.c.l.b16 %v1121
      %v1198 = vunpack.c.l.b16 %v1122
      %v1199 = vunpack.c.l.b16 %v1123
      %v1200 = vunpack.c.l.b16 %v1124
      %v1201 = vunpack.c.l.b16 %v1125
      %v1202 = vunpack.c.l.b16 %v1126
      %v1203 = vunpack.c.l.b16 %v1127
      %v1204 = vunpack.c.l.b16 %v1128
      %v1205 = vunpack.c.l.b16 %v1129
      %v1206 = vunpack.c.l.b16 %v1130
      %v1207 = vunpack.c.l.b16 %v1131
      %v1208 = vunpack.c.l.b16 %v1132
      %v1209 = vpack.c.b16 %v1194, %v1193
      %v1210 = vpack.c.b16 %v1196, %v1195
      %v1211 = vpack.c.b16 %v1198, %v1197
      %v1212 = vpack.c.b16 %v1200, %v1199
      %v1213 = vpack.c.b16 %v1202, %v1201
      %v1214 = vpack.c.b16 %v1204, %v1203
      %v1215 = vpack.c.b16 %v1206, %v1205
      %v1216 = vpack.c.b16 %v1208, %v1207
      %1225 = vmatpush.bf16.msra.mxu0 %v1216
      %1226 = vmatpush.bf16.msra.mxu0 %v1215
      %1227 = vmatpush.bf16.msra.mxu0 %v1214
      %1228 = vmatpush.bf16.msra.mxu0 %v1213
      %1229 = vmatpush.bf16.msra.mxu0 %v1212
      %1230 = vmatpush.bf16.msra.mxu0 %v1211
      %1231 = vmatpush.bf16.msra.mxu0 %v1210
      %1232 = vmatpush.bf16.msra.mxu0 %v1209
      %1233 = vmatmul.bf16.gmra.mxu0 %v1163
      %v1234 = vpop.f32.mrf.mxu0
      %v1235 = vadd.f32 0.0, %v1234
      %v1236 = vpop.f32.mrf.mxu0
      %v1237 = vadd.f32 0.0, %v1236
      %1238 = vmatmul.bf16.gmra.mxu0 %v1165
      %v1239 = vpop.f32.mrf.mxu0
      %v1240 = vadd.f32 0.0, %v1239
      %v1241 = vpop.f32.mrf.mxu0
      %v1242 = vadd.f32 0.0, %v1241
      %1243 = vmatmul.bf16.gmra.mxu0 %v1167
      %v1244 = vpop.f32.mrf.mxu0
      %v1245 = vadd.f32 0.0, %v1244
      %v1246 = vpop.f32.mrf.mxu0
      %v1247 = vadd.f32 0.0, %v1246
      %1248 = vmatmul.bf16.gmra.mxu0 %v1169
      %v1249 = vpop.f32.mrf.mxu0
      %v1250 = vadd.f32 0.0, %v1249
      %v1251 = vpop.f32.mrf.mxu0
      %v1252 = vadd.f32 0.0, %v1251
      %1253 = vmatmul.bf16.gmra.mxu0 %v1171
      %v1254 = vpop.f32.mrf.mxu0
      %v1255 = vadd.f32 0.0, %v1254
      %v1256 = vpop.f32.mrf.mxu0
      %v1257 = vadd.f32 0.0, %v1256
      %1258 = vdwg.mxu0
      %v1259 = vadd.f32 %v1095, %v1235
      %v1260 = vadd.f32 %v1096, %v1237
      %v1261 = vadd.f32 %v1097, %v1240
      %v1262 = vadd.f32 %v1098, %v1242
      %v1263 = vadd.f32 %v1099, %v1245
      %v1264 = vadd.f32 %v1100, %v1247
      %v1265 = vadd.f32 %v1101, %v1250
      %v1266 = vadd.f32 %v1102, %v1252
      %v1267 = vadd.f32 %v1103, %v1255
      %v1268 = vadd.f32 %v1104, %v1257
      %v1269 = vld [vmem:[%s207 + $0x30] sm:$0x7]
      %s1270 = scalar_lea.vmem %s1, 448
      %v1271 = vld [vmem:[%s1270] sm:$0xf]
      %v1272 = vld [vmem:[%s1270 + $0x4] sm:$0xf]
      %v1273 = vld [vmem:[%s1270 + $0x8] sm:$0xf]
      %v1274 = vld [vmem:[%s1270 + $0xc] sm:$0xf]
      %v1275 = vld [vmem:[%s1270 + $0x10] sm:$0xf]
      %v1276 = vld [vmem:[%s1270 + $0x14] sm:$0xf]
      %v1277 = vld [vmem:[%s1270 + $0x18] sm:$0xf]
      %v1278 = vld [vmem:[%s1270 + $0x1c] sm:$0xf]
      %v1279 = vld [vmem:[%s1270 + $0x20] sm:$0xf]
      %v1280 = vld [vmem:[%s1270 + $0x24] sm:$0xf]
      %v1281 = vld [vmem:[%s1270 + $0x28] sm:$0xf]
      %v1282 = vld [vmem:[%s1270 + $0x2c] sm:$0xf]
      %v1283 = vld [vmem:[%s1270 + $0x30] sm:$0xf]
      %v1284 = vld [vmem:[%s1270 + $0x34] sm:$0xf]
      %v1285 = vld [vmem:[%s1270 + $0x38] sm:$0xf]
      %v1286 = vld [vmem:[%s1270 + $0x3c] sm:$0xf]
      %v1288 = vunpack.c.l.b16 %v1269
      %v1289 = vpack.c.b16 %v1288, %v1288
      %vm1290 = vsmask.f32 5376
      %v1292 = vshrl.u32 %v1155, 16
      %v1294 = vrot.slane %v1292, 2
      %v1295 = vshll.u32 %v1155, 16
      %v1297 = vrot.slane %v1295, 3
      %v1298 = vor.u32 %v1294, %v1297
      %v1300 = vshrl.u32 %v1156, 16
      %v1302 = vrot.slane %v1300, 2
      %v1303 = vshll.u32 %v1156, 16
      %v1305 = vrot.slane %v1303, 3
      %v1306 = vor.u32 %v1302, %v1305
      %v1307 = vsel %vm1290, %v1298, %v1306
      %v1309 = vshrl.u32 %v1157, 16
      %v1311 = vrot.slane %v1309, 2
      %v1312 = vshll.u32 %v1157, 16
      %v1314 = vrot.slane %v1312, 3
      %v1315 = vor.u32 %v1311, %v1314
      %v1316 = vsel %vm1290, %v1306, %v1315
      %v1318 = vshrl.u32 %v1158, 16
      %v1320 = vrot.slane %v1318, 2
      %v1321 = vshll.u32 %v1158, 16
      %v1323 = vrot.slane %v1321, 3
      %v1324 = vor.u32 %v1320, %v1323
      %v1325 = vsel %vm1290, %v1315, %v1324
      %v1327 = vshrl.u32 %v1159, 16
      %v1329 = vrot.slane %v1327, 2
      %v1330 = vshll.u32 %v1159, 16
      %v1332 = vrot.slane %v1330, 3
      %v1333 = vor.u32 %v1329, %v1332
      %v1334 = vsel %vm1290, %v1324, %v1333
      %v1336 = vshrl.u32 %v1289, 16
      %v1338 = vrot.slane %v1336, 2
      %v1339 = vshll.u32 %v1289, 16
      %v1341 = vrot.slane %v1339, 3
      %v1342 = vor.u32 %v1338, %v1341
      %v1343 = vsel %vm1290, %v1333, %v1342
      %v1365 = vunpack.c.l.b16 %v1271
      %v1366 = vunpack.c.l.b16 %v1272
      %v1367 = vunpack.c.l.b16 %v1273
      %v1368 = vunpack.c.l.b16 %v1274
      %v1369 = vunpack.c.l.b16 %v1275
      %v1370 = vunpack.c.l.b16 %v1276
      %v1371 = vunpack.c.l.b16 %v1277
      %v1372 = vunpack.c.l.b16 %v1278
      %v1373 = vunpack.c.l.b16 %v1279
      %v1374 = vunpack.c.l.b16 %v1280
      %v1375 = vunpack.c.l.b16 %v1281
      %v1376 = vunpack.c.l.b16 %v1282
      %v1377 = vunpack.c.l.b16 %v1283
      %v1378 = vunpack.c.l.b16 %v1284
      %v1379 = vunpack.c.l.b16 %v1285
      %v1380 = vunpack.c.l.b16 %v1286
      %v1381 = vpack.c.b16 %v1366, %v1365
      %v1382 = vpack.c.b16 %v1368, %v1367
      %v1383 = vpack.c.b16 %v1370, %v1369
      %v1384 = vpack.c.b16 %v1372, %v1371
      %v1385 = vpack.c.b16 %v1374, %v1373
      %v1386 = vpack.c.b16 %v1376, %v1375
      %v1387 = vpack.c.b16 %v1378, %v1377
      %v1388 = vpack.c.b16 %v1380, %v1379
      %1397 = vmatpush.bf16.msra.mxu0 %v1388
      %1398 = vmatpush.bf16.msra.mxu0 %v1387
      %1399 = vmatpush.bf16.msra.mxu0 %v1386
      %1400 = vmatpush.bf16.msra.mxu0 %v1385
      %1401 = vmatpush.bf16.msra.mxu0 %v1384
      %1402 = vmatpush.bf16.msra.mxu0 %v1383
      %1403 = vmatpush.bf16.msra.mxu0 %v1382
      %1404 = vmatpush.bf16.msra.mxu0 %v1381
      %1405 = vmatmul.bf16.gmra.mxu0 %v1307
      %v1406 = vpop.f32.mrf.mxu0
      %v1407 = vadd.f32 0.0, %v1406
      %v1408 = vpop.f32.mrf.mxu0
      %v1409 = vadd.f32 0.0, %v1408
      %1410 = vmatmul.bf16.gmra.mxu0 %v1316
      %v1411 = vpop.f32.mrf.mxu0
      %v1412 = vadd.f32 0.0, %v1411
      %v1413 = vpop.f32.mrf.mxu0
      %v1414 = vadd.f32 0.0, %v1413
      %1415 = vmatmul.bf16.gmra.mxu0 %v1325
      %v1416 = vpop.f32.mrf.mxu0
      %v1417 = vadd.f32 0.0, %v1416
      %v1418 = vpop.f32.mrf.mxu0
      %v1419 = vadd.f32 0.0, %v1418
      %1420 = vmatmul.bf16.gmra.mxu0 %v1334
      %v1421 = vpop.f32.mrf.mxu0
      %v1422 = vadd.f32 0.0, %v1421
      %v1423 = vpop.f32.mrf.mxu0
      %v1424 = vadd.f32 0.0, %v1423
      %1425 = vmatmul.bf16.gmra.mxu0 %v1343
      %v1426 = vpop.f32.mrf.mxu0
      %v1427 = vadd.f32 0.0, %v1426
      %v1428 = vpop.f32.mrf.mxu0
      %v1429 = vadd.f32 0.0, %v1428
      %1430 = vdwg.mxu0
      %v1431 = vadd.f32 %v1259, %v1407
      %v1432 = vadd.f32 %v1260, %v1409
      %v1433 = vadd.f32 %v1261, %v1412
      %v1434 = vadd.f32 %v1262, %v1414
      %v1435 = vadd.f32 %v1263, %v1417
      %v1436 = vadd.f32 %v1264, %v1419
      %v1437 = vadd.f32 %v1265, %v1422
      %v1438 = vadd.f32 %v1266, %v1424
      %v1439 = vadd.f32 %v1267, %v1427
      %v1440 = vadd.f32 %v1268, %v1429
      %v1441 = vld [vmem:[%s207 + $0x8] sm:$0x8]
      %s1442 = scalar_lea.vmem %s1, 512
      %v1443 = vld [vmem:[%s1442] sm:$0xf]
      %v1444 = vld [vmem:[%s1442 + $0x4] sm:$0xf]
      %v1445 = vld [vmem:[%s1442 + $0x8] sm:$0xf]
      %v1446 = vld [vmem:[%s1442 + $0xc] sm:$0xf]
      %v1447 = vld [vmem:[%s1442 + $0x10] sm:$0xf]
      %v1448 = vld [vmem:[%s1442 + $0x14] sm:$0xf]
      %v1449 = vld [vmem:[%s1442 + $0x18] sm:$0xf]
      %v1450 = vld [vmem:[%s1442 + $0x1c] sm:$0xf]
      %v1451 = vld [vmem:[%s1442 + $0x20] sm:$0xf]
      %v1452 = vld [vmem:[%s1442 + $0x24] sm:$0xf]
      %v1453 = vld [vmem:[%s1442 + $0x28] sm:$0xf]
      %v1454 = vld [vmem:[%s1442 + $0x2c] sm:$0xf]
      %v1455 = vld [vmem:[%s1442 + $0x30] sm:$0xf]
      %v1456 = vld [vmem:[%s1442 + $0x34] sm:$0xf]
      %v1457 = vld [vmem:[%s1442 + $0x38] sm:$0xf]
      %v1458 = vld [vmem:[%s1442 + $0x3c] sm:$0xf]
      %v1460 = vunpack.c.l.b16 %v1441
      %v1461 = vpack.c.b16 %v1145, %v1460
      %vm1462 = vcmask 1044480
      %v1463 = vrot.slane %v1461, 3
      %v1464 = vrot.slane %v1156, 3
      %v1465 = vsel %vm1462, %v1463, %v1464
      %v1466 = vrot.slane %v1157, 3
      %v1467 = vsel %vm1462, %v1464, %v1466
      %v1468 = vrot.slane %v1158, 3
      %v1469 = vsel %vm1462, %v1466, %v1468
      %v1470 = vrot.slane %v1159, 3
      %v1471 = vsel %vm1462, %v1468, %v1470
      %v1472 = vrot.slane %v1289, 3
      %v1473 = vsel %vm1462, %v1470, %v1472
      %v1495 = vunpack.c.l.b16 %v1443
      %v1496 = vunpack.c.l.b16 %v1444
      %v1497 = vunpack.c.l.b16 %v1445
      %v1498 = vunpack.c.l.b16 %v1446
      %v1499 = vunpack.c.l.b16 %v1447
      %v1500 = vunpack.c.l.b16 %v1448
      %v1501 = vunpack.c.l.b16 %v1449
      %v1502 = vunpack.c.l.b16 %v1450
      %v1503 = vunpack.c.l.b16 %v1451
      %v1504 = vunpack.c.l.b16 %v1452
      %v1505 = vunpack.c.l.b16 %v1453
      %v1506 = vunpack.c.l.b16 %v1454
      %v1507 = vunpack.c.l.b16 %v1455
      %v1508 = vunpack.c.l.b16 %v1456
      %v1509 = vunpack.c.l.b16 %v1457
      %v1510 = vunpack.c.l.b16 %v1458
      %v1511 = vpack.c.b16 %v1496, %v1495
      %v1512 = vpack.c.b16 %v1498, %v1497
      %v1513 = vpack.c.b16 %v1500, %v1499
      %v1514 = vpack.c.b16 %v1502, %v1501
      %v1515 = vpack.c.b16 %v1504, %v1503
      %v1516 = vpack.c.b16 %v1506, %v1505
      %v1517 = vpack.c.b16 %v1508, %v1507
      %v1518 = vpack.c.b16 %v1510, %v1509
      %1527 = vmatpush.bf16.msra.mxu0 %v1518
      %1528 = vmatpush.bf16.msra.mxu0 %v1517
      %1529 = vmatpush.bf16.msra.mxu0 %v1516
      %1530 = vmatpush.bf16.msra.mxu0 %v1515
      %1531 = vmatpush.bf16.msra.mxu0 %v1514
      %1532 = vmatpush.bf16.msra.mxu0 %v1513
      %1533 = vmatpush.bf16.msra.mxu0 %v1512
      %1534 = vmatpush.bf16.msra.mxu0 %v1511
      %1535 = vmatmul.bf16.gmra.mxu0 %v1465
      %v1536 = vpop.f32.mrf.mxu0
      %v1537 = vadd.f32 0.0, %v1536
      %v1538 = vpop.f32.mrf.mxu0
      %v1539 = vadd.f32 0.0, %v1538
      %1540 = vmatmul.bf16.gmra.mxu0 %v1467
      %v1541 = vpop.f32.mrf.mxu0
      %v1542 = vadd.f32 0.0, %v1541
      %v1543 = vpop.f32.mrf.mxu0
      %v1544 = vadd.f32 0.0, %v1543
      %1545 = vmatmul.bf16.gmra.mxu0 %v1469
      %v1546 = vpop.f32.mrf.mxu0
      %v1547 = vadd.f32 0.0, %v1546
      %v1548 = vpop.f32.mrf.mxu0
      %v1549 = vadd.f32 0.0, %v1548
      %1550 = vmatmul.bf16.gmra.mxu0 %v1471
      %v1551 = vpop.f32.mrf.mxu0
      %v1552 = vadd.f32 0.0, %v1551
      %v1553 = vpop.f32.mrf.mxu0
      %v1554 = vadd.f32 0.0, %v1553
      %1555 = vmatmul.bf16.gmra.mxu0 %v1473
      %v1556 = vpop.f32.mrf.mxu0
      %v1557 = vadd.f32 0.0, %v1556
      %v1558 = vpop.f32.mrf.mxu0
      %v1559 = vadd.f32 0.0, %v1558
      %1560 = vdwg.mxu0
      %v1561 = vadd.f32 %v1431, %v1537
      %v1562 = vadd.f32 %v1432, %v1539
      %v1563 = vadd.f32 %v1433, %v1542
      %v1564 = vadd.f32 %v1434, %v1544
      %v1565 = vadd.f32 %v1435, %v1547
      %v1566 = vadd.f32 %v1436, %v1549
      %v1567 = vadd.f32 %v1437, %v1552
      %v1568 = vadd.f32 %v1438, %v1554
      %v1569 = vadd.f32 %v1439, %v1557
      %v1570 = vadd.f32 %v1440, %v1559
      %v1571 = vld [vmem:[%s212] sm:$0xf]
      %v1572 = vld [vmem:[%s212 + $0x4] sm:$0xf]
      %v1573 = vld [vmem:[%s212 + $0x8] sm:$0xf]
      %v1574 = vld [vmem:[%s212 + $0xc] sm:$0xf]
      %v1575 = vld [vmem:[%s212 + $0x10] sm:$0xf]
      %v1576 = vld [vmem:[%s212 + $0x14] sm:$0xf]
      %v1577 = vld [vmem:[%s212 + $0x18] sm:$0xf]
      %v1578 = vld [vmem:[%s212 + $0x1c] sm:$0xf]
      %v1579 = vld [vmem:[%s212 + $0x20] sm:$0xf]
      %v1580 = vld [vmem:[%s212 + $0x24] sm:$0xf]
      %v1581 = vld [vmem:[%s3] sm:$0xf]
      %v1582 = vld [vmem:[%s3 + $0x4] sm:$0xf]
      %v1583 = vld [vmem:[%s3 + $0x8] sm:$0xf]
      %v1584 = vld [vmem:[%s3 + $0xc] sm:$0xf]
      %v1585 = vld [vmem:[%s3 + $0x10] sm:$0xf]
      %v1586 = vld [vmem:[%s3 + $0x14] sm:$0xf]
      %v1587 = vld [vmem:[%s3 + $0x18] sm:$0xf]
      %v1588 = vld [vmem:[%s3 + $0x1c] sm:$0xf]
      %v1589 = vld [vmem:[%s3 + $0x20] sm:$0xf]
      %v1590 = vld [vmem:[%s3 + $0x24] sm:$0xf]
      %v1591 = vld [vmem:[%s3 + $0x28] sm:$0xf]
      %v1592 = vld [vmem:[%s3 + $0x2c] sm:$0xf]
      %v1593 = vld [vmem:[%s3 + $0x30] sm:$0xf]
      %v1594 = vld [vmem:[%s3 + $0x34] sm:$0xf]
      %v1595 = vld [vmem:[%s3 + $0x38] sm:$0xf]
      %v1596 = vld [vmem:[%s3 + $0x3c] sm:$0xf]
      %v1607 = vunpack.c.l.b16 %v1571
      %v1608 = vunpack.c.l.b16 %v1572
      %v1609 = vunpack.c.l.b16 %v1573
      %v1610 = vunpack.c.l.b16 %v1574
      %v1611 = vunpack.c.l.b16 %v1575
      %v1612 = vunpack.c.l.b16 %v1576
      %v1613 = vunpack.c.l.b16 %v1577
      %v1614 = vunpack.c.l.b16 %v1578
      %v1615 = vunpack.c.l.b16 %v1579
      %v1616 = vunpack.c.l.b16 %v1580
      %v1617 = vpack.c.b16 %v1608, %v1607
      %v1618 = vpack.c.b16 %v1610, %v1609
      %v1619 = vpack.c.b16 %v1612, %v1611
      %v1620 = vpack.c.b16 %v1614, %v1613
      %v1621 = vpack.c.b16 %v1616, %v1615
      %v1643 = vunpack.c.l.b16 %v1581
      %v1644 = vunpack.c.l.b16 %v1582
      %v1645 = vunpack.c.l.b16 %v1583
      %v1646 = vunpack.c.l.b16 %v1584
      %v1647 = vunpack.c.l.b16 %v1585
      %v1648 = vunpack.c.l.b16 %v1586
      %v1649 = vunpack.c.l.b16 %v1587
      %v1650 = vunpack.c.l.b16 %v1588
      %v1651 = vunpack.c.l.b16 %v1589
      %v1652 = vunpack.c.l.b16 %v1590
      %v1653 = vunpack.c.l.b16 %v1591
      %v1654 = vunpack.c.l.b16 %v1592
      %v1655 = vunpack.c.l.b16 %v1593
      %v1656 = vunpack.c.l.b16 %v1594
      %v1657 = vunpack.c.l.b16 %v1595
      %v1658 = vunpack.c.l.b16 %v1596
      %v1659 = vpack.c.b16 %v1644, %v1643
      %v1660 = vpack.c.b16 %v1646, %v1645
      %v1661 = vpack.c.b16 %v1648, %v1647
      %v1662 = vpack.c.b16 %v1650, %v1649
      %v1663 = vpack.c.b16 %v1652, %v1651
      %v1664 = vpack.c.b16 %v1654, %v1653
      %v1665 = vpack.c.b16 %v1656, %v1655
      %v1666 = vpack.c.b16 %v1658, %v1657
      %1675 = vmatpush.bf16.msra.mxu0 %v1666
      %1676 = vmatpush.bf16.msra.mxu0 %v1665
      %1677 = vmatpush.bf16.msra.mxu0 %v1664
      %1678 = vmatpush.bf16.msra.mxu0 %v1663
      %1679 = vmatpush.bf16.msra.mxu0 %v1662
      %1680 = vmatpush.bf16.msra.mxu0 %v1661
      %1681 = vmatpush.bf16.msra.mxu0 %v1660
      %1682 = vmatpush.bf16.msra.mxu0 %v1659
      %1683 = vmatmul.bf16.gmra.mxu0 %v1617
      %v1684 = vpop.f32.mrf.mxu0
      %v1685 = vadd.f32 0.0, %v1684
      %v1686 = vpop.f32.mrf.mxu0
      %v1687 = vadd.f32 0.0, %v1686
      %1688 = vmatmul.bf16.gmra.mxu0 %v1618
      %v1689 = vpop.f32.mrf.mxu0
      %v1690 = vadd.f32 0.0, %v1689
      %v1691 = vpop.f32.mrf.mxu0
      %v1692 = vadd.f32 0.0, %v1691
      %1693 = vmatmul.bf16.gmra.mxu0 %v1619
      %v1694 = vpop.f32.mrf.mxu0
      %v1695 = vadd.f32 0.0, %v1694
      %v1696 = vpop.f32.mrf.mxu0
      %v1697 = vadd.f32 0.0, %v1696
      %1698 = vmatmul.bf16.gmra.mxu0 %v1620
      %v1699 = vpop.f32.mrf.mxu0
      %v1700 = vadd.f32 0.0, %v1699
      %v1701 = vpop.f32.mrf.mxu0
      %v1702 = vadd.f32 0.0, %v1701
      %1703 = vmatmul.bf16.gmra.mxu0 %v1621
      %v1704 = vpop.f32.mrf.mxu0
      %v1705 = vadd.f32 0.0, %v1704
      %v1706 = vpop.f32.mrf.mxu0
      %v1707 = vadd.f32 0.0, %v1706
      %1708 = vdwg.mxu0
      %v1709 = vadd.f32 %v1561, %v1685
      %v1710 = vadd.f32 %v1562, %v1687
      %v1711 = vadd.f32 %v1563, %v1690
      %v1712 = vadd.f32 %v1564, %v1692
      %v1713 = vadd.f32 %v1565, %v1695
      %v1714 = vadd.f32 %v1566, %v1697
      %v1715 = vadd.f32 %v1567, %v1700
      %v1716 = vadd.f32 %v1568, %v1702
      %v1717 = vadd.f32 %v1569, %v1705
      %v1718 = vadd.f32 %v1570, %v1707
      %v1719 = vmax.f32 %v1709, 0.0
      %v1720 = vmax.f32 %v1710, 0.0
      %v1721 = vmax.f32 %v1711, 0.0
      %v1722 = vmax.f32 %v1712, 0.0
      %v1723 = vmax.f32 %v1713, 0.0
      %v1724 = vmax.f32 %v1714, 0.0
      %v1725 = vmax.f32 %v1715, 0.0
      %v1726 = vmax.f32 %v1716, 0.0
      %v1727 = vmax.f32 %v1717, 0.0
      %v1728 = vmax.f32 %v1718, 0.0
      %v1729 = vpack.c.bf16 %v1719, %v1719
      %v1730 = vpack.c.bf16 %v1720, %v1720
      %v1731 = vpack.c.bf16 %v1721, %v1721
      %v1732 = vpack.c.bf16 %v1722, %v1722
      %v1733 = vpack.c.bf16 %v1723, %v1723
      %v1734 = vpack.c.bf16 %v1724, %v1724
      %v1735 = vpack.c.bf16 %v1725, %v1725
      %v1736 = vpack.c.bf16 %v1726, %v1726
      %v1737 = vpack.c.bf16 %v1727, %v1727
      %v1738 = vpack.c.bf16 %v1728, %v1728
      %1739 = vst [vmem:[%s217] sm:$0xf] %v1729
      %1740 = vst [vmem:[%s217 + $0x4] sm:$0xf] %v1730
      %1741 = vst [vmem:[%s217 + $0x8] sm:$0xf] %v1731
      %1742 = vst [vmem:[%s217 + $0xc] sm:$0xf] %v1732
      %1743 = vst [vmem:[%s217 + $0x10] sm:$0xf] %v1733
      %1744 = vst [vmem:[%s217 + $0x14] sm:$0xf] %v1734
      %1745 = vst [vmem:[%s217 + $0x18] sm:$0xf] %v1735
      %1746 = vst [vmem:[%s217 + $0x1c] sm:$0xf] %v1736
      %1747 = vst [vmem:[%s217 + $0x20] sm:$0xf] %v1737
      %1748 = vst [vmem:[%s217 + $0x24] sm:$0xf] %v1738
      %p1749 = scmp.lt.s32.totalorder %s15, 1
      %s1750 = scalar_select %p1749, %s15, 1
      %s1751 = smul.addr %s1750, 10
      %s1752 = smul.addr %s1751, 4
      %s1753 = scalar_lea.vmem %s4, %s1752
      // Predicated region
      $region37: #{basic_block_forward.3} parent=35 // pred_check
        %p1754 = pneg %p127
      $region38: #{basic_block_forward.3} parent=35 // pred_check_branch
        %1756 = sbr.rel (%p1754) target = $region40
      $region39: #{basic_block_forward.3} parent=35 // pred_region
        _
      $region40: #{basic_block_forward.3} parent=35 // pred_fallthru
        _
    $region36: #{basic_block_forward.3} parent=5 // pred_fallthru
      _
    %p1757 = scmp.le.s32.totalorder 2, %s10
    // Predicated region
    $region41: #{basic_block_forward.3} parent=5 // pred_check
      %p1758 = pneg %p1757
    $region42: #{basic_block_forward.3} parent=5 // pred_check_branch
      %1760 = sbr.rel (%p1758) target = $region44
    $region43: #{basic_block_forward.3} parent=5 // pred_region
      %s1761 = ssub.s32 %s10, 2
      // Predicated region
      $region45: #{basic_block_forward.3} parent=43 // pred_check
        %p1762 = pneg %p133
      $region46: #{basic_block_forward.3} parent=43 // pred_check_branch
        %1764 = sbr.rel (%p1762) target = $region48
      $region47: #{basic_block_forward.3} parent=43 // pred_region
        %p1765 = scmp.lt.s32.totalorder %s16, 1
        %s1766 = scalar_select %p1765, %s16, 1
        %s1767 = smul.addr %s1766, 10
        %s1768 = smul.addr %s1767, 4
        %s1769 = scalar_lea.vmem %s4, %s1768
      $region48: #{basic_block_forward.3} parent=43 // pred_fallthru
        _
    $region44: #{basic_block_forward.3} parent=5 // pred_fallthru
      _
  $region6: #{basic_block_forward.3} parent=0 // loop_footer
    %s14 = sadd.s32 1, %s10
  $region7: #{basic_block_forward.3} parent=0 // loop_footer_branch
    %9 = sbr.rel target = $region3
  $region8: #{basic_block_forward.3} parent=0 // loop_exit
    _

</llo_original>
